<compile_context>
chip_gen: v6e
topology: v6e:2x2x1
jax: 0.10.0
libtpu: 0.0.40
codegen_flags: <defaults>
</compile_context>

<pallas_src>
import functools
import math

import jax
import jax.numpy as jnp
from jax import lax
from jax.experimental import pallas as pl
from jax.experimental.pallas import tpu as pltpu


def _round_up(x, m):
    return ((x + m - 1) // m) * m


def _lstm_model_kernel(num_layers, seq_len, hidden_pad, unroll, *refs):
    """refs = (x, [w_ih_T, w_hh_T, b]*L, fc1_wT, fc1_b, fc2_wT, fc2_b, out, seq, gates)."""
    x_ref = refs[0]
    idx = 1
    layer_refs = []
    for _ in range(num_layers):
        layer_refs.append((refs[idx], refs[idx + 1], refs[idx + 2]))
        idx += 3
    fc1_w_ref, fc1_b_ref, fc2_w_ref, fc2_b_ref = refs[idx: idx + 4]
    out_ref = refs[idx + 4]
    seq_ref = refs[idx + 5]    # VMEM scratch (T, Bt, Hp) bf16: inter-layer sequence activations
    gates_ref = refs[idx + 6]  # VMEM scratch (T, Bt, 4*Hp) f32: precomputed input projections

    T = seq_len
    Bt = x_ref.shape[1]
    Hp = hidden_pad
    I_pad = x_ref.shape[2]

    def make_step(w_hh_ref, store_seq):
        def step(t, carry):
            h, c = carry  # h: (Bt, Hp) bf16, c: (Bt, Hp) f32
            # Recurrent projection: read w_hh straight from the VMEM ref at the dot site
            # (avoids a big loop-carried weight value / vreg spills).
            rec = jnp.dot(h, w_hh_ref[...], preferred_element_type=jnp.float32)
            gates = gates_ref[t] + rec  # (Bt, 4*Hp), PyTorch gate order i, f, g, o
            i_g = jax.nn.sigmoid(gates[:, 0 * Hp:1 * Hp])
            f_g = jax.nn.sigmoid(gates[:, 1 * Hp:2 * Hp])
            g_g = jnp.tanh(gates[:, 2 * Hp:3 * Hp])
            o_g = jax.nn.sigmoid(gates[:, 3 * Hp:4 * Hp])
            c_new = f_g * c + i_g * g_g
            h_new = (o_g * jnp.tanh(c_new)).astype(jnp.bfloat16)
            if store_seq:
                seq_ref[t] = h_new
            return h_new, c_new
        return step

    h_last = None
    for layer in range(num_layers):
        w_ih_ref, w_hh_ref, b_ref = layer_refs[layer]

        # Hoisted full-sequence input projection: (T*Bt, in) @ (in, 4Hp) on the MXU,
        # bias added here (off the serial critical path).
        if layer == 0:
            in2d = x_ref[...].reshape(T * Bt, I_pad).astype(jnp.bfloat16)
        else:
            in2d = seq_ref[...].reshape(T * Bt, Hp)  # already bf16
        g = jnp.dot(in2d, w_ih_ref[...], preferred_element_type=jnp.float32) + b_ref[...]
        gates_ref[...] = g.reshape(T, Bt, 4 * Hp)

        # Serial recurrence: only h @ w_hh + gate nonlinearities per step.
        h0 = jnp.zeros((Bt, Hp), jnp.bfloat16)
        c0 = jnp.zeros((Bt, Hp), jnp.float32)
        step = make_step(w_hh_ref, store_seq=(layer != num_layers - 1))
        h_last, _ = lax.fori_loop(0, T, step, (h0, c0), unroll=unroll)

    # Dropout(p=0.5) in eval mode is the identity.
    # TODO(synk): training-mode dropout (Bernoulli mask via pltpu.prng_*) not applied.
    feat = h_last  # == lstm_out[:, -1, :] of the top layer, bf16

    z = jnp.dot(feat, fc1_w_ref[...], preferred_element_type=jnp.float32) + fc1_b_ref[...]
    z = jnp.maximum(z, 0.0)  # relu
    logits = jnp.dot(z.astype(jnp.bfloat16), fc2_w_ref[...],
                     preferred_element_type=jnp.float32) + fc2_b_ref[...]
    out_ref[...] = logits


def _pad_gate_weight(w, H, H_pad, in_pad):
    """PyTorch (4H, in_dim) -> transposed, per-gate lane padded (in_pad, 4*H_pad)."""
    in_dim = w.shape[1]
    w4 = w.T.reshape(in_dim, 4, H)
    w4 = jnp.pad(w4, ((0, in_pad - in_dim), (0, 0), (0, H_pad - H)))
    return w4.reshape(in_pad, 4 * H_pad)


def _pad_gate_bias(b, H, H_pad):
    b4 = b.reshape(4, H)
    b4 = jnp.pad(b4, ((0, 0), (0, H_pad - H)))
    return b4.reshape(1, 4 * H_pad)


def lstm_model_forward(x, params):
    """x: (B, T, input_size) float32, batch_first like the PyTorch module."""
    B, T, I = x.shape
    num_layers = len(params["lstm"])
    H = params["lstm"][0]["w_hh"].shape[1]  # w_hh: (4H, H)
    C = params["fc2_w"].shape[0]

    # --- Padded, lane-dense shapes ---
    I_pad = _round_up(I, 128)
    H_pad = _round_up(H, 128)
    C_pad = _round_up(C, 128)
    B8 = _round_up(B, 8)
    Bt = B8 if B8 <= 256 else 128          # batch tile (grid shards across TensorCores)
    B_pad = _round_up(B, Bt)
    grid = (B_pad // Bt,)

    # x: (B,T,I) -> (T, B_pad, I_pad) f32 (cast to bf16 at the dot inside the kernel).
    x_tbi = jnp.transpose(x.astype(jnp.float32), (1, 0, 2))
    x_tbi = jnp.pad(x_tbi, ((0, 0), (0, B_pad - B), (0, I_pad - I)))

    inputs = [x_tbi]
    in_specs = [pl.BlockSpec((T, Bt, I_pad), lambda b: (0, b, 0))]

    for layer, lp in enumerate(params["lstm"]):
        in_pad = I_pad if layer == 0 else H_pad
        w_ih = _pad_gate_weight(lp["w_ih"], H, H_pad, in_pad).astype(jnp.bfloat16)
        w_hh = _pad_gate_weight(lp["w_hh"], H, H_pad, H_pad).astype(jnp.bfloat16)
        b_gate = _pad_gate_bias(lp["b_ih"] + lp["b_hh"], H, H_pad).astype(jnp.float32)
        inputs += [w_ih, w_hh, b_gate]
        in_specs += [
            pl.BlockSpec((in_pad, 4 * H_pad), lambda b: (0, 0)),
            pl.BlockSpec((H_pad, 4 * H_pad), lambda b: (0, 0)),
            pl.BlockSpec((1, 4 * H_pad), lambda b: (0, 0)),
        ]

    fc1_w = jnp.pad(params["fc1_w"].T, ((0, H_pad - H), (0, H_pad - H))).astype(jnp.bfloat16)
    fc1_b = jnp.pad(params["fc1_b"], (0, H_pad - H)).astype(jnp.float32)[None, :]
    fc2_w = jnp.pad(params["fc2_w"].T, ((0, H_pad - H), (0, C_pad - C))).astype(jnp.bfloat16)
    fc2_b = jnp.pad(params["fc2_b"], (0, C_pad - C)).astype(jnp.float32)[None, :]
    inputs += [fc1_w, fc1_b, fc2_w, fc2_b]
    in_specs += [
        pl.BlockSpec((H_pad, H_pad), lambda b: (0, 0)),
        pl.BlockSpec((1, H_pad), lambda b: (0, 0)),
        pl.BlockSpec((H_pad, C_pad), lambda b: (0, 0)),
        pl.BlockSpec((1, C_pad), lambda b: (0, 0)),
    ]

    out_specs = pl.BlockSpec((Bt, C_pad), lambda b: (b, 0))
    out_shape = jax.ShapeDtypeStruct((B_pad, C_pad), jnp.float32)

    # Inter-layer sequence scratch only needed when there is more than one LSTM layer.
    seq_shape = (T, Bt, H_pad) if num_layers > 1 else (1, 8, 128)
    scratch_shapes = [
        pltpu.VMEM(seq_shape, jnp.bfloat16),           # inter-layer sequence activations
        pltpu.VMEM((T, Bt, 4 * H_pad), jnp.float32),   # precomputed input-projection gates
    ]

    # VMEM budget: double-buffered per-block inputs/outputs + weights + scratch + headroom.
    weight_bytes = sum(math.prod(a.shape) * a.dtype.itemsize for a in inputs[1:])
    x_block_bytes = T * Bt * I_pad * 4
    out_block_bytes = Bt * C_pad * 4
    scratch_bytes = math.prod(seq_shape) * 2 + T * Bt * 4 * H_pad * 4
    needed = 2 * (x_block_bytes + out_block_bytes + weight_bytes) + scratch_bytes + (4 << 20)
    vmem_limit = int(min(max(needed, 32 << 20), 120 << 20))

    unroll = True if T <= 32 else 4
    kernel = functools.partial(_lstm_model_kernel, num_layers, T, H_pad, unroll)

    out = pl.pallas_call(
        kernel,
        grid=grid,
        out_shape=out_shape,
        in_specs=in_specs,
        out_specs=out_specs,
        scratch_shapes=scratch_shapes,
        compiler_params=pltpu.CompilerParams(
            dimension_semantics=("parallel",),
            vmem_limit_bytes=vmem_limit,
        ),
    )(*inputs)
    return out[:B, :C]


def init_params(key, input_size, hidden_size, num_layers, num_classes):
    """Deterministic init mimicking PyTorch's uniform(-1/sqrt(fan), 1/sqrt(fan))."""
    params = {"lstm": []}
    k_lstm = 1.0 / jnp.sqrt(hidden_size)
    for layer in range(num_layers):
        in_dim = input_size if layer == 0 else hidden_size
        key, k1, k2, k3, k4 = jax.random.split(key, 5)
        params["lstm"].append(
            {
                "w_ih": jax.random.uniform(k1, (4 * hidden_size, in_dim), jnp.float32, -k_lstm, k_lstm),
                "w_hh": jax.random.uniform(k2, (4 * hidden_size, hidden_size), jnp.float32, -k_lstm, k_lstm),
                "b_ih": jax.random.uniform(k3, (4 * hidden_size,), jnp.float32, -k_lstm, k_lstm),
                "b_hh": jax.random.uniform(k4, (4 * hidden_size,), jnp.float32, -k_lstm, k_lstm),
            }
        )
    k_fc = 1.0 / jnp.sqrt(hidden_size)
    key, k1, k2, k3, k4 = jax.random.split(key, 5)
    params["fc1_w"] = jax.random.uniform(k1, (hidden_size, hidden_size), jnp.float32, -k_fc, k_fc)
    params["fc1_b"] = jax.random.uniform(k2, (hidden_size,), jnp.float32, -k_fc, k_fc)
    params["fc2_w"] = jax.random.uniform(k3, (num_classes, hidden_size), jnp.float32, -k_fc, k_fc)
    params["fc2_b"] = jax.random.uniform(k4, (num_classes,), jnp.float32, -k_fc, k_fc)
    return params


if __name__ == "__main__":
    B, T = 2, 8
    input_size, hidden_size, num_layers, num_classes = 16, 32, 2, 10

    key = jax.random.PRNGKey(0)
    key, kx, kp = jax.random.split(key, 3)
    x = jax.random.normal(kx, (B, T, input_size), jnp.float32)
    params = init_params(kp, input_size, hidden_size, num_layers, num_classes)

    logits = lstm_model_forward(x, params)
    jax.block_until_ready(logits)
    assert logits.shape == (B, num_classes)
    print("KERNEL_OK")
</pallas_src>

<mosaic_0001>
module attributes {stable_mosaic.version = 11 : i64} {
  func.func @_lstm_model_kernel(%arg0: i32, %arg1: memref<8x8x128xf32, #tpu.memory_space<vmem>>, %arg2: memref<128x512xbf16, #tpu.memory_space<vmem>>, %arg3: memref<128x512xbf16, #tpu.memory_space<vmem>>, %arg4: memref<1x512xf32, #tpu.memory_space<vmem>>, %arg5: memref<128x512xbf16, #tpu.memory_space<vmem>>, %arg6: memref<128x512xbf16, #tpu.memory_space<vmem>>, %arg7: memref<1x512xf32, #tpu.memory_space<vmem>>, %arg8: memref<128x128xbf16, #tpu.memory_space<vmem>>, %arg9: memref<1x128xf32, #tpu.memory_space<vmem>>, %arg10: memref<128x128xbf16, #tpu.memory_space<vmem>>, %arg11: memref<1x128xf32, #tpu.memory_space<vmem>>, %arg12: memref<8x128xf32, #tpu.memory_space<vmem>>, %arg13: memref<8x8x128xbf16, #tpu.memory_space<vmem>>, %arg14: memref<8x8x512xf32, #tpu.memory_space<vmem>>) attributes {dimension_semantics = [#tpu.dimension_semantics<parallel>], iteration_bounds = array<i64: 1>, scalar_prefetch = 0 : i64, scratch_operands = 2 : i64, tpu.core_type = #tpu.core_type<tc>, window_params = [{transform_indices = @transform_0, window_bounds = array<i64: 8, 8, 128>}, {pipeline_mode = #tpu.pipeline_mode<synchronous>, transform_indices = @transform_1, window_bounds = array<i64: 128, 512>}, {pipeline_mode = #tpu.pipeline_mode<synchronous>, transform_indices = @transform_2, window_bounds = array<i64: 128, 512>}, {pipeline_mode = #tpu.pipeline_mode<synchronous>, transform_indices = @transform_3, window_bounds = array<i64: 1, 512>}, {pipeline_mode = #tpu.pipeline_mode<synchronous>, transform_indices = @transform_4, window_bounds = array<i64: 128, 512>}, {pipeline_mode = #tpu.pipeline_mode<synchronous>, transform_indices = @transform_5, window_bounds = array<i64: 128, 512>}, {pipeline_mode = #tpu.pipeline_mode<synchronous>, transform_indices = @transform_6, window_bounds = array<i64: 1, 512>}, {pipeline_mode = #tpu.pipeline_mode<synchronous>, transform_indices = @transform_7, window_bounds = array<i64: 128, 128>}, {pipeline_mode = #tpu.pipeline_mode<synchronous>, transform_indices = @transform_8, window_bounds = array<i64: 1, 128>}, {pipeline_mode = #tpu.pipeline_mode<synchronous>, transform_indices = @transform_9, window_bounds = array<i64: 128, 128>}, {pipeline_mode = #tpu.pipeline_mode<synchronous>, transform_indices = @transform_10, window_bounds = array<i64: 1, 128>}, {transform_indices = @transform_11, window_bounds = array<i64: 8, 128>}]} {
    %c0 = arith.constant 0 : index
    %c0_0 = arith.constant 0 : index
    %c0_1 = arith.constant 0 : index
    %0 = vector.load %arg1[%c0, %c0_0, %c0_1] : memref<8x8x128xf32, #tpu.memory_space<vmem>>, vector<8x8x128xf32>
    %1 = vector.shape_cast %0 : vector<8x8x128xf32> to vector<64x128xf32>
    %2 = arith.truncf %1 : vector<64x128xf32> to vector<64x128xbf16>
    %c0_2 = arith.constant 0 : index
    %c0_3 = arith.constant 0 : index
    %3 = vector.load %arg2[%c0_2, %c0_3] : memref<128x512xbf16, #tpu.memory_space<vmem>>, vector<128x512xbf16>
    %cst = arith.constant dense<0.000000e+00> : vector<64x512xf32>
    %4 = tpu.matmul %2, %3, %cst {dimension_numbers = #tpu.dot_dimension_numbers<[1], [0], [0], [1], [0, 0, 1, 1], [], []>} : vector<64x128xbf16>, vector<128x512xbf16>, vector<64x512xf32> -> vector<64x512xf32>
    %c0_4 = arith.constant 0 : index
    %c0_5 = arith.constant 0 : index
    %5 = vector.load %arg4[%c0_4, %c0_5] : memref<1x512xf32, #tpu.memory_space<vmem>>, vector<1x512xf32>
    %6 = vector.broadcast %5 : vector<1x512xf32> to vector<64x512xf32>
    %7 = arith.addf %4, %6 : vector<64x512xf32>
    %8 = vector.shape_cast %7 : vector<64x512xf32> to vector<8x8x512xf32>
    %c0_6 = arith.constant 0 : index
    %c0_7 = arith.constant 0 : index
    %c0_8 = arith.constant 0 : index
    %9 = vector.load %arg14[%c0_6, %c0_7, %c0_8] : memref<8x8x512xf32, #tpu.memory_space<vmem>>, vector<8x8x512xf32>
    tpu.vector_store %arg14[%c0_6, %c0_7, %c0_8], %8 {strides = array<i32>} : memref<8x8x512xf32, #tpu.memory_space<vmem>>, vector<8x8x512xf32>,
    %cst_9 = arith.constant 0.000000e+00 : bf16
    %10 = vector.broadcast %cst_9 : bf16 to vector<8x128xbf16>
    %cst_10 = arith.constant 0.000000e+00 : f32
    %11 = vector.broadcast %cst_10 : f32 to vector<8x128xf32>
    %c0_i32 = arith.constant 0 : i32
    %c0_11 = arith.constant 0 : index
    %c0_12 = arith.constant 0 : index
    %12 = vector.load %arg3[%c0_11, %c0_12] : memref<128x512xbf16, #tpu.memory_space<vmem>>, vector<128x512xbf16>
    %cst_13 = arith.constant dense<0.000000e+00> : vector<8x512xf32>
    %13 = tpu.matmul %10, %12, %cst_13 {dimension_numbers = #tpu.dot_dimension_numbers<[1], [0], [0], [1], [0, 0, 1, 1], [], []>} : vector<8x128xbf16>, vector<128x512xbf16>, vector<8x512xf32> -> vector<8x512xf32>
    %14 = arith.index_cast %c0_i32 : i32 to index
    %c0_14 = arith.constant 0 : index
    %c0_15 = arith.constant 0 : index
    %15 = vector.load %arg14[%14, %c0_14, %c0_15] : memref<8x8x512xf32, #tpu.memory_space<vmem>>, vector<1x8x512xf32>
    %16 = vector.shape_cast %15 : vector<1x8x512xf32> to vector<8x512xf32>
    %17 = arith.addf %16, %13 : vector<8x512xf32>
    %18 = vector.extract_strided_slice %17 {offsets = [0, 0], sizes = [8, 128], strides = [1, 1]} : vector<8x512xf32> to vector<8x128xf32>
    %19 = arith.negf %18 : vector<8x128xf32>
    %20 = math.exp %19 : vector<8x128xf32>
    %cst_16 = arith.constant 1.000000e+00 : f32
    %21 = vector.broadcast %cst_16 : f32 to vector<8x128xf32>
    %22 = arith.addf %21, %20 : vector<8x128xf32>
    %23 = arith.divf %21, %22 : vector<8x128xf32>
    %24 = vector.extract_strided_slice %17 {offsets = [0, 128], sizes = [8, 128], strides = [1, 1]} : vector<8x512xf32> to vector<8x128xf32>
    %25 = arith.negf %24 : vector<8x128xf32>
    %26 = math.exp %25 : vector<8x128xf32>
    %cst_17 = arith.constant 1.000000e+00 : f32
    %27 = vector.broadcast %cst_17 : f32 to vector<8x128xf32>
    %28 = arith.addf %27, %26 : vector<8x128xf32>
    %29 = arith.divf %27, %28 : vector<8x128xf32>
    %30 = vector.extract_strided_slice %17 {offsets = [0, 256], sizes = [8, 128], strides = [1, 1]} : vector<8x512xf32> to vector<8x128xf32>
    %31 = math.tanh %30 : vector<8x128xf32>
    %32 = vector.extract_strided_slice %17 {offsets = [0, 384], sizes = [8, 128], strides = [1, 1]} : vector<8x512xf32> to vector<8x128xf32>
    %33 = arith.negf %32 : vector<8x128xf32>
    %34 = math.exp %33 : vector<8x128xf32>
    %cst_18 = arith.constant 1.000000e+00 : f32
    %35 = vector.broadcast %cst_18 : f32 to vector<8x128xf32>
    %36 = arith.addf %35, %34 : vector<8x128xf32>
    %37 = arith.divf %35, %36 : vector<8x128xf32>
    %38 = arith.mulf %29, %11 : vector<8x128xf32>
    %39 = arith.mulf %23, %31 : vector<8x128xf32>
    %40 = arith.addf %38, %39 : vector<8x128xf32>
    %41 = math.tanh %40 : vector<8x128xf32>
    %42 = arith.mulf %37, %41 : vector<8x128xf32>
    %43 = arith.truncf %42 : vector<8x128xf32> to vector<8x128xbf16>
    %44 = arith.index_cast %c0_i32 : i32 to index
    %c0_19 = arith.constant 0 : index
    %c0_20 = arith.constant 0 : index
    %45 = vector.load %arg13[%44, %c0_19, %c0_20] : memref<8x8x128xbf16, #tpu.memory_space<vmem>>, vector<1x8x128xbf16>
    %46 = vector.shape_cast %45 : vector<1x8x128xbf16> to vector<8x128xbf16>
    %47 = vector.shape_cast %43 : vector<8x128xbf16> to vector<1x8x128xbf16>
    tpu.vector_store %arg13[%44, %c0_19, %c0_20], %47 {strides = array<i32>} : memref<8x8x128xbf16, #tpu.memory_space<vmem>>, vector<1x8x128xbf16>,
    %c1_i32 = arith.constant 1 : i32
    %c0_21 = arith.constant 0 : index
    %c0_22 = arith.constant 0 : index
    %48 = vector.load %arg3[%c0_21, %c0_22] : memref<128x512xbf16, #tpu.memory_space<vmem>>, vector<128x512xbf16>
    %cst_23 = arith.constant dense<0.000000e+00> : vector<8x512xf32>
    %49 = tpu.matmul %43, %48, %cst_23 {dimension_numbers = #tpu.dot_dimension_numbers<[1], [0], [0], [1], [0, 0, 1, 1], [], []>} : vector<8x128xbf16>, vector<128x512xbf16>, vector<8x512xf32> -> vector<8x512xf32>
    %50 = arith.index_cast %c1_i32 : i32 to index
    %c0_24 = arith.constant 0 : index
    %c0_25 = arith.constant 0 : index
    %51 = vector.load %arg14[%50, %c0_24, %c0_25] : memref<8x8x512xf32, #tpu.memory_space<vmem>>, vector<1x8x512xf32>
    %52 = vector.shape_cast %51 : vector<1x8x512xf32> to vector<8x512xf32>
    %53 = arith.addf %52, %49 : vector<8x512xf32>
    %54 = vector.extract_strided_slice %53 {offsets = [0, 0], sizes = [8, 128], strides = [1, 1]} : vector<8x512xf32> to vector<8x128xf32>
    %55 = arith.negf %54 : vector<8x128xf32>
    %56 = math.exp %55 : vector<8x128xf32>
    %cst_26 = arith.constant 1.000000e+00 : f32
    %57 = vector.broadcast %cst_26 : f32 to vector<8x128xf32>
    %58 = arith.addf %57, %56 : vector<8x128xf32>
    %59 = arith.divf %57, %58 : vector<8x128xf32>
    %60 = vector.extract_strided_slice %53 {offsets = [0, 128], sizes = [8, 128], strides = [1, 1]} : vector<8x512xf32> to vector<8x128xf32>
    %61 = arith.negf %60 : vector<8x128xf32>
    %62 = math.exp %61 : vector<8x128xf32>
    %cst_27 = arith.constant 1.000000e+00 : f32
    %63 = vector.broadcast %cst_27 : f32 to vector<8x128xf32>
    %64 = arith.addf %63, %62 : vector<8x128xf32>
    %65 = arith.divf %63, %64 : vector<8x128xf32>
    %66 = vector.extract_strided_slice %53 {offsets = [0, 256], sizes = [8, 128], strides = [1, 1]} : vector<8x512xf32> to vector<8x128xf32>
    %67 = math.tanh %66 : vector<8x128xf32>
    %68 = vector.extract_strided_slice %53 {offsets = [0, 384], sizes = [8, 128], strides = [1, 1]} : vector<8x512xf32> to vector<8x128xf32>
    %69 = arith.negf %68 : vector<8x128xf32>
    %70 = math.exp %69 : vector<8x128xf32>
    %cst_28 = arith.constant 1.000000e+00 : f32
    %71 = vector.broadcast %cst_28 : f32 to vector<8x128xf32>
    %72 = arith.addf %71, %70 : vector<8x128xf32>
    %73 = arith.divf %71, %72 : vector<8x128xf32>
    %74 = arith.mulf %65, %40 : vector<8x128xf32>
    %75 = arith.mulf %59, %67 : vector<8x128xf32>
    %76 = arith.addf %74, %75 : vector<8x128xf32>
    %77 = math.tanh %76 : vector<8x128xf32>
    %78 = arith.mulf %73, %77 : vector<8x128xf32>
    %79 = arith.truncf %78 : vector<8x128xf32> to vector<8x128xbf16>
    %80 = arith.index_cast %c1_i32 : i32 to index
    %c0_29 = arith.constant 0 : index
    %c0_30 = arith.constant 0 : index
    %81 = vector.load %arg13[%80, %c0_29, %c0_30] : memref<8x8x128xbf16, #tpu.memory_space<vmem>>, vector<1x8x128xbf16>
    %82 = vector.shape_cast %81 : vector<1x8x128xbf16> to vector<8x128xbf16>
    %83 = vector.shape_cast %79 : vector<8x128xbf16> to vector<1x8x128xbf16>
    tpu.vector_store %arg13[%80, %c0_29, %c0_30], %83 {strides = array<i32>} : memref<8x8x128xbf16, #tpu.memory_space<vmem>>, vector<1x8x128xbf16>,
    %c2_i32 = arith.constant 2 : i32
    %c0_31 = arith.constant 0 : index
    %c0_32 = arith.constant 0 : index
    %84 = vector.load %arg3[%c0_31, %c0_32] : memref<128x512xbf16, #tpu.memory_space<vmem>>, vector<128x512xbf16>
    %cst_33 = arith.constant dense<0.000000e+00> : vector<8x512xf32>
    %85 = tpu.matmul %79, %84, %cst_33 {dimension_numbers = #tpu.dot_dimension_numbers<[1], [0], [0], [1], [0, 0, 1, 1], [], []>} : vector<8x128xbf16>, vector<128x512xbf16>, vector<8x512xf32> -> vector<8x512xf32>
    %86 = arith.index_cast %c2_i32 : i32 to index
    %c0_34 = arith.constant 0 : index
    %c0_35 = arith.constant 0 : index
    %87 = vector.load %arg14[%86, %c0_34, %c0_35] : memref<8x8x512xf32, #tpu.memory_space<vmem>>, vector<1x8x512xf32>
    %88 = vector.shape_cast %87 : vector<1x8x512xf32> to vector<8x512xf32>
    %89 = arith.addf %88, %85 : vector<8x512xf32>
    %90 = vector.extract_strided_slice %89 {offsets = [0, 0], sizes = [8, 128], strides = [1, 1]} : vector<8x512xf32> to vector<8x128xf32>
    %91 = arith.negf %90 : vector<8x128xf32>
    %92 = math.exp %91 : vector<8x128xf32>
    %cst_36 = arith.constant 1.000000e+00 : f32
    %93 = vector.broadcast %cst_36 : f32 to vector<8x128xf32>
    %94 = arith.addf %93, %92 : vector<8x128xf32>
    %95 = arith.divf %93, %94 : vector<8x128xf32>
    %96 = vector.extract_strided_slice %89 {offsets = [0, 128], sizes = [8, 128], strides = [1, 1]} : vector<8x512xf32> to vector<8x128xf32>
    %97 = arith.negf %96 : vector<8x128xf32>
    %98 = math.exp %97 : vector<8x128xf32>
    %cst_37 = arith.constant 1.000000e+00 : f32
    %99 = vector.broadcast %cst_37 : f32 to vector<8x128xf32>
    %100 = arith.addf %99, %98 : vector<8x128xf32>
    %101 = arith.divf %99, %100 : vector<8x128xf32>
    %102 = vector.extract_strided_slice %89 {offsets = [0, 256], sizes = [8, 128], strides = [1, 1]} : vector<8x512xf32> to vector<8x128xf32>
    %103 = math.tanh %102 : vector<8x128xf32>
    %104 = vector.extract_strided_slice %89 {offsets = [0, 384], sizes = [8, 128], strides = [1, 1]} : vector<8x512xf32> to vector<8x128xf32>
    %105 = arith.negf %104 : vector<8x128xf32>
    %106 = math.exp %105 : vector<8x128xf32>
    %cst_38 = arith.constant 1.000000e+00 : f32
    %107 = vector.broadcast %cst_38 : f32 to vector<8x128xf32>
    %108 = arith.addf %107, %106 : vector<8x128xf32>
    %109 = arith.divf %107, %108 : vector<8x128xf32>
    %110 = arith.mulf %101, %76 : vector<8x128xf32>
    %111 = arith.mulf %95, %103 : vector<8x128xf32>
    %112 = arith.addf %110, %111 : vector<8x128xf32>
    %113 = math.tanh %112 : vector<8x128xf32>
    %114 = arith.mulf %109, %113 : vector<8x128xf32>
    %115 = arith.truncf %114 : vector<8x128xf32> to vector<8x128xbf16>
    %116 = arith.index_cast %c2_i32 : i32 to index
    %c0_39 = arith.constant 0 : index
    %c0_40 = arith.constant 0 : index
    %117 = vector.load %arg13[%116, %c0_39, %c0_40] : memref<8x8x128xbf16, #tpu.memory_space<vmem>>, vector<1x8x128xbf16>
    %118 = vector.shape_cast %117 : vector<1x8x128xbf16> to vector<8x128xbf16>
    %119 = vector.shape_cast %115 : vector<8x128xbf16> to vector<1x8x128xbf16>
    tpu.vector_store %arg13[%116, %c0_39, %c0_40], %119 {strides = array<i32>} : memref<8x8x128xbf16, #tpu.memory_space<vmem>>, vector<1x8x128xbf16>,
    %c3_i32 = arith.constant 3 : i32
    %c0_41 = arith.constant 0 : index
    %c0_42 = arith.constant 0 : index
    %120 = vector.load %arg3[%c0_41, %c0_42] : memref<128x512xbf16, #tpu.memory_space<vmem>>, vector<128x512xbf16>
    %cst_43 = arith.constant dense<0.000000e+00> : vector<8x512xf32>
    %121 = tpu.matmul %115, %120, %cst_43 {dimension_numbers = #tpu.dot_dimension_numbers<[1], [0], [0], [1], [0, 0, 1, 1], [], []>} : vector<8x128xbf16>, vector<128x512xbf16>, vector<8x512xf32> -> vector<8x512xf32>
    %122 = arith.index_cast %c3_i32 : i32 to index
    %c0_44 = arith.constant 0 : index
    %c0_45 = arith.constant 0 : index
    %123 = vector.load %arg14[%122, %c0_44, %c0_45] : memref<8x8x512xf32, #tpu.memory_space<vmem>>, vector<1x8x512xf32>
    %124 = vector.shape_cast %123 : vector<1x8x512xf32> to vector<8x512xf32>
    %125 = arith.addf %124, %121 : vector<8x512xf32>
    %126 = vector.extract_strided_slice %125 {offsets = [0, 0], sizes = [8, 128], strides = [1, 1]} : vector<8x512xf32> to vector<8x128xf32>
    %127 = arith.negf %126 : vector<8x128xf32>
    %128 = math.exp %127 : vector<8x128xf32>
    %cst_46 = arith.constant 1.000000e+00 : f32
    %129 = vector.broadcast %cst_46 : f32 to vector<8x128xf32>
    %130 = arith.addf %129, %128 : vector<8x128xf32>
    %131 = arith.divf %129, %130 : vector<8x128xf32>
    %132 = vector.extract_strided_slice %125 {offsets = [0, 128], sizes = [8, 128], strides = [1, 1]} : vector<8x512xf32> to vector<8x128xf32>
    %133 = arith.negf %132 : vector<8x128xf32>
    %134 = math.exp %133 : vector<8x128xf32>
    %cst_47 = arith.constant 1.000000e+00 : f32
    %135 = vector.broadcast %cst_47 : f32 to vector<8x128xf32>
    %136 = arith.addf %135, %134 : vector<8x128xf32>
    %137 = arith.divf %135, %136 : vector<8x128xf32>
    %138 = vector.extract_strided_slice %125 {offsets = [0, 256], sizes = [8, 128], strides = [1, 1]} : vector<8x512xf32> to vector<8x128xf32>
    %139 = math.tanh %138 : vector<8x128xf32>
    %140 = vector.extract_strided_slice %125 {offsets = [0, 384], sizes = [8, 128], strides = [1, 1]} : vector<8x512xf32> to vector<8x128xf32>
    %141 = arith.negf %140 : vector<8x128xf32>
    %142 = math.exp %141 : vector<8x128xf32>
    %cst_48 = arith.constant 1.000000e+00 : f32
    %143 = vector.broadcast %cst_48 : f32 to vector<8x128xf32>
    %144 = arith.addf %143, %142 : vector<8x128xf32>
    %145 = arith.divf %143, %144 : vector<8x128xf32>
    %146 = arith.mulf %137, %112 : vector<8x128xf32>
    %147 = arith.mulf %131, %139 : vector<8x128xf32>
    %148 = arith.addf %146, %147 : vector<8x128xf32>
    %149 = math.tanh %148 : vector<8x128xf32>
    %150 = arith.mulf %145, %149 : vector<8x128xf32>
    %151 = arith.truncf %150 : vector<8x128xf32> to vector<8x128xbf16>
    %152 = arith.index_cast %c3_i32 : i32 to index
    %c0_49 = arith.constant 0 : index
    %c0_50 = arith.constant 0 : index
    %153 = vector.load %arg13[%152, %c0_49, %c0_50] : memref<8x8x128xbf16, #tpu.memory_space<vmem>>, vector<1x8x128xbf16>
    %154 = vector.shape_cast %153 : vector<1x8x128xbf16> to vector<8x128xbf16>
    %155 = vector.shape_cast %151 : vector<8x128xbf16> to vector<1x8x128xbf16>
    tpu.vector_store %arg13[%152, %c0_49, %c0_50], %155 {strides = array<i32>} : memref<8x8x128xbf16, #tpu.memory_space<vmem>>, vector<1x8x128xbf16>,
    %c4_i32 = arith.constant 4 : i32
    %c0_51 = arith.constant 0 : index
    %c0_52 = arith.constant 0 : index
    %156 = vector.load %arg3[%c0_51, %c0_52] : memref<128x512xbf16, #tpu.memory_space<vmem>>, vector<128x512xbf16>
    %cst_53 = arith.constant dense<0.000000e+00> : vector<8x512xf32>
    %157 = tpu.matmul %151, %156, %cst_53 {dimension_numbers = #tpu.dot_dimension_numbers<[1], [0], [0], [1], [0, 0, 1, 1], [], []>} : vector<8x128xbf16>, vector<128x512xbf16>, vector<8x512xf32> -> vector<8x512xf32>
    %158 = arith.index_cast %c4_i32 : i32 to index
    %c0_54 = arith.constant 0 : index
    %c0_55 = arith.constant 0 : index
    %159 = vector.load %arg14[%158, %c0_54, %c0_55] : memref<8x8x512xf32, #tpu.memory_space<vmem>>, vector<1x8x512xf32>
    %160 = vector.shape_cast %159 : vector<1x8x512xf32> to vector<8x512xf32>
    %161 = arith.addf %160, %157 : vector<8x512xf32>
    %162 = vector.extract_strided_slice %161 {offsets = [0, 0], sizes = [8, 128], strides = [1, 1]} : vector<8x512xf32> to vector<8x128xf32>
    %163 = arith.negf %162 : vector<8x128xf32>
    %164 = math.exp %163 : vector<8x128xf32>
    %cst_56 = arith.constant 1.000000e+00 : f32
    %165 = vector.broadcast %cst_56 : f32 to vector<8x128xf32>
    %166 = arith.addf %165, %164 : vector<8x128xf32>
    %167 = arith.divf %165, %166 : vector<8x128xf32>
    %168 = vector.extract_strided_slice %161 {offsets = [0, 128], sizes = [8, 128], strides = [1, 1]} : vector<8x512xf32> to vector<8x128xf32>
    %169 = arith.negf %168 : vector<8x128xf32>
    %170 = math.exp %169 : vector<8x128xf32>
    %cst_57 = arith.constant 1.000000e+00 : f32
    %171 = vector.broadcast %cst_57 : f32 to vector<8x128xf32>
    %172 = arith.addf %171, %170 : vector<8x128xf32>
    %173 = arith.divf %171, %172 : vector<8x128xf32>
    %174 = vector.extract_strided_slice %161 {offsets = [0, 256], sizes = [8, 128], strides = [1, 1]} : vector<8x512xf32> to vector<8x128xf32>
    %175 = math.tanh %174 : vector<8x128xf32>
    %176 = vector.extract_strided_slice %161 {offsets = [0, 384], sizes = [8, 128], strides = [1, 1]} : vector<8x512xf32> to vector<8x128xf32>
    %177 = arith.negf %176 : vector<8x128xf32>
    %178 = math.exp %177 : vector<8x128xf32>
    %cst_58 = arith.constant 1.000000e+00 : f32
    %179 = vector.broadcast %cst_58 : f32 to vector<8x128xf32>
    %180 = arith.addf %179, %178 : vector<8x128xf32>
    %181 = arith.divf %179, %180 : vector<8x128xf32>
    %182 = arith.mulf %173, %148 : vector<8x128xf32>
    %183 = arith.mulf %167, %175 : vector<8x128xf32>
    %184 = arith.addf %182, %183 : vector<8x128xf32>
    %185 = math.tanh %184 : vector<8x128xf32>
    %186 = arith.mulf %181, %185 : vector<8x128xf32>
    %187 = arith.truncf %186 : vector<8x128xf32> to vector<8x128xbf16>
    %188 = arith.index_cast %c4_i32 : i32 to index
    %c0_59 = arith.constant 0 : index
    %c0_60 = arith.constant 0 : index
    %189 = vector.load %arg13[%188, %c0_59, %c0_60] : memref<8x8x128xbf16, #tpu.memory_space<vmem>>, vector<1x8x128xbf16>
    %190 = vector.shape_cast %189 : vector<1x8x128xbf16> to vector<8x128xbf16>
    %191 = vector.shape_cast %187 : vector<8x128xbf16> to vector<1x8x128xbf16>
    tpu.vector_store %arg13[%188, %c0_59, %c0_60], %191 {strides = array<i32>} : memref<8x8x128xbf16, #tpu.memory_space<vmem>>, vector<1x8x128xbf16>,
    %c5_i32 = arith.constant 5 : i32
    %c0_61 = arith.constant 0 : index
    %c0_62 = arith.constant 0 : index
    %192 = vector.load %arg3[%c0_61, %c0_62] : memref<128x512xbf16, #tpu.memory_space<vmem>>, vector<128x512xbf16>
    %cst_63 = arith.constant dense<0.000000e+00> : vector<8x512xf32>
    %193 = tpu.matmul %187, %192, %cst_63 {dimension_numbers = #tpu.dot_dimension_numbers<[1], [0], [0], [1], [0, 0, 1, 1], [], []>} : vector<8x128xbf16>, vector<128x512xbf16>, vector<8x512xf32> -> vector<8x512xf32>
    %194 = arith.index_cast %c5_i32 : i32 to index
    %c0_64 = arith.constant 0 : index
    %c0_65 = arith.constant 0 : index
    %195 = vector.load %arg14[%194, %c0_64, %c0_65] : memref<8x8x512xf32, #tpu.memory_space<vmem>>, vector<1x8x512xf32>
    %196 = vector.shape_cast %195 : vector<1x8x512xf32> to vector<8x512xf32>
    %197 = arith.addf %196, %193 : vector<8x512xf32>
    %198 = vector.extract_strided_slice %197 {offsets = [0, 0], sizes = [8, 128], strides = [1, 1]} : vector<8x512xf32> to vector<8x128xf32>
    %199 = arith.negf %198 : vector<8x128xf32>
    %200 = math.exp %199 : vector<8x128xf32>
    %cst_66 = arith.constant 1.000000e+00 : f32
    %201 = vector.broadcast %cst_66 : f32 to vector<8x128xf32>
    %202 = arith.addf %201, %200 : vector<8x128xf32>
    %203 = arith.divf %201, %202 : vector<8x128xf32>
    %204 = vector.extract_strided_slice %197 {offsets = [0, 128], sizes = [8, 128], strides = [1, 1]} : vector<8x512xf32> to vector<8x128xf32>
    %205 = arith.negf %204 : vector<8x128xf32>
    %206 = math.exp %205 : vector<8x128xf32>
    %cst_67 = arith.constant 1.000000e+00 : f32
    %207 = vector.broadcast %cst_67 : f32 to vector<8x128xf32>
    %208 = arith.addf %207, %206 : vector<8x128xf32>
    %209 = arith.divf %207, %208 : vector<8x128xf32>
    %210 = vector.extract_strided_slice %197 {offsets = [0, 256], sizes = [8, 128], strides = [1, 1]} : vector<8x512xf32> to vector<8x128xf32>
    %211 = math.tanh %210 : vector<8x128xf32>
    %212 = vector.extract_strided_slice %197 {offsets = [0, 384], sizes = [8, 128], strides = [1, 1]} : vector<8x512xf32> to vector<8x128xf32>
    %213 = arith.negf %212 : vector<8x128xf32>
    %214 = math.exp %213 : vector<8x128xf32>
    %cst_68 = arith.constant 1.000000e+00 : f32
    %215 = vector.broadcast %cst_68 : f32 to vector<8x128xf32>
    %216 = arith.addf %215, %214 : vector<8x128xf32>
    %217 = arith.divf %215, %216 : vector<8x128xf32>
    %218 = arith.mulf %209, %184 : vector<8x128xf32>
    %219 = arith.mulf %203, %211 : vector<8x128xf32>
    %220 = arith.addf %218, %219 : vector<8x128xf32>
    %221 = math.tanh %220 : vector<8x128xf32>
    %222 = arith.mulf %217, %221 : vector<8x128xf32>
    %223 = arith.truncf %222 : vector<8x128xf32> to vector<8x128xbf16>
    %224 = arith.index_cast %c5_i32 : i32 to index
    %c0_69 = arith.constant 0 : index
    %c0_70 = arith.constant 0 : index
    %225 = vector.load %arg13[%224, %c0_69, %c0_70] : memref<8x8x128xbf16, #tpu.memory_space<vmem>>, vector<1x8x128xbf16>
    %226 = vector.shape_cast %225 : vector<1x8x128xbf16> to vector<8x128xbf16>
    %227 = vector.shape_cast %223 : vector<8x128xbf16> to vector<1x8x128xbf16>
    tpu.vector_store %arg13[%224, %c0_69, %c0_70], %227 {strides = array<i32>} : memref<8x8x128xbf16, #tpu.memory_space<vmem>>, vector<1x8x128xbf16>,
    %c6_i32 = arith.constant 6 : i32
    %c0_71 = arith.constant 0 : index
    %c0_72 = arith.constant 0 : index
    %228 = vector.load %arg3[%c0_71, %c0_72] : memref<128x512xbf16, #tpu.memory_space<vmem>>, vector<128x512xbf16>
    %cst_73 = arith.constant dense<0.000000e+00> : vector<8x512xf32>
    %229 = tpu.matmul %223, %228, %cst_73 {dimension_numbers = #tpu.dot_dimension_numbers<[1], [0], [0], [1], [0, 0, 1, 1], [], []>} : vector<8x128xbf16>, vector<128x512xbf16>, vector<8x512xf32> -> vector<8x512xf32>
    %230 = arith.index_cast %c6_i32 : i32 to index
    %c0_74 = arith.constant 0 : index
    %c0_75 = arith.constant 0 : index
    %231 = vector.load %arg14[%230, %c0_74, %c0_75] : memref<8x8x512xf32, #tpu.memory_space<vmem>>, vector<1x8x512xf32>
    %232 = vector.shape_cast %231 : vector<1x8x512xf32> to vector<8x512xf32>
    %233 = arith.addf %232, %229 : vector<8x512xf32>
    %234 = vector.extract_strided_slice %233 {offsets = [0, 0], sizes = [8, 128], strides = [1, 1]} : vector<8x512xf32> to vector<8x128xf32>
    %235 = arith.negf %234 : vector<8x128xf32>
    %236 = math.exp %235 : vector<8x128xf32>
    %cst_76 = arith.constant 1.000000e+00 : f32
    %237 = vector.broadcast %cst_76 : f32 to vector<8x128xf32>
    %238 = arith.addf %237, %236 : vector<8x128xf32>
    %239 = arith.divf %237, %238 : vector<8x128xf32>
    %240 = vector.extract_strided_slice %233 {offsets = [0, 128], sizes = [8, 128], strides = [1, 1]} : vector<8x512xf32> to vector<8x128xf32>
    %241 = arith.negf %240 : vector<8x128xf32>
    %242 = math.exp %241 : vector<8x128xf32>
    %cst_77 = arith.constant 1.000000e+00 : f32
    %243 = vector.broadcast %cst_77 : f32 to vector<8x128xf32>
    %244 = arith.addf %243, %242 : vector<8x128xf32>
    %245 = arith.divf %243, %244 : vector<8x128xf32>
    %246 = vector.extract_strided_slice %233 {offsets = [0, 256], sizes = [8, 128], strides = [1, 1]} : vector<8x512xf32> to vector<8x128xf32>
    %247 = math.tanh %246 : vector<8x128xf32>
    %248 = vector.extract_strided_slice %233 {offsets = [0, 384], sizes = [8, 128], strides = [1, 1]} : vector<8x512xf32> to vector<8x128xf32>
    %249 = arith.negf %248 : vector<8x128xf32>
    %250 = math.exp %249 : vector<8x128xf32>
    %cst_78 = arith.constant 1.000000e+00 : f32
    %251 = vector.broadcast %cst_78 : f32 to vector<8x128xf32>
    %252 = arith.addf %251, %250 : vector<8x128xf32>
    %253 = arith.divf %251, %252 : vector<8x128xf32>
    %254 = arith.mulf %245, %220 : vector<8x128xf32>
    %255 = arith.mulf %239, %247 : vector<8x128xf32>
    %256 = arith.addf %254, %255 : vector<8x128xf32>
    %257 = math.tanh %256 : vector<8x128xf32>
    %258 = arith.mulf %253, %257 : vector<8x128xf32>
    %259 = arith.truncf %258 : vector<8x128xf32> to vector<8x128xbf16>
    %260 = arith.index_cast %c6_i32 : i32 to index
    %c0_79 = arith.constant 0 : index
    %c0_80 = arith.constant 0 : index
    %261 = vector.load %arg13[%260, %c0_79, %c0_80] : memref<8x8x128xbf16, #tpu.memory_space<vmem>>, vector<1x8x128xbf16>
    %262 = vector.shape_cast %261 : vector<1x8x128xbf16> to vector<8x128xbf16>
    %263 = vector.shape_cast %259 : vector<8x128xbf16> to vector<1x8x128xbf16>
    tpu.vector_store %arg13[%260, %c0_79, %c0_80], %263 {strides = array<i32>} : memref<8x8x128xbf16, #tpu.memory_space<vmem>>, vector<1x8x128xbf16>,
    %c7_i32 = arith.constant 7 : i32
    %c0_81 = arith.constant 0 : index
    %c0_82 = arith.constant 0 : index
    %264 = vector.load %arg3[%c0_81, %c0_82] : memref<128x512xbf16, #tpu.memory_space<vmem>>, vector<128x512xbf16>
    %cst_83 = arith.constant dense<0.000000e+00> : vector<8x512xf32>
    %265 = tpu.matmul %259, %264, %cst_83 {dimension_numbers = #tpu.dot_dimension_numbers<[1], [0], [0], [1], [0, 0, 1, 1], [], []>} : vector<8x128xbf16>, vector<128x512xbf16>, vector<8x512xf32> -> vector<8x512xf32>
    %266 = arith.index_cast %c7_i32 : i32 to index
    %c0_84 = arith.constant 0 : index
    %c0_85 = arith.constant 0 : index
    %267 = vector.load %arg14[%266, %c0_84, %c0_85] : memref<8x8x512xf32, #tpu.memory_space<vmem>>, vector<1x8x512xf32>
    %268 = vector.shape_cast %267 : vector<1x8x512xf32> to vector<8x512xf32>
    %269 = arith.addf %268, %265 : vector<8x512xf32>
    %270 = vector.extract_strided_slice %269 {offsets = [0, 0], sizes = [8, 128], strides = [1, 1]} : vector<8x512xf32> to vector<8x128xf32>
    %271 = arith.negf %270 : vector<8x128xf32>
    %272 = math.exp %271 : vector<8x128xf32>
    %cst_86 = arith.constant 1.000000e+00 : f32
    %273 = vector.broadcast %cst_86 : f32 to vector<8x128xf32>
    %274 = arith.addf %273, %272 : vector<8x128xf32>
    %275 = arith.divf %273, %274 : vector<8x128xf32>
    %276 = vector.extract_strided_slice %269 {offsets = [0, 128], sizes = [8, 128], strides = [1, 1]} : vector<8x512xf32> to vector<8x128xf32>
    %277 = arith.negf %276 : vector<8x128xf32>
    %278 = math.exp %277 : vector<8x128xf32>
    %cst_87 = arith.constant 1.000000e+00 : f32
    %279 = vector.broadcast %cst_87 : f32 to vector<8x128xf32>
    %280 = arith.addf %279, %278 : vector<8x128xf32>
    %281 = arith.divf %279, %280 : vector<8x128xf32>
    %282 = vector.extract_strided_slice %269 {offsets = [0, 256], sizes = [8, 128], strides = [1, 1]} : vector<8x512xf32> to vector<8x128xf32>
    %283 = math.tanh %282 : vector<8x128xf32>
    %284 = vector.extract_strided_slice %269 {offsets = [0, 384], sizes = [8, 128], strides = [1, 1]} : vector<8x512xf32> to vector<8x128xf32>
    %285 = arith.negf %284 : vector<8x128xf32>
    %286 = math.exp %285 : vector<8x128xf32>
    %cst_88 = arith.constant 1.000000e+00 : f32
    %287 = vector.broadcast %cst_88 : f32 to vector<8x128xf32>
    %288 = arith.addf %287, %286 : vector<8x128xf32>
    %289 = arith.divf %287, %288 : vector<8x128xf32>
    %290 = arith.mulf %281, %256 : vector<8x128xf32>
    %291 = arith.mulf %275, %283 : vector<8x128xf32>
    %292 = arith.addf %290, %291 : vector<8x128xf32>
    %293 = math.tanh %292 : vector<8x128xf32>
    %294 = arith.mulf %289, %293 : vector<8x128xf32>
    %295 = arith.truncf %294 : vector<8x128xf32> to vector<8x128xbf16>
    %296 = arith.index_cast %c7_i32 : i32 to index
    %c0_89 = arith.constant 0 : index
    %c0_90 = arith.constant 0 : index
    %297 = vector.load %arg13[%296, %c0_89, %c0_90] : memref<8x8x128xbf16, #tpu.memory_space<vmem>>, vector<1x8x128xbf16>
    %298 = vector.shape_cast %297 : vector<1x8x128xbf16> to vector<8x128xbf16>
    %299 = vector.shape_cast %295 : vector<8x128xbf16> to vector<1x8x128xbf16>
    tpu.vector_store %arg13[%296, %c0_89, %c0_90], %299 {strides = array<i32>} : memref<8x8x128xbf16, #tpu.memory_space<vmem>>, vector<1x8x128xbf16>,
    %c8_i32 = arith.constant 8 : i32
    %c0_91 = arith.constant 0 : index
    %c0_92 = arith.constant 0 : index
    %c0_93 = arith.constant 0 : index
    %300 = vector.load %arg13[%c0_91, %c0_92, %c0_93] : memref<8x8x128xbf16, #tpu.memory_space<vmem>>, vector<8x8x128xbf16>
    %301 = vector.shape_cast %300 : vector<8x8x128xbf16> to vector<64x128xbf16>
    %c0_94 = arith.constant 0 : index
    %c0_95 = arith.constant 0 : index
    %302 = vector.load %arg5[%c0_94, %c0_95] : memref<128x512xbf16, #tpu.memory_space<vmem>>, vector<128x512xbf16>
    %cst_96 = arith.constant dense<0.000000e+00> : vector<64x512xf32>
    %303 = tpu.matmul %301, %302, %cst_96 {dimension_numbers = #tpu.dot_dimension_numbers<[1], [0], [0], [1], [0, 0, 1, 1], [], []>} : vector<64x128xbf16>, vector<128x512xbf16>, vector<64x512xf32> -> vector<64x512xf32>
    %c0_97 = arith.constant 0 : index
    %c0_98 = arith.constant 0 : index
    %304 = vector.load %arg7[%c0_97, %c0_98] : memref<1x512xf32, #tpu.memory_space<vmem>>, vector<1x512xf32>
    %305 = vector.broadcast %304 : vector<1x512xf32> to vector<64x512xf32>
    %306 = arith.addf %303, %305 : vector<64x512xf32>
    %307 = vector.shape_cast %306 : vector<64x512xf32> to vector<8x8x512xf32>
    %c0_99 = arith.constant 0 : index
    %c0_100 = arith.constant 0 : index
    %c0_101 = arith.constant 0 : index
    %308 = vector.load %arg14[%c0_99, %c0_100, %c0_101] : memref<8x8x512xf32, #tpu.memory_space<vmem>>, vector<8x8x512xf32>
    tpu.vector_store %arg14[%c0_99, %c0_100, %c0_101], %307 {strides = array<i32>} : memref<8x8x512xf32, #tpu.memory_space<vmem>>, vector<8x8x512xf32>,
    %cst_102 = arith.constant 0.000000e+00 : bf16
    %309 = vector.broadcast %cst_102 : bf16 to vector<8x128xbf16>
    %cst_103 = arith.constant 0.000000e+00 : f32
    %310 = vector.broadcast %cst_103 : f32 to vector<8x128xf32>
    %c0_i32_104 = arith.constant 0 : i32
    %c0_105 = arith.constant 0 : index
    %c0_106 = arith.constant 0 : index
    %311 = vector.load %arg6[%c0_105, %c0_106] : memref<128x512xbf16, #tpu.memory_space<vmem>>, vector<128x512xbf16>
    %cst_107 = arith.constant dense<0.000000e+00> : vector<8x512xf32>
    %312 = tpu.matmul %309, %311, %cst_107 {dimension_numbers = #tpu.dot_dimension_numbers<[1], [0], [0], [1], [0, 0, 1, 1], [], []>} : vector<8x128xbf16>, vector<128x512xbf16>, vector<8x512xf32> -> vector<8x512xf32>
    %313 = arith.index_cast %c0_i32_104 : i32 to index
    %c0_108 = arith.constant 0 : index
    %c0_109 = arith.constant 0 : index
    %314 = vector.load %arg14[%313, %c0_108, %c0_109] : memref<8x8x512xf32, #tpu.memory_space<vmem>>, vector<1x8x512xf32>
    %315 = vector.shape_cast %314 : vector<1x8x512xf32> to vector<8x512xf32>
    %316 = arith.addf %315, %312 : vector<8x512xf32>
    %317 = vector.extract_strided_slice %316 {offsets = [0, 0], sizes = [8, 128], strides = [1, 1]} : vector<8x512xf32> to vector<8x128xf32>
    %318 = arith.negf %317 : vector<8x128xf32>
    %319 = math.exp %318 : vector<8x128xf32>
    %cst_110 = arith.constant 1.000000e+00 : f32
    %320 = vector.broadcast %cst_110 : f32 to vector<8x128xf32>
    %321 = arith.addf %320, %319 : vector<8x128xf32>
    %322 = arith.divf %320, %321 : vector<8x128xf32>
    %323 = vector.extract_strided_slice %316 {offsets = [0, 128], sizes = [8, 128], strides = [1, 1]} : vector<8x512xf32> to vector<8x128xf32>
    %324 = arith.negf %323 : vector<8x128xf32>
    %325 = math.exp %324 : vector<8x128xf32>
    %cst_111 = arith.constant 1.000000e+00 : f32
    %326 = vector.broadcast %cst_111 : f32 to vector<8x128xf32>
    %327 = arith.addf %326, %325 : vector<8x128xf32>
    %328 = arith.divf %326, %327 : vector<8x128xf32>
    %329 = vector.extract_strided_slice %316 {offsets = [0, 256], sizes = [8, 128], strides = [1, 1]} : vector<8x512xf32> to vector<8x128xf32>
    %330 = math.tanh %329 : vector<8x128xf32>
    %331 = vector.extract_strided_slice %316 {offsets = [0, 384], sizes = [8, 128], strides = [1, 1]} : vector<8x512xf32> to vector<8x128xf32>
    %332 = arith.negf %331 : vector<8x128xf32>
    %333 = math.exp %332 : vector<8x128xf32>
    %cst_112 = arith.constant 1.000000e+00 : f32
    %334 = vector.broadcast %cst_112 : f32 to vector<8x128xf32>
    %335 = arith.addf %334, %333 : vector<8x128xf32>
    %336 = arith.divf %334, %335 : vector<8x128xf32>
    %337 = arith.mulf %328, %310 : vector<8x128xf32>
    %338 = arith.mulf %322, %330 : vector<8x128xf32>
    %339 = arith.addf %337, %338 : vector<8x128xf32>
    %340 = math.tanh %339 : vector<8x128xf32>
    %341 = arith.mulf %336, %340 : vector<8x128xf32>
    %342 = arith.truncf %341 : vector<8x128xf32> to vector<8x128xbf16>
    %c1_i32_113 = arith.constant 1 : i32
    %c0_114 = arith.constant 0 : index
    %c0_115 = arith.constant 0 : index
    %343 = vector.load %arg6[%c0_114, %c0_115] : memref<128x512xbf16, #tpu.memory_space<vmem>>, vector<128x512xbf16>
    %cst_116 = arith.constant dense<0.000000e+00> : vector<8x512xf32>
    %344 = tpu.matmul %342, %343, %cst_116 {dimension_numbers = #tpu.dot_dimension_numbers<[1], [0], [0], [1], [0, 0, 1, 1], [], []>} : vector<8x128xbf16>, vector<128x512xbf16>, vector<8x512xf32> -> vector<8x512xf32>
    %345 = arith.index_cast %c1_i32_113 : i32 to index
    %c0_117 = arith.constant 0 : index
    %c0_118 = arith.constant 0 : index
    %346 = vector.load %arg14[%345, %c0_117, %c0_118] : memref<8x8x512xf32, #tpu.memory_space<vmem>>, vector<1x8x512xf32>
    %347 = vector.shape_cast %346 : vector<1x8x512xf32> to vector<8x512xf32>
    %348 = arith.addf %347, %344 : vector<8x512xf32>
    %349 = vector.extract_strided_slice %348 {offsets = [0, 0], sizes = [8, 128], strides = [1, 1]} : vector<8x512xf32> to vector<8x128xf32>
    %350 = arith.negf %349 : vector<8x128xf32>
    %351 = math.exp %350 : vector<8x128xf32>
    %cst_119 = arith.constant 1.000000e+00 : f32
    %352 = vector.broadcast %cst_119 : f32 to vector<8x128xf32>
    %353 = arith.addf %352, %351 : vector<8x128xf32>
    %354 = arith.divf %352, %353 : vector<8x128xf32>
    %355 = vector.extract_strided_slice %348 {offsets = [0, 128], sizes = [8, 128], strides = [1, 1]} : vector<8x512xf32> to vector<8x128xf32>
    %356 = arith.negf %355 : vector<8x128xf32>
    %357 = math.exp %356 : vector<8x128xf32>
    %cst_120 = arith.constant 1.000000e+00 : f32
    %358 = vector.broadcast %cst_120 : f32 to vector<8x128xf32>
    %359 = arith.addf %358, %357 : vector<8x128xf32>
    %360 = arith.divf %358, %359 : vector<8x128xf32>
    %361 = vector.extract_strided_slice %348 {offsets = [0, 256], sizes = [8, 128], strides = [1, 1]} : vector<8x512xf32> to vector<8x128xf32>
    %362 = math.tanh %361 : vector<8x128xf32>
    %363 = vector.extract_strided_slice %348 {offsets = [0, 384], sizes = [8, 128], strides = [1, 1]} : vector<8x512xf32> to vector<8x128xf32>
    %364 = arith.negf %363 : vector<8x128xf32>
    %365 = math.exp %364 : vector<8x128xf32>
    %cst_121 = arith.constant 1.000000e+00 : f32
    %366 = vector.broadcast %cst_121 : f32 to vector<8x128xf32>
    %367 = arith.addf %366, %365 : vector<8x128xf32>
    %368 = arith.divf %366, %367 : vector<8x128xf32>
    %369 = arith.mulf %360, %339 : vector<8x128xf32>
    %370 = arith.mulf %354, %362 : vector<8x128xf32>
    %371 = arith.addf %369, %370 : vector<8x128xf32>
    %372 = math.tanh %371 : vector<8x128xf32>
    %373 = arith.mulf %368, %372 : vector<8x128xf32>
    %374 = arith.truncf %373 : vector<8x128xf32> to vector<8x128xbf16>
    %c2_i32_122 = arith.constant 2 : i32
    %c0_123 = arith.constant 0 : index
    %c0_124 = arith.constant 0 : index
    %375 = vector.load %arg6[%c0_123, %c0_124] : memref<128x512xbf16, #tpu.memory_space<vmem>>, vector<128x512xbf16>
    %cst_125 = arith.constant dense<0.000000e+00> : vector<8x512xf32>
    %376 = tpu.matmul %374, %375, %cst_125 {dimension_numbers = #tpu.dot_dimension_numbers<[1], [0], [0], [1], [0, 0, 1, 1], [], []>} : vector<8x128xbf16>, vector<128x512xbf16>, vector<8x512xf32> -> vector<8x512xf32>
    %377 = arith.index_cast %c2_i32_122 : i32 to index
    %c0_126 = arith.constant 0 : index
    %c0_127 = arith.constant 0 : index
    %378 = vector.load %arg14[%377, %c0_126, %c0_127] : memref<8x8x512xf32, #tpu.memory_space<vmem>>, vector<1x8x512xf32>
    %379 = vector.shape_cast %378 : vector<1x8x512xf32> to vector<8x512xf32>
    %380 = arith.addf %379, %376 : vector<8x512xf32>
    %381 = vector.extract_strided_slice %380 {offsets = [0, 0], sizes = [8, 128], strides = [1, 1]} : vector<8x512xf32> to vector<8x128xf32>
    %382 = arith.negf %381 : vector<8x128xf32>
    %383 = math.exp %382 : vector<8x128xf32>
    %cst_128 = arith.constant 1.000000e+00 : f32
    %384 = vector.broadcast %cst_128 : f32 to vector<8x128xf32>
    %385 = arith.addf %384, %383 : vector<8x128xf32>
    %386 = arith.divf %384, %385 : vector<8x128xf32>
    %387 = vector.extract_strided_slice %380 {offsets = [0, 128], sizes = [8, 128], strides = [1, 1]} : vector<8x512xf32> to vector<8x128xf32>
    %388 = arith.negf %387 : vector<8x128xf32>
    %389 = math.exp %388 : vector<8x128xf32>
    %cst_129 = arith.constant 1.000000e+00 : f32
    %390 = vector.broadcast %cst_129 : f32 to vector<8x128xf32>
    %391 = arith.addf %390, %389 : vector<8x128xf32>
    %392 = arith.divf %390, %391 : vector<8x128xf32>
    %393 = vector.extract_strided_slice %380 {offsets = [0, 256], sizes = [8, 128], strides = [1, 1]} : vector<8x512xf32> to vector<8x128xf32>
    %394 = math.tanh %393 : vector<8x128xf32>
    %395 = vector.extract_strided_slice %380 {offsets = [0, 384], sizes = [8, 128], strides = [1, 1]} : vector<8x512xf32> to vector<8x128xf32>
    %396 = arith.negf %395 : vector<8x128xf32>
    %397 = math.exp %396 : vector<8x128xf32>
    %cst_130 = arith.constant 1.000000e+00 : f32
    %398 = vector.broadcast %cst_130 : f32 to vector<8x128xf32>
    %399 = arith.addf %398, %397 : vector<8x128xf32>
    %400 = arith.divf %398, %399 : vector<8x128xf32>
    %401 = arith.mulf %392, %371 : vector<8x128xf32>
    %402 = arith.mulf %386, %394 : vector<8x128xf32>
    %403 = arith.addf %401, %402 : vector<8x128xf32>
    %404 = math.tanh %403 : vector<8x128xf32>
    %405 = arith.mulf %400, %404 : vector<8x128xf32>
    %406 = arith.truncf %405 : vector<8x128xf32> to vector<8x128xbf16>
    %c3_i32_131 = arith.constant 3 : i32
    %c0_132 = arith.constant 0 : index
    %c0_133 = arith.constant 0 : index
    %407 = vector.load %arg6[%c0_132, %c0_133] : memref<128x512xbf16, #tpu.memory_space<vmem>>, vector<128x512xbf16>
    %cst_134 = arith.constant dense<0.000000e+00> : vector<8x512xf32>
    %408 = tpu.matmul %406, %407, %cst_134 {dimension_numbers = #tpu.dot_dimension_numbers<[1], [0], [0], [1], [0, 0, 1, 1], [], []>} : vector<8x128xbf16>, vector<128x512xbf16>, vector<8x512xf32> -> vector<8x512xf32>
    %409 = arith.index_cast %c3_i32_131 : i32 to index
    %c0_135 = arith.constant 0 : index
    %c0_136 = arith.constant 0 : index
    %410 = vector.load %arg14[%409, %c0_135, %c0_136] : memref<8x8x512xf32, #tpu.memory_space<vmem>>, vector<1x8x512xf32>
    %411 = vector.shape_cast %410 : vector<1x8x512xf32> to vector<8x512xf32>
    %412 = arith.addf %411, %408 : vector<8x512xf32>
    %413 = vector.extract_strided_slice %412 {offsets = [0, 0], sizes = [8, 128], strides = [1, 1]} : vector<8x512xf32> to vector<8x128xf32>
    %414 = arith.negf %413 : vector<8x128xf32>
    %415 = math.exp %414 : vector<8x128xf32>
    %cst_137 = arith.constant 1.000000e+00 : f32
    %416 = vector.broadcast %cst_137 : f32 to vector<8x128xf32>
    %417 = arith.addf %416, %415 : vector<8x128xf32>
    %418 = arith.divf %416, %417 : vector<8x128xf32>
    %419 = vector.extract_strided_slice %412 {offsets = [0, 128], sizes = [8, 128], strides = [1, 1]} : vector<8x512xf32> to vector<8x128xf32>
    %420 = arith.negf %419 : vector<8x128xf32>
    %421 = math.exp %420 : vector<8x128xf32>
    %cst_138 = arith.constant 1.000000e+00 : f32
    %422 = vector.broadcast %cst_138 : f32 to vector<8x128xf32>
    %423 = arith.addf %422, %421 : vector<8x128xf32>
    %424 = arith.divf %422, %423 : vector<8x128xf32>
    %425 = vector.extract_strided_slice %412 {offsets = [0, 256], sizes = [8, 128], strides = [1, 1]} : vector<8x512xf32> to vector<8x128xf32>
    %426 = math.tanh %425 : vector<8x128xf32>
    %427 = vector.extract_strided_slice %412 {offsets = [0, 384], sizes = [8, 128], strides = [1, 1]} : vector<8x512xf32> to vector<8x128xf32>
    %428 = arith.negf %427 : vector<8x128xf32>
    %429 = math.exp %428 : vector<8x128xf32>
    %cst_139 = arith.constant 1.000000e+00 : f32
    %430 = vector.broadcast %cst_139 : f32 to vector<8x128xf32>
    %431 = arith.addf %430, %429 : vector<8x128xf32>
    %432 = arith.divf %430, %431 : vector<8x128xf32>
    %433 = arith.mulf %424, %403 : vector<8x128xf32>
    %434 = arith.mulf %418, %426 : vector<8x128xf32>
    %435 = arith.addf %433, %434 : vector<8x128xf32>
    %436 = math.tanh %435 : vector<8x128xf32>
    %437 = arith.mulf %432, %436 : vector<8x128xf32>
    %438 = arith.truncf %437 : vector<8x128xf32> to vector<8x128xbf16>
    %c4_i32_140 = arith.constant 4 : i32
    %c0_141 = arith.constant 0 : index
    %c0_142 = arith.constant 0 : index
    %439 = vector.load %arg6[%c0_141, %c0_142] : memref<128x512xbf16, #tpu.memory_space<vmem>>, vector<128x512xbf16>
    %cst_143 = arith.constant dense<0.000000e+00> : vector<8x512xf32>
    %440 = tpu.matmul %438, %439, %cst_143 {dimension_numbers = #tpu.dot_dimension_numbers<[1], [0], [0], [1], [0, 0, 1, 1], [], []>} : vector<8x128xbf16>, vector<128x512xbf16>, vector<8x512xf32> -> vector<8x512xf32>
    %441 = arith.index_cast %c4_i32_140 : i32 to index
    %c0_144 = arith.constant 0 : index
    %c0_145 = arith.constant 0 : index
    %442 = vector.load %arg14[%441, %c0_144, %c0_145] : memref<8x8x512xf32, #tpu.memory_space<vmem>>, vector<1x8x512xf32>
    %443 = vector.shape_cast %442 : vector<1x8x512xf32> to vector<8x512xf32>
    %444 = arith.addf %443, %440 : vector<8x512xf32>
    %445 = vector.extract_strided_slice %444 {offsets = [0, 0], sizes = [8, 128], strides = [1, 1]} : vector<8x512xf32> to vector<8x128xf32>
    %446 = arith.negf %445 : vector<8x128xf32>
    %447 = math.exp %446 : vector<8x128xf32>
    %cst_146 = arith.constant 1.000000e+00 : f32
    %448 = vector.broadcast %cst_146 : f32 to vector<8x128xf32>
    %449 = arith.addf %448, %447 : vector<8x128xf32>
    %450 = arith.divf %448, %449 : vector<8x128xf32>
    %451 = vector.extract_strided_slice %444 {offsets = [0, 128], sizes = [8, 128], strides = [1, 1]} : vector<8x512xf32> to vector<8x128xf32>
    %452 = arith.negf %451 : vector<8x128xf32>
    %453 = math.exp %452 : vector<8x128xf32>
    %cst_147 = arith.constant 1.000000e+00 : f32
    %454 = vector.broadcast %cst_147 : f32 to vector<8x128xf32>
    %455 = arith.addf %454, %453 : vector<8x128xf32>
    %456 = arith.divf %454, %455 : vector<8x128xf32>
    %457 = vector.extract_strided_slice %444 {offsets = [0, 256], sizes = [8, 128], strides = [1, 1]} : vector<8x512xf32> to vector<8x128xf32>
    %458 = math.tanh %457 : vector<8x128xf32>
    %459 = vector.extract_strided_slice %444 {offsets = [0, 384], sizes = [8, 128], strides = [1, 1]} : vector<8x512xf32> to vector<8x128xf32>
    %460 = arith.negf %459 : vector<8x128xf32>
    %461 = math.exp %460 : vector<8x128xf32>
    %cst_148 = arith.constant 1.000000e+00 : f32
    %462 = vector.broadcast %cst_148 : f32 to vector<8x128xf32>
    %463 = arith.addf %462, %461 : vector<8x128xf32>
    %464 = arith.divf %462, %463 : vector<8x128xf32>
    %465 = arith.mulf %456, %435 : vector<8x128xf32>
    %466 = arith.mulf %450, %458 : vector<8x128xf32>
    %467 = arith.addf %465, %466 : vector<8x128xf32>
    %468 = math.tanh %467 : vector<8x128xf32>
    %469 = arith.mulf %464, %468 : vector<8x128xf32>
    %470 = arith.truncf %469 : vector<8x128xf32> to vector<8x128xbf16>
    %c5_i32_149 = arith.constant 5 : i32
    %c0_150 = arith.constant 0 : index
    %c0_151 = arith.constant 0 : index
    %471 = vector.load %arg6[%c0_150, %c0_151] : memref<128x512xbf16, #tpu.memory_space<vmem>>, vector<128x512xbf16>
    %cst_152 = arith.constant dense<0.000000e+00> : vector<8x512xf32>
    %472 = tpu.matmul %470, %471, %cst_152 {dimension_numbers = #tpu.dot_dimension_numbers<[1], [0], [0], [1], [0, 0, 1, 1], [], []>} : vector<8x128xbf16>, vector<128x512xbf16>, vector<8x512xf32> -> vector<8x512xf32>
    %473 = arith.index_cast %c5_i32_149 : i32 to index
    %c0_153 = arith.constant 0 : index
    %c0_154 = arith.constant 0 : index
    %474 = vector.load %arg14[%473, %c0_153, %c0_154] : memref<8x8x512xf32, #tpu.memory_space<vmem>>, vector<1x8x512xf32>
    %475 = vector.shape_cast %474 : vector<1x8x512xf32> to vector<8x512xf32>
    %476 = arith.addf %475, %472 : vector<8x512xf32>
    %477 = vector.extract_strided_slice %476 {offsets = [0, 0], sizes = [8, 128], strides = [1, 1]} : vector<8x512xf32> to vector<8x128xf32>
    %478 = arith.negf %477 : vector<8x128xf32>
    %479 = math.exp %478 : vector<8x128xf32>
    %cst_155 = arith.constant 1.000000e+00 : f32
    %480 = vector.broadcast %cst_155 : f32 to vector<8x128xf32>
    %481 = arith.addf %480, %479 : vector<8x128xf32>
    %482 = arith.divf %480, %481 : vector<8x128xf32>
    %483 = vector.extract_strided_slice %476 {offsets = [0, 128], sizes = [8, 128], strides = [1, 1]} : vector<8x512xf32> to vector<8x128xf32>
    %484 = arith.negf %483 : vector<8x128xf32>
    %485 = math.exp %484 : vector<8x128xf32>
    %cst_156 = arith.constant 1.000000e+00 : f32
    %486 = vector.broadcast %cst_156 : f32 to vector<8x128xf32>
    %487 = arith.addf %486, %485 : vector<8x128xf32>
    %488 = arith.divf %486, %487 : vector<8x128xf32>
    %489 = vector.extract_strided_slice %476 {offsets = [0, 256], sizes = [8, 128], strides = [1, 1]} : vector<8x512xf32> to vector<8x128xf32>
    %490 = math.tanh %489 : vector<8x128xf32>
    %491 = vector.extract_strided_slice %476 {offsets = [0, 384], sizes = [8, 128], strides = [1, 1]} : vector<8x512xf32> to vector<8x128xf32>
    %492 = arith.negf %491 : vector<8x128xf32>
    %493 = math.exp %492 : vector<8x128xf32>
    %cst_157 = arith.constant 1.000000e+00 : f32
    %494 = vector.broadcast %cst_157 : f32 to vector<8x128xf32>
    %495 = arith.addf %494, %493 : vector<8x128xf32>
    %496 = arith.divf %494, %495 : vector<8x128xf32>
    %497 = arith.mulf %488, %467 : vector<8x128xf32>
    %498 = arith.mulf %482, %490 : vector<8x128xf32>
    %499 = arith.addf %497, %498 : vector<8x128xf32>
    %500 = math.tanh %499 : vector<8x128xf32>
    %501 = arith.mulf %496, %500 : vector<8x128xf32>
    %502 = arith.truncf %501 : vector<8x128xf32> to vector<8x128xbf16>
    %c6_i32_158 = arith.constant 6 : i32
    %c0_159 = arith.constant 0 : index
    %c0_160 = arith.constant 0 : index
    %503 = vector.load %arg6[%c0_159, %c0_160] : memref<128x512xbf16, #tpu.memory_space<vmem>>, vector<128x512xbf16>
    %cst_161 = arith.constant dense<0.000000e+00> : vector<8x512xf32>
    %504 = tpu.matmul %502, %503, %cst_161 {dimension_numbers = #tpu.dot_dimension_numbers<[1], [0], [0], [1], [0, 0, 1, 1], [], []>} : vector<8x128xbf16>, vector<128x512xbf16>, vector<8x512xf32> -> vector<8x512xf32>
    %505 = arith.index_cast %c6_i32_158 : i32 to index
    %c0_162 = arith.constant 0 : index
    %c0_163 = arith.constant 0 : index
    %506 = vector.load %arg14[%505, %c0_162, %c0_163] : memref<8x8x512xf32, #tpu.memory_space<vmem>>, vector<1x8x512xf32>
    %507 = vector.shape_cast %506 : vector<1x8x512xf32> to vector<8x512xf32>
    %508 = arith.addf %507, %504 : vector<8x512xf32>
    %509 = vector.extract_strided_slice %508 {offsets = [0, 0], sizes = [8, 128], strides = [1, 1]} : vector<8x512xf32> to vector<8x128xf32>
    %510 = arith.negf %509 : vector<8x128xf32>
    %511 = math.exp %510 : vector<8x128xf32>
    %cst_164 = arith.constant 1.000000e+00 : f32
    %512 = vector.broadcast %cst_164 : f32 to vector<8x128xf32>
    %513 = arith.addf %512, %511 : vector<8x128xf32>
    %514 = arith.divf %512, %513 : vector<8x128xf32>
    %515 = vector.extract_strided_slice %508 {offsets = [0, 128], sizes = [8, 128], strides = [1, 1]} : vector<8x512xf32> to vector<8x128xf32>
    %516 = arith.negf %515 : vector<8x128xf32>
    %517 = math.exp %516 : vector<8x128xf32>
    %cst_165 = arith.constant 1.000000e+00 : f32
    %518 = vector.broadcast %cst_165 : f32 to vector<8x128xf32>
    %519 = arith.addf %518, %517 : vector<8x128xf32>
    %520 = arith.divf %518, %519 : vector<8x128xf32>
    %521 = vector.extract_strided_slice %508 {offsets = [0, 256], sizes = [8, 128], strides = [1, 1]} : vector<8x512xf32> to vector<8x128xf32>
    %522 = math.tanh %521 : vector<8x128xf32>
    %523 = vector.extract_strided_slice %508 {offsets = [0, 384], sizes = [8, 128], strides = [1, 1]} : vector<8x512xf32> to vector<8x128xf32>
    %524 = arith.negf %523 : vector<8x128xf32>
    %525 = math.exp %524 : vector<8x128xf32>
    %cst_166 = arith.constant 1.000000e+00 : f32
    %526 = vector.broadcast %cst_166 : f32 to vector<8x128xf32>
    %527 = arith.addf %526, %525 : vector<8x128xf32>
    %528 = arith.divf %526, %527 : vector<8x128xf32>
    %529 = arith.mulf %520, %499 : vector<8x128xf32>
    %530 = arith.mulf %514, %522 : vector<8x128xf32>
    %531 = arith.addf %529, %530 : vector<8x128xf32>
    %532 = math.tanh %531 : vector<8x128xf32>
    %533 = arith.mulf %528, %532 : vector<8x128xf32>
    %534 = arith.truncf %533 : vector<8x128xf32> to vector<8x128xbf16>
    %c7_i32_167 = arith.constant 7 : i32
    %c0_168 = arith.constant 0 : index
    %c0_169 = arith.constant 0 : index
    %535 = vector.load %arg6[%c0_168, %c0_169] : memref<128x512xbf16, #tpu.memory_space<vmem>>, vector<128x512xbf16>
    %cst_170 = arith.constant dense<0.000000e+00> : vector<8x512xf32>
    %536 = tpu.matmul %534, %535, %cst_170 {dimension_numbers = #tpu.dot_dimension_numbers<[1], [0], [0], [1], [0, 0, 1, 1], [], []>} : vector<8x128xbf16>, vector<128x512xbf16>, vector<8x512xf32> -> vector<8x512xf32>
    %537 = arith.index_cast %c7_i32_167 : i32 to index
    %c0_171 = arith.constant 0 : index
    %c0_172 = arith.constant 0 : index
    %538 = vector.load %arg14[%537, %c0_171, %c0_172] : memref<8x8x512xf32, #tpu.memory_space<vmem>>, vector<1x8x512xf32>
    %539 = vector.shape_cast %538 : vector<1x8x512xf32> to vector<8x512xf32>
    %540 = arith.addf %539, %536 : vector<8x512xf32>
    %541 = vector.extract_strided_slice %540 {offsets = [0, 0], sizes = [8, 128], strides = [1, 1]} : vector<8x512xf32> to vector<8x128xf32>
    %542 = arith.negf %541 : vector<8x128xf32>
    %543 = math.exp %542 : vector<8x128xf32>
    %cst_173 = arith.constant 1.000000e+00 : f32
    %544 = vector.broadcast %cst_173 : f32 to vector<8x128xf32>
    %545 = arith.addf %544, %543 : vector<8x128xf32>
    %546 = arith.divf %544, %545 : vector<8x128xf32>
    %547 = vector.extract_strided_slice %540 {offsets = [0, 128], sizes = [8, 128], strides = [1, 1]} : vector<8x512xf32> to vector<8x128xf32>
    %548 = arith.negf %547 : vector<8x128xf32>
    %549 = math.exp %548 : vector<8x128xf32>
    %cst_174 = arith.constant 1.000000e+00 : f32
    %550 = vector.broadcast %cst_174 : f32 to vector<8x128xf32>
    %551 = arith.addf %550, %549 : vector<8x128xf32>
    %552 = arith.divf %550, %551 : vector<8x128xf32>
    %553 = vector.extract_strided_slice %540 {offsets = [0, 256], sizes = [8, 128], strides = [1, 1]} : vector<8x512xf32> to vector<8x128xf32>
    %554 = math.tanh %553 : vector<8x128xf32>
    %555 = vector.extract_strided_slice %540 {offsets = [0, 384], sizes = [8, 128], strides = [1, 1]} : vector<8x512xf32> to vector<8x128xf32>
    %556 = arith.negf %555 : vector<8x128xf32>
    %557 = math.exp %556 : vector<8x128xf32>
    %cst_175 = arith.constant 1.000000e+00 : f32
    %558 = vector.broadcast %cst_175 : f32 to vector<8x128xf32>
    %559 = arith.addf %558, %557 : vector<8x128xf32>
    %560 = arith.divf %558, %559 : vector<8x128xf32>
    %561 = arith.mulf %552, %531 : vector<8x128xf32>
    %562 = arith.mulf %546, %554 : vector<8x128xf32>
    %563 = arith.addf %561, %562 : vector<8x128xf32>
    %564 = math.tanh %563 : vector<8x128xf32>
    %565 = arith.mulf %560, %564 : vector<8x128xf32>
    %566 = arith.truncf %565 : vector<8x128xf32> to vector<8x128xbf16>
    %c8_i32_176 = arith.constant 8 : i32
    %c0_177 = arith.constant 0 : index
    %c0_178 = arith.constant 0 : index
    %567 = vector.load %arg8[%c0_177, %c0_178] : memref<128x128xbf16, #tpu.memory_space<vmem>>, vector<128x128xbf16>
    %cst_179 = arith.constant dense<0.000000e+00> : vector<8x128xf32>
    %568 = tpu.matmul %566, %567, %cst_179 {dimension_numbers = #tpu.dot_dimension_numbers<[1], [0], [0], [1], [0, 0, 1, 1], [], []>} : vector<8x128xbf16>, vector<128x128xbf16>, vector<8x128xf32> -> vector<8x128xf32>
    %c0_180 = arith.constant 0 : index
    %c0_181 = arith.constant 0 : index
    %569 = vector.load %arg9[%c0_180, %c0_181] : memref<1x128xf32, #tpu.memory_space<vmem>>, vector<1x128xf32>
    %570 = vector.broadcast %569 : vector<1x128xf32> to vector<8x128xf32>
    %571 = arith.addf %568, %570 : vector<8x128xf32>
    %cst_182 = arith.constant 0.000000e+00 : f32
    %572 = vector.broadcast %cst_182 : f32 to vector<8x128xf32>
    %573 = arith.maximumf %571, %572 : vector<8x128xf32>
    %574 = arith.truncf %573 : vector<8x128xf32> to vector<8x128xbf16>
    %c0_183 = arith.constant 0 : index
    %c0_184 = arith.constant 0 : index
    %575 = vector.load %arg10[%c0_183, %c0_184] : memref<128x128xbf16, #tpu.memory_space<vmem>>, vector<128x128xbf16>
    %cst_185 = arith.constant dense<0.000000e+00> : vector<8x128xf32>
    %576 = tpu.matmul %574, %575, %cst_185 {dimension_numbers = #tpu.dot_dimension_numbers<[1], [0], [0], [1], [0, 0, 1, 1], [], []>} : vector<8x128xbf16>, vector<128x128xbf16>, vector<8x128xf32> -> vector<8x128xf32>
    %c0_186 = arith.constant 0 : index
    %c0_187 = arith.constant 0 : index
    %577 = vector.load %arg11[%c0_186, %c0_187] : memref<1x128xf32, #tpu.memory_space<vmem>>, vector<1x128xf32>
    %578 = vector.broadcast %577 : vector<1x128xf32> to vector<8x128xf32>
    %579 = arith.addf %576, %578 : vector<8x128xf32>
    %c0_188 = arith.constant 0 : index
    %c0_189 = arith.constant 0 : index
    %580 = vector.load %arg12[%c0_188, %c0_189] : memref<8x128xf32, #tpu.memory_space<vmem>>, vector<8x128xf32>
    tpu.vector_store %arg12[%c0_188, %c0_189], %579 {strides = array<i32>} : memref<8x128xf32, #tpu.memory_space<vmem>>, vector<8x128xf32>,
    return
  }
  func.func @transform_0(%arg0: i32) -> (i32, i32, i32) {
    %c0_i32 = arith.constant 0 : i32
    %c0_i32_0 = arith.constant 0 : i32
    %c0_i32_1 = arith.constant 0 : i32
    return %c0_i32, %arg0, %c0_i32_0 : i32, i32, i32
  }
  func.func @transform_1(%arg0: i32) -> (i32, i32) {
    %c0_i32 = arith.constant 0 : i32
    %c0_i32_0 = arith.constant 0 : i32
    %c0_i32_1 = arith.constant 0 : i32
    return %c0_i32, %c0_i32_0 : i32, i32
  }
  func.func @transform_2(%arg0: i32) -> (i32, i32) {
    %c0_i32 = arith.constant 0 : i32
    %c0_i32_0 = arith.constant 0 : i32
    %c0_i32_1 = arith.constant 0 : i32
    return %c0_i32, %c0_i32_0 : i32, i32
  }
  func.func @transform_3(%arg0: i32) -> (i32, i32) {
    %c0_i32 = arith.constant 0 : i32
    %c0_i32_0 = arith.constant 0 : i32
    %c0_i32_1 = arith.constant 0 : i32
    return %c0_i32, %c0_i32_0 : i32, i32
  }
  func.func @transform_4(%arg0: i32) -> (i32, i32) {
    %c0_i32 = arith.constant 0 : i32
    %c0_i32_0 = arith.constant 0 : i32
    %c0_i32_1 = arith.constant 0 : i32
    return %c0_i32, %c0_i32_0 : i32, i32
  }
  func.func @transform_5(%arg0: i32) -> (i32, i32) {
    %c0_i32 = arith.constant 0 : i32
    %c0_i32_0 = arith.constant 0 : i32
    %c0_i32_1 = arith.constant 0 : i32
    return %c0_i32, %c0_i32_0 : i32, i32
  }
  func.func @transform_6(%arg0: i32) -> (i32, i32) {
    %c0_i32 = arith.constant 0 : i32
    %c0_i32_0 = arith.constant 0 : i32
    %c0_i32_1 = arith.constant 0 : i32
    return %c0_i32, %c0_i32_0 : i32, i32
  }
  func.func @transform_7(%arg0: i32) -> (i32, i32) {
    %c0_i32 = arith.constant 0 : i32
    %c0_i32_0 = arith.constant 0 : i32
    %c0_i32_1 = arith.constant 0 : i32
    return %c0_i32, %c0_i32_0 : i32, i32
  }
  func.func @transform_8(%arg0: i32) -> (i32, i32) {
    %c0_i32 = arith.constant 0 : i32
    %c0_i32_0 = arith.constant 0 : i32
    %c0_i32_1 = arith.constant 0 : i32
    return %c0_i32, %c0_i32_0 : i32, i32
  }
  func.func @transform_9(%arg0: i32) -> (i32, i32) {
    %c0_i32 = arith.constant 0 : i32
    %c0_i32_0 = arith.constant 0 : i32
    %c0_i32_1 = arith.constant 0 : i32
    return %c0_i32, %c0_i32_0 : i32, i32
  }
  func.func @transform_10(%arg0: i32) -> (i32, i32) {
    %c0_i32 = arith.constant 0 : i32
    %c0_i32_0 = arith.constant 0 : i32
    %c0_i32_1 = arith.constant 0 : i32
    return %c0_i32, %c0_i32_0 : i32, i32
  }
  func.func @transform_11(%arg0: i32) -> (i32, i32) {
    %c0_i32 = arith.constant 0 : i32
    %c0_i32_0 = arith.constant 0 : i32
    return %arg0, %c0_i32 : i32, i32
  }
}

</mosaic_0001>

<llo_original>
// kernel: tpu_custom_call.1
$region0: #{tpu_custom_call.1}
  #allocation0 [shape = 'u32[]', space=smem, size = 0x4, offset = 0x4, fixed_abs, tag = 'smem constant byte address 0x4 - core index']
  #allocation1 [shape = 'u32[144,128]{1,0:T(1,128)}', space=vmem, size = 0x12000, scoped, tag = 'internal scratch']
  #allocation2 [shape = 'bf16[8,8,128]{2,1,0:T(8,128)(2,1)}', space=vmem, size = 0x4000, scoped, tag = 'scratch operand']
  #allocation3 [shape = 'f32[8,8,512]{2,1,0:T(8,128)}', space=vmem, size = 0x20000, scoped, tag = 'scratch operand']
  %s0 = inlined_call_operand.hbm [shape: f32[8,8,128], index: 0, kind: input, shape index: {}]
  %s1 = inlined_call_operand.hbm [shape: bf16[128,512], index: 1, kind: input, shape index: {}]
  %s2 = inlined_call_operand.hbm [shape: bf16[128,512], index: 2, kind: input, shape index: {}]
  %s3 = inlined_call_operand.vmem [shape: f32[1,512], index: 3, kind: input, shape index: {}]
  %s4 = inlined_call_operand.hbm [shape: bf16[128,512], index: 4, kind: input, shape index: {}]
  %s5 = inlined_call_operand.hbm [shape: bf16[128,512], index: 5, kind: input, shape index: {}]
  %s6 = inlined_call_operand.vmem [shape: f32[1,512], index: 6, kind: input, shape index: {}]
  %s7 = inlined_call_operand.hbm [shape: bf16[128,128], index: 7, kind: input, shape index: {}]
  %s8 = inlined_call_operand.vmem [shape: f32[1,128], index: 8, kind: input, shape index: {}]
  %s9 = inlined_call_operand.hbm [shape: bf16[128,128], index: 9, kind: input, shape index: {}]
  %s10 = inlined_call_operand.vmem [shape: f32[1,128], index: 10, kind: input, shape index: {}]
  %s11 = inlined_call_operand.hbm [shape: f32[8,128], index: 11, kind: output, shape index: {}]
  %s12 = sld [smem:[#allocation0]]
  $region82: #{tpu_custom_call.1} parent=0
    _
  %s14 = ssub.s32 1, %s12
  %s15 = scalar_select 0, %s14, %s12
  $region1: #{tpu_custom_call.1} parent=0
    #allocation4 [shape = 'u8[32768]{0}', space=vmem, size = 0x8000, scoped, tag = 'input window, operand 0, single buffered']
    #allocation5 [shape = 's32[1]{0}', space=sflag, size = 0x4, scoped, tag = 'scoped memory for tpu_custom_call.1']
    #allocation6 [shape = 's32[1]{0}', space=sflag, size = 0x4, scoped, tag = 'scoped memory for tpu_custom_call.1']
    #allocation7 [shape = 'u8[131072]{0}', space=vmem, size = 0x20000, scoped, tag = 'input window, operand 1, single buffered']
    #allocation8 [shape = 's32[1]{0}', space=sflag, size = 0x4, scoped, tag = 'scoped memory for tpu_custom_call.1']
    #allocation9 [shape = 'u8[131072]{0}', space=vmem, size = 0x20000, scoped, tag = 'input window, operand 2, single buffered']
    #allocation10 [shape = 'u8[131072]{0}', space=vmem, size = 0x20000, scoped, tag = 'input window, operand 4, single buffered']
    #allocation11 [shape = 's32[1]{0}', space=sflag, size = 0x4, scoped, tag = 'scoped memory for tpu_custom_call.1']
    #allocation12 [shape = 'u8[131072]{0}', space=vmem, size = 0x20000, scoped, tag = 'input window, operand 5, single buffered']
    #allocation13 [shape = 'u8[32768]{0}', space=vmem, size = 0x8000, scoped, tag = 'input window, operand 7, single buffered']
    #allocation14 [shape = 's32[1]{0}', space=sflag, size = 0x4, scoped, tag = 'scoped memory for tpu_custom_call.1']
    #allocation15 [shape = 'u8[32768]{0}', space=vmem, size = 0x8000, scoped, tag = 'input window, operand 9, single buffered']
    #allocation16 [shape = 'u8[4096]{0}', space=vmem, size = 0x1000, scoped, tag = 'output window, operand 0, single buffered']
    %16 = vsyncpa [#allocation5], 0
    %17 = vsyncpa [#allocation8], 0
    %18 = vsyncpa [#allocation11], 0
    %19 = vsyncpa [#allocation14], 0
    %20 = vsyncpa [#allocation6], 0
    // Predicated region
    $region2: #{tpu_custom_call.1} parent=1 // pred_check
      _
    $region3: #{tpu_custom_call.1} parent=1 // pred_check_branch
      %22 = sbr.rel (0) target = $region5
    $region4: #{tpu_custom_call.1} parent=1 // pred_region
      %s24 = ssub.s32 1024, 1024
      %25 = vsyncadd [#allocation5], %s24
      %s26 = sshll.u32 [#allocation4], 4
      %s27 = int_to_ptr.vmem [resolvable:$true] %s26
      %32 = dma.hbm_to_vmem [thread:$0]  %s0, 1024, %s27, [#allocation5], 128, 128, 8
    $region5: #{tpu_custom_call.1} parent=1 // pred_fallthru
      _
    // Predicated region
    $region6: #{tpu_custom_call.1} parent=1 // pred_check
      _
    $region7: #{tpu_custom_call.1} parent=1 // pred_check_branch
      %34 = sbr.rel (0) target = $region9
    $region8: #{tpu_custom_call.1} parent=1 // pred_region
      %s36 = ssub.s32 4096, 4096
      %37 = vsyncadd [#allocation8], %s36
      %s38 = sshll.u32 [#allocation7], 4
      %s39 = int_to_ptr.vmem [resolvable:$true] %s38
      %44 = dma.hbm_to_vmem [thread:$0]  %s1, 4096, %s39, [#allocation8], 256, 256, 16
    $region9: #{tpu_custom_call.1} parent=1 // pred_fallthru
      _
    // Predicated region
    $region10: #{tpu_custom_call.1} parent=1 // pred_check
      _
    $region11: #{tpu_custom_call.1} parent=1 // pred_check_branch
      %46 = sbr.rel (0) target = $region13
    $region12: #{tpu_custom_call.1} parent=1 // pred_region
      %s48 = ssub.s32 4096, 4096
      %49 = vsyncadd [#allocation8], %s48
      %s50 = sshll.u32 [#allocation9], 4
      %s51 = int_to_ptr.vmem [resolvable:$true] %s50
      %56 = dma.hbm_to_vmem [thread:$0]  %s2, 4096, %s51, [#allocation8], 256, 256, 16
    $region13: #{tpu_custom_call.1} parent=1 // pred_fallthru
      _
    // Predicated region
    $region14: #{tpu_custom_call.1} parent=1 // pred_check
      _
    $region15: #{tpu_custom_call.1} parent=1 // pred_check_branch
      %58 = sbr.rel (0) target = $region17
    $region16: #{tpu_custom_call.1} parent=1 // pred_region
      _
    $region17: #{tpu_custom_call.1} parent=1 // pred_fallthru
      _
    // Predicated region
    $region18: #{tpu_custom_call.1} parent=1 // pred_check
      _
    $region19: #{tpu_custom_call.1} parent=1 // pred_check_branch
      %60 = sbr.rel (0) target = $region21
    $region20: #{tpu_custom_call.1} parent=1 // pred_region
      %s62 = ssub.s32 4096, 4096
      %63 = vsyncadd [#allocation11], %s62
      %s64 = sshll.u32 [#allocation10], 4
      %s65 = int_to_ptr.vmem [resolvable:$true] %s64
      %70 = dma.hbm_to_vmem [thread:$0]  %s4, 4096, %s65, [#allocation11], 256, 256, 16
    $region21: #{tpu_custom_call.1} parent=1 // pred_fallthru
      _
    // Predicated region
    $region22: #{tpu_custom_call.1} parent=1 // pred_check
      _
    $region23: #{tpu_custom_call.1} parent=1 // pred_check_branch
      %72 = sbr.rel (0) target = $region25
    $region24: #{tpu_custom_call.1} parent=1 // pred_region
      %s74 = ssub.s32 4096, 4096
      %75 = vsyncadd [#allocation11], %s74
      %s76 = sshll.u32 [#allocation12], 4
      %s77 = int_to_ptr.vmem [resolvable:$true] %s76
      %82 = dma.hbm_to_vmem [thread:$0]  %s5, 4096, %s77, [#allocation11], 256, 256, 16
    $region25: #{tpu_custom_call.1} parent=1 // pred_fallthru
      _
    // Predicated region
    $region26: #{tpu_custom_call.1} parent=1 // pred_check
      _
    $region27: #{tpu_custom_call.1} parent=1 // pred_check_branch
      %84 = sbr.rel (0) target = $region29
    $region28: #{tpu_custom_call.1} parent=1 // pred_region
      _
    $region29: #{tpu_custom_call.1} parent=1 // pred_fallthru
      _
    // Predicated region
    $region30: #{tpu_custom_call.1} parent=1 // pred_check
      _
    $region31: #{tpu_custom_call.1} parent=1 // pred_check_branch
      %86 = sbr.rel (0) target = $region33
    $region32: #{tpu_custom_call.1} parent=1 // pred_region
      %s88 = ssub.s32 1024, 1024
      %89 = vsyncadd [#allocation14], %s88
      %s90 = sshll.u32 [#allocation13], 4
      %s91 = int_to_ptr.vmem [resolvable:$true] %s90
      %96 = dma.hbm_to_vmem [thread:$0]  %s7, 1024, %s91, [#allocation14], 64, 64, 4
    $region33: #{tpu_custom_call.1} parent=1 // pred_fallthru
      _
    // Predicated region
    $region34: #{tpu_custom_call.1} parent=1 // pred_check
      _
    $region35: #{tpu_custom_call.1} parent=1 // pred_check_branch
      %98 = sbr.rel (0) target = $region37
    $region36: #{tpu_custom_call.1} parent=1 // pred_region
      _
    $region37: #{tpu_custom_call.1} parent=1 // pred_fallthru
      _
    // Predicated region
    $region38: #{tpu_custom_call.1} parent=1 // pred_check
      _
    $region39: #{tpu_custom_call.1} parent=1 // pred_check_branch
      %100 = sbr.rel (0) target = $region41
    $region40: #{tpu_custom_call.1} parent=1 // pred_region
      %s102 = ssub.s32 1024, 1024
      %103 = vsyncadd [#allocation14], %s102
      %s104 = sshll.u32 [#allocation15], 4
      %s105 = int_to_ptr.vmem [resolvable:$true] %s104
      %110 = dma.hbm_to_vmem [thread:$0]  %s9, 1024, %s105, [#allocation14], 64, 64, 4
    $region41: #{tpu_custom_call.1} parent=1 // pred_fallthru
      _
    // Predicated region
    $region42: #{tpu_custom_call.1} parent=1 // pred_check
      _
    $region43: #{tpu_custom_call.1} parent=1 // pred_check_branch
      %112 = sbr.rel (0) target = $region45
    $region44: #{tpu_custom_call.1} parent=1 // pred_region
      _
    $region45: #{tpu_custom_call.1} parent=1 // pred_fallthru
      _
    // Predicated region
    $region46: #{tpu_custom_call.1} parent=1 // pred_check
      _
    $region47: #{tpu_custom_call.1} parent=1 // pred_check_branch
      %114 = sbr.rel (0) target = $region49
    $region48: #{tpu_custom_call.1} parent=1 // pred_region
      %115 = dma.done [#allocation5], 1024
    $region49: #{tpu_custom_call.1} parent=1 // pred_fallthru
      _
    // Predicated region
    $region50: #{tpu_custom_call.1} parent=1 // pred_check
      _
    $region51: #{tpu_custom_call.1} parent=1 // pred_check_branch
      %117 = sbr.rel (0) target = $region53
    $region52: #{tpu_custom_call.1} parent=1 // pred_region
      %118 = dma.done [#allocation8], 4096
    $region53: #{tpu_custom_call.1} parent=1 // pred_fallthru
      _
    // Predicated region
    $region54: #{tpu_custom_call.1} parent=1 // pred_check
      _
    $region55: #{tpu_custom_call.1} parent=1 // pred_check_branch
      %120 = sbr.rel (0) target = $region57
    $region56: #{tpu_custom_call.1} parent=1 // pred_region
      %121 = dma.done [#allocation8], 4096
    $region57: #{tpu_custom_call.1} parent=1 // pred_fallthru
      _
    // Predicated region
    $region58: #{tpu_custom_call.1} parent=1 // pred_check
      _
    $region59: #{tpu_custom_call.1} parent=1 // pred_check_branch
      %123 = sbr.rel (0) target = $region61
    $region60: #{tpu_custom_call.1} parent=1 // pred_region
      %124 = dma.done [#allocation11], 4096
    $region61: #{tpu_custom_call.1} parent=1 // pred_fallthru
      _
    // Predicated region
    $region62: #{tpu_custom_call.1} parent=1 // pred_check
      _
    $region63: #{tpu_custom_call.1} parent=1 // pred_check_branch
      %126 = sbr.rel (0) target = $region65
    $region64: #{tpu_custom_call.1} parent=1 // pred_region
      %127 = dma.done [#allocation11], 4096
    $region65: #{tpu_custom_call.1} parent=1 // pred_fallthru
      _
    // Predicated region
    $region66: #{tpu_custom_call.1} parent=1 // pred_check
      _
    $region67: #{tpu_custom_call.1} parent=1 // pred_check_branch
      %129 = sbr.rel (0) target = $region69
    $region68: #{tpu_custom_call.1} parent=1 // pred_region
      %130 = dma.done [#allocation14], 1024
    $region69: #{tpu_custom_call.1} parent=1 // pred_fallthru
      _
    // Predicated region
    $region70: #{tpu_custom_call.1} parent=1 // pred_check
      _
    $region71: #{tpu_custom_call.1} parent=1 // pred_check_branch
      %132 = sbr.rel (0) target = $region73
    $region72: #{tpu_custom_call.1} parent=1 // pred_region
      %133 = dma.done [#allocation14], 1024
    $region73: #{tpu_custom_call.1} parent=1 // pred_fallthru
      _
    %v135 = vld [vmem:[#allocation4] sm:$0xff]
    %v136 = vld [vmem:[#allocation4 + $0x8] sm:$0xff]
    %v137 = vld [vmem:[#allocation4 + $0x10] sm:$0xff]
    %v138 = vld [vmem:[#allocation4 + $0x18] sm:$0xff]
    %v139 = vld [vmem:[#allocation4 + $0x20] sm:$0xff]
    %v140 = vld [vmem:[#allocation4 + $0x28] sm:$0xff]
    %v141 = vld [vmem:[#allocation4 + $0x30] sm:$0xff]
    %v142 = vld [vmem:[#allocation4 + $0x38] sm:$0xff]
    %v143 = vpack.c.bf16 %v136, %v135
    %v144 = vpack.c.bf16 %v138, %v137
    %v145 = vpack.c.bf16 %v140, %v139
    %v146 = vpack.c.bf16 %v142, %v141
    %v147 = vld [vmem:[#allocation7] sm:$0xff]
    %v148 = vld [vmem:[#allocation7 + $0x8] sm:$0xff]
    %v149 = vld [vmem:[#allocation7 + $0x10] sm:$0xff]
    %v150 = vld [vmem:[#allocation7 + $0x18] sm:$0xff]
    %v151 = vld [vmem:[#allocation7 + $0x20] sm:$0xff]
    %v152 = vld [vmem:[#allocation7 + $0x28] sm:$0xff]
    %v153 = vld [vmem:[#allocation7 + $0x30] sm:$0xff]
    %v154 = vld [vmem:[#allocation7 + $0x38] sm:$0xff]
    %v155 = vld [vmem:[#allocation7 + $0x40] sm:$0xff]
    %v156 = vld [vmem:[#allocation7 + $0x48] sm:$0xff]
    %v157 = vld [vmem:[#allocation7 + $0x50] sm:$0xff]
    %v158 = vld [vmem:[#allocation7 + $0x58] sm:$0xff]
    %v159 = vld [vmem:[#allocation7 + $0x60] sm:$0xff]
    %v160 = vld [vmem:[#allocation7 + $0x68] sm:$0xff]
    %v161 = vld [vmem:[#allocation7 + $0x70] sm:$0xff]
    %v162 = vld [vmem:[#allocation7 + $0x78] sm:$0xff]
    %v163 = vld [vmem:[#allocation7 + $0x80] sm:$0xff]
    %v164 = vld [vmem:[#allocation7 + $0x88] sm:$0xff]
    %v165 = vld [vmem:[#allocation7 + $0x90] sm:$0xff]
    %v166 = vld [vmem:[#allocation7 + $0x98] sm:$0xff]
    %v167 = vld [vmem:[#allocation7 + $0xa0] sm:$0xff]
    %v168 = vld [vmem:[#allocation7 + $0xa8] sm:$0xff]
    %v169 = vld [vmem:[#allocation7 + $0xb0] sm:$0xff]
    %v170 = vld [vmem:[#allocation7 + $0xb8] sm:$0xff]
    %v171 = vld [vmem:[#allocation7 + $0xc0] sm:$0xff]
    %v172 = vld [vmem:[#allocation7 + $0xc8] sm:$0xff]
    %v173 = vld [vmem:[#allocation7 + $0xd0] sm:$0xff]
    %v174 = vld [vmem:[#allocation7 + $0xd8] sm:$0xff]
    %v175 = vld [vmem:[#allocation7 + $0xe0] sm:$0xff]
    %v176 = vld [vmem:[#allocation7 + $0xe8] sm:$0xff]
    %v177 = vld [vmem:[#allocation7 + $0xf0] sm:$0xff]
    %v178 = vld [vmem:[#allocation7 + $0xf8] sm:$0xff]
    %v179 = vld [vmem:[%s3] sm:$0xf]
    %v181 = vlaneseq
    %v182 = vshrl.u32 %v181, 7
    %v183 = vsub.s32 0, %v182
    %v184 = vrot.slane %v179, %v183
    %v185 = vlaneseq
    %v186 = vshrl.u32 %v185, 7
    %v187 = vsub.s32 1, %v186
    %v188 = vrot.slane %v179, %v187
    %v189 = vlaneseq
    %v190 = vshrl.u32 %v189, 7
    %v191 = vsub.s32 2, %v190
    %v192 = vrot.slane %v179, %v191
    %v193 = vlaneseq
    %v194 = vshrl.u32 %v193, 7
    %v195 = vsub.s32 3, %v194
    %v196 = vrot.slane %v179, %v195
    %v233 = vunpack.c.l.b16 %v147
    %v234 = vunpack.c.h.b16 %v147
    %v235 = vunpack.c.l.b16 %v148
    %v236 = vunpack.c.h.b16 %v148
    %v237 = vunpack.c.l.b16 %v149
    %v238 = vunpack.c.h.b16 %v149
    %v239 = vunpack.c.l.b16 %v150
    %v240 = vunpack.c.h.b16 %v150
    %v241 = vunpack.c.l.b16 %v151
    %v242 = vunpack.c.h.b16 %v151
    %v243 = vunpack.c.l.b16 %v152
    %v244 = vunpack.c.h.b16 %v152
    %v245 = vunpack.c.l.b16 %v153
    %v246 = vunpack.c.h.b16 %v153
    %v247 = vunpack.c.l.b16 %v154
    %v248 = vunpack.c.h.b16 %v154
    %v249 = vunpack.c.l.b16 %v155
    %v250 = vunpack.c.h.b16 %v155
    %v251 = vunpack.c.l.b16 %v156
    %v252 = vunpack.c.h.b16 %v156
    %v253 = vunpack.c.l.b16 %v157
    %v254 = vunpack.c.h.b16 %v157
    %v255 = vunpack.c.l.b16 %v158
    %v256 = vunpack.c.h.b16 %v158
    %v257 = vunpack.c.l.b16 %v159
    %v258 = vunpack.c.h.b16 %v159
    %v259 = vunpack.c.l.b16 %v160
    %v260 = vunpack.c.h.b16 %v160
    %v261 = vunpack.c.l.b16 %v161
    %v262 = vunpack.c.h.b16 %v161
    %v263 = vunpack.c.l.b16 %v162
    %v264 = vunpack.c.h.b16 %v162
    %v265 = vunpack.c.l.b16 %v163
    %v266 = vunpack.c.h.b16 %v163
    %v267 = vunpack.c.l.b16 %v164
    %v268 = vunpack.c.h.b16 %v164
    %v269 = vunpack.c.l.b16 %v165
    %v270 = vunpack.c.h.b16 %v165
    %v271 = vunpack.c.l.b16 %v166
    %v272 = vunpack.c.h.b16 %v166
    %v273 = vunpack.c.l.b16 %v167
    %v274 = vunpack.c.h.b16 %v167
    %v275 = vunpack.c.l.b16 %v168
    %v276 = vunpack.c.h.b16 %v168
    %v277 = vunpack.c.l.b16 %v169
    %v278 = vunpack.c.h.b16 %v169
    %v279 = vunpack.c.l.b16 %v170
    %v280 = vunpack.c.h.b16 %v170
    %v281 = vunpack.c.l.b16 %v171
    %v282 = vunpack.c.h.b16 %v171
    %v283 = vunpack.c.l.b16 %v172
    %v284 = vunpack.c.h.b16 %v172
    %v285 = vunpack.c.l.b16 %v173
    %v286 = vunpack.c.h.b16 %v173
    %v287 = vunpack.c.l.b16 %v174
    %v288 = vunpack.c.h.b16 %v174
    %v289 = vunpack.c.l.b16 %v175
    %v290 = vunpack.c.h.b16 %v175
    %v291 = vunpack.c.l.b16 %v176
    %v292 = vunpack.c.h.b16 %v176
    %v293 = vunpack.c.l.b16 %v177
    %v294 = vunpack.c.h.b16 %v177
    %v295 = vunpack.c.l.b16 %v178
    %v296 = vunpack.c.h.b16 %v178
    %v297 = vpack.c.b16 %v237, %v233
    %v298 = vpack.c.b16 %v238, %v234
    %v299 = vpack.c.b16 %v239, %v235
    %v300 = vpack.c.b16 %v240, %v236
    %v301 = vpack.c.b16 %v245, %v241
    %v302 = vpack.c.b16 %v246, %v242
    %v303 = vpack.c.b16 %v247, %v243
    %v304 = vpack.c.b16 %v248, %v244
    %v305 = vpack.c.b16 %v253, %v249
    %v306 = vpack.c.b16 %v254, %v250
    %v307 = vpack.c.b16 %v255, %v251
    %v308 = vpack.c.b16 %v256, %v252
    %v309 = vpack.c.b16 %v261, %v257
    %v310 = vpack.c.b16 %v262, %v258
    %v311 = vpack.c.b16 %v263, %v259
    %v312 = vpack.c.b16 %v264, %v260
    %v313 = vpack.c.b16 %v269, %v265
    %v314 = vpack.c.b16 %v270, %v266
    %v315 = vpack.c.b16 %v271, %v267
    %v316 = vpack.c.b16 %v272, %v268
    %v317 = vpack.c.b16 %v277, %v273
    %v318 = vpack.c.b16 %v278, %v274
    %v319 = vpack.c.b16 %v279, %v275
    %v320 = vpack.c.b16 %v280, %v276
    %v321 = vpack.c.b16 %v285, %v281
    %v322 = vpack.c.b16 %v286, %v282
    %v323 = vpack.c.b16 %v287, %v283
    %v324 = vpack.c.b16 %v288, %v284
    %v325 = vpack.c.b16 %v293, %v289
    %v326 = vpack.c.b16 %v294, %v290
    %v327 = vpack.c.b16 %v295, %v291
    %v328 = vpack.c.b16 %v296, %v292
    %361 = vmatprep.subr.bf16.mxu0 %v326
    %362 = vmatpush1.bf16.msra.mxu0 %v325
    %363 = vmatprep.subr.bf16.mxu0 %v322
    %364 = vmatpush1.bf16.msra.mxu0 %v321
    %365 = vmatprep.subr.bf16.mxu0 %v318
    %366 = vmatpush1.bf16.msra.mxu0 %v317
    %367 = vmatprep.subr.bf16.mxu0 %v314
    %368 = vmatpush1.bf16.msra.mxu0 %v313
    %369 = vmatprep.subr.bf16.mxu0 %v310
    %370 = vmatpush1.bf16.msra.mxu0 %v309
    %371 = vmatprep.subr.bf16.mxu0 %v306
    %372 = vmatpush1.bf16.msra.mxu0 %v305
    %373 = vmatprep.subr.bf16.mxu0 %v302
    %374 = vmatpush1.bf16.msra.mxu0 %v301
    %375 = vmatprep.subr.bf16.mxu0 %v298
    %376 = vmatpush1.bf16.msra.mxu0 %v297
    %377 = vmatprep.subr.bf16.mxu0 0
    %378 = vmatpush2.bf16.msra.mxu0 0
    %379 = vmatprep.subr.bf16.mxu0 0
    %380 = vmatpush2.bf16.msra.mxu0 0
    %381 = vmatprep.subr.bf16.mxu0 0
    %382 = vmatpush2.bf16.msra.mxu0 0
    %383 = vmatprep.subr.bf16.mxu0 0
    %384 = vmatpush2.bf16.msra.mxu0 0
    %385 = vmatprep.subr.bf16.mxu0 0
    %386 = vmatpush2.bf16.msra.mxu0 0
    %387 = vmatprep.subr.bf16.mxu0 0
    %388 = vmatpush2.bf16.msra.mxu0 0
    %389 = vmatprep.subr.bf16.mxu0 0
    %390 = vmatpush2.bf16.msra.mxu0 0
    %391 = vmatprep.subr.bf16.mxu0 0
    %392 = vmatpush2.bf16.msra.mxu0 0
    %393 = vmatprep.mubr.bf16.mxu0 0
    %394 = vmatmul.mubr.bf16.gmra.mxu0 %v143
    %v395 = vpop.f32.mrf.mxu0
    %v396 = vadd.f32 %v184, %v395
    %v397 = vpop.f32.mrf.mxu0
    %v398 = vadd.f32 %v188, %v397
    %v399 = vpop.f32.mrf.mxu0
    %v400 = vadd.f32 %v184, %v399
    %v401 = vpop.f32.mrf.mxu0
    %v402 = vadd.f32 %v188, %v401
    %403 = vmatprep.mubr.bf16.mxu0 0
    %404 = vmatmul.mubr.bf16.gmra.mxu0 %v144
    %v405 = vpop.f32.mrf.mxu0
    %v406 = vadd.f32 %v184, %v405
    %v407 = vpop.f32.mrf.mxu0
    %v408 = vadd.f32 %v188, %v407
    %v409 = vpop.f32.mrf.mxu0
    %v410 = vadd.f32 %v184, %v409
    %v411 = vpop.f32.mrf.mxu0
    %v412 = vadd.f32 %v188, %v411
    %413 = vmatprep.mubr.bf16.mxu0 0
    %414 = vmatmul.mubr.bf16.gmra.mxu0 %v145
    %v415 = vpop.f32.mrf.mxu0
    %v416 = vadd.f32 %v184, %v415
    %v417 = vpop.f32.mrf.mxu0
    %v418 = vadd.f32 %v188, %v417
    %v419 = vpop.f32.mrf.mxu0
    %v420 = vadd.f32 %v184, %v419
    %v421 = vpop.f32.mrf.mxu0
    %v422 = vadd.f32 %v188, %v421
    %423 = vmatprep.mubr.bf16.mxu0 0
    %424 = vmatmul.mubr.bf16.gmra.mxu0 %v146
    %v425 = vpop.f32.mrf.mxu0
    %v426 = vadd.f32 %v184, %v425
    %v427 = vpop.f32.mrf.mxu0
    %v428 = vadd.f32 %v188, %v427
    %v429 = vpop.f32.mrf.mxu0
    %v430 = vadd.f32 %v184, %v429
    %v431 = vpop.f32.mrf.mxu0
    %v432 = vadd.f32 %v188, %v431
    %433 = vdwg.mxu0
    %434 = vmatprep.subr.bf16.mxu0 %v328
    %435 = vmatpush1.bf16.msra.mxu0 %v327
    %436 = vmatprep.subr.bf16.mxu0 %v324
    %437 = vmatpush1.bf16.msra.mxu0 %v323
    %438 = vmatprep.subr.bf16.mxu0 %v320
    %439 = vmatpush1.bf16.msra.mxu0 %v319
    %440 = vmatprep.subr.bf16.mxu0 %v316
    %441 = vmatpush1.bf16.msra.mxu0 %v315
    %442 = vmatprep.subr.bf16.mxu0 %v312
    %443 = vmatpush1.bf16.msra.mxu0 %v311
    %444 = vmatprep.subr.bf16.mxu0 %v308
    %445 = vmatpush1.bf16.msra.mxu0 %v307
    %446 = vmatprep.subr.bf16.mxu0 %v304
    %447 = vmatpush1.bf16.msra.mxu0 %v303
    %448 = vmatprep.subr.bf16.mxu0 %v300
    %449 = vmatpush1.bf16.msra.mxu0 %v299
    %450 = vmatprep.subr.bf16.mxu0 0
    %451 = vmatpush2.bf16.msra.mxu0 0
    %452 = vmatprep.subr.bf16.mxu0 0
    %453 = vmatpush2.bf16.msra.mxu0 0
    %454 = vmatprep.subr.bf16.mxu0 0
    %455 = vmatpush2.bf16.msra.mxu0 0
    %456 = vmatprep.subr.bf16.mxu0 0
    %457 = vmatpush2.bf16.msra.mxu0 0
    %458 = vmatprep.subr.bf16.mxu0 0
    %459 = vmatpush2.bf16.msra.mxu0 0
    %460 = vmatprep.subr.bf16.mxu0 0
    %461 = vmatpush2.bf16.msra.mxu0 0
    %462 = vmatprep.subr.bf16.mxu0 0
    %463 = vmatpush2.bf16.msra.mxu0 0
    %464 = vmatprep.subr.bf16.mxu0 0
    %465 = vmatpush2.bf16.msra.mxu0 0
    %466 = vmatprep.mubr.bf16.mxu0 0
    %467 = vmatmul.mubr.bf16.gmra.mxu0 %v143
    %v468 = vpop.f32.mrf.mxu0
    %v469 = vadd.f32 %v192, %v468
    %v470 = vpop.f32.mrf.mxu0
    %v471 = vadd.f32 %v196, %v470
    %v472 = vpop.f32.mrf.mxu0
    %v473 = vadd.f32 %v192, %v472
    %v474 = vpop.f32.mrf.mxu0
    %v475 = vadd.f32 %v196, %v474
    %476 = vmatprep.mubr.bf16.mxu0 0
    %477 = vmatmul.mubr.bf16.gmra.mxu0 %v144
    %v478 = vpop.f32.mrf.mxu0
    %v479 = vadd.f32 %v192, %v478
    %v480 = vpop.f32.mrf.mxu0
    %v481 = vadd.f32 %v196, %v480
    %v482 = vpop.f32.mrf.mxu0
    %v483 = vadd.f32 %v192, %v482
    %v484 = vpop.f32.mrf.mxu0
    %v485 = vadd.f32 %v196, %v484
    %486 = vmatprep.mubr.bf16.mxu0 0
    %487 = vmatmul.mubr.bf16.gmra.mxu0 %v145
    %v488 = vpop.f32.mrf.mxu0
    %v489 = vadd.f32 %v192, %v488
    %v490 = vpop.f32.mrf.mxu0
    %v491 = vadd.f32 %v196, %v490
    %v492 = vpop.f32.mrf.mxu0
    %v493 = vadd.f32 %v192, %v492
    %v494 = vpop.f32.mrf.mxu0
    %v495 = vadd.f32 %v196, %v494
    %496 = vmatprep.mubr.bf16.mxu0 0
    %497 = vmatmul.mubr.bf16.gmra.mxu0 %v146
    %v498 = vpop.f32.mrf.mxu0
    %v499 = vadd.f32 %v192, %v498
    %v500 = vpop.f32.mrf.mxu0
    %v501 = vadd.f32 %v196, %v500
    %v502 = vpop.f32.mrf.mxu0
    %v503 = vadd.f32 %v192, %v502
    %v504 = vpop.f32.mrf.mxu0
    %v505 = vadd.f32 %v196, %v504
    %506 = vdwg.mxu0
    %507 = vst [vmem:[#allocation3] sm:$0xff] %v396
    %508 = vst [vmem:[#allocation3 + $0x8] sm:$0xff] %v398
    %509 = vst [vmem:[#allocation3 + $0x10] sm:$0xff] %v469
    %510 = vst [vmem:[#allocation3 + $0x18] sm:$0xff] %v471
    %511 = vst [vmem:[#allocation3 + $0x20] sm:$0xff] %v400
    %512 = vst [vmem:[#allocation3 + $0x28] sm:$0xff] %v402
    %513 = vst [vmem:[#allocation3 + $0x30] sm:$0xff] %v473
    %514 = vst [vmem:[#allocation3 + $0x38] sm:$0xff] %v475
    %515 = vst [vmem:[#allocation3 + $0x40] sm:$0xff] %v406
    %516 = vst [vmem:[#allocation3 + $0x48] sm:$0xff] %v408
    %517 = vst [vmem:[#allocation3 + $0x50] sm:$0xff] %v479
    %518 = vst [vmem:[#allocation3 + $0x58] sm:$0xff] %v481
    %519 = vst [vmem:[#allocation3 + $0x60] sm:$0xff] %v410
    %520 = vst [vmem:[#allocation3 + $0x68] sm:$0xff] %v412
    %521 = vst [vmem:[#allocation3 + $0x70] sm:$0xff] %v483
    %522 = vst [vmem:[#allocation3 + $0x78] sm:$0xff] %v485
    %523 = vst [vmem:[#allocation3 + $0x80] sm:$0xff] %v416
    %524 = vst [vmem:[#allocation3 + $0x88] sm:$0xff] %v418
    %525 = vst [vmem:[#allocation3 + $0x90] sm:$0xff] %v489
    %526 = vst [vmem:[#allocation3 + $0x98] sm:$0xff] %v491
    %527 = vst [vmem:[#allocation3 + $0xa0] sm:$0xff] %v420
    %528 = vst [vmem:[#allocation3 + $0xa8] sm:$0xff] %v422
    %529 = vst [vmem:[#allocation3 + $0xb0] sm:$0xff] %v493
    %530 = vst [vmem:[#allocation3 + $0xb8] sm:$0xff] %v495
    %531 = vst [vmem:[#allocation3 + $0xc0] sm:$0xff] %v426
    %532 = vst [vmem:[#allocation3 + $0xc8] sm:$0xff] %v428
    %533 = vst [vmem:[#allocation3 + $0xd0] sm:$0xff] %v499
    %534 = vst [vmem:[#allocation3 + $0xd8] sm:$0xff] %v501
    %535 = vst [vmem:[#allocation3 + $0xe0] sm:$0xff] %v430
    %536 = vst [vmem:[#allocation3 + $0xe8] sm:$0xff] %v432
    %537 = vst [vmem:[#allocation3 + $0xf0] sm:$0xff] %v503
    %538 = vst [vmem:[#allocation3 + $0xf8] sm:$0xff] %v505
    %v539 = vld [vmem:[#allocation9] sm:$0xff]
    %v540 = vld [vmem:[#allocation9 + $0x8] sm:$0xff]
    %v541 = vld [vmem:[#allocation9 + $0x10] sm:$0xff]
    %v542 = vld [vmem:[#allocation9 + $0x18] sm:$0xff]
    %v543 = vld [vmem:[#allocation9 + $0x20] sm:$0xff]
    %v544 = vld [vmem:[#allocation9 + $0x28] sm:$0xff]
    %v545 = vld [vmem:[#allocation9 + $0x30] sm:$0xff]
    %v546 = vld [vmem:[#allocation9 + $0x38] sm:$0xff]
    %v547 = vld [vmem:[#allocation9 + $0x40] sm:$0xff]
    %v548 = vld [vmem:[#allocation9 + $0x48] sm:$0xff]
    %v549 = vld [vmem:[#allocation9 + $0x50] sm:$0xff]
    %v550 = vld [vmem:[#allocation9 + $0x58] sm:$0xff]
    %v551 = vld [vmem:[#allocation9 + $0x60] sm:$0xff]
    %v552 = vld [vmem:[#allocation9 + $0x68] sm:$0xff]
    %v553 = vld [vmem:[#allocation9 + $0x70] sm:$0xff]
    %v554 = vld [vmem:[#allocation9 + $0x78] sm:$0xff]
    %v555 = vld [vmem:[#allocation9 + $0x80] sm:$0xff]
    %v556 = vld [vmem:[#allocation9 + $0x88] sm:$0xff]
    %v557 = vld [vmem:[#allocation9 + $0x90] sm:$0xff]
    %v558 = vld [vmem:[#allocation9 + $0x98] sm:$0xff]
    %v559 = vld [vmem:[#allocation9 + $0xa0] sm:$0xff]
    %v560 = vld [vmem:[#allocation9 + $0xa8] sm:$0xff]
    %v561 = vld [vmem:[#allocation9 + $0xb0] sm:$0xff]
    %v562 = vld [vmem:[#allocation9 + $0xb8] sm:$0xff]
    %v563 = vld [vmem:[#allocation9 + $0xc0] sm:$0xff]
    %v564 = vld [vmem:[#allocation9 + $0xc8] sm:$0xff]
    %v565 = vld [vmem:[#allocation9 + $0xd0] sm:$0xff]
    %v566 = vld [vmem:[#allocation9 + $0xd8] sm:$0xff]
    %v567 = vld [vmem:[#allocation9 + $0xe0] sm:$0xff]
    %v568 = vld [vmem:[#allocation9 + $0xe8] sm:$0xff]
    %v569 = vld [vmem:[#allocation9 + $0xf0] sm:$0xff]
    %v570 = vld [vmem:[#allocation9 + $0xf8] sm:$0xff]
    %v603 = vunpack.c.l.b16 %v539
    %v604 = vunpack.c.h.b16 %v539
    %v605 = vunpack.c.l.b16 %v540
    %v606 = vunpack.c.h.b16 %v540
    %v607 = vunpack.c.l.b16 %v541
    %v608 = vunpack.c.h.b16 %v541
    %v609 = vunpack.c.l.b16 %v542
    %v610 = vunpack.c.h.b16 %v542
    %v611 = vunpack.c.l.b16 %v543
    %v612 = vunpack.c.h.b16 %v543
    %v613 = vunpack.c.l.b16 %v544
    %v614 = vunpack.c.h.b16 %v544
    %v615 = vunpack.c.l.b16 %v545
    %v616 = vunpack.c.h.b16 %v545
    %v617 = vunpack.c.l.b16 %v546
    %v618 = vunpack.c.h.b16 %v546
    %v619 = vunpack.c.l.b16 %v547
    %v620 = vunpack.c.h.b16 %v547
    %v621 = vunpack.c.l.b16 %v548
    %v622 = vunpack.c.h.b16 %v548
    %v623 = vunpack.c.l.b16 %v549
    %v624 = vunpack.c.h.b16 %v549
    %v625 = vunpack.c.l.b16 %v550
    %v626 = vunpack.c.h.b16 %v550
    %v627 = vunpack.c.l.b16 %v551
    %v628 = vunpack.c.h.b16 %v551
    %v629 = vunpack.c.l.b16 %v552
    %v630 = vunpack.c.h.b16 %v552
    %v631 = vunpack.c.l.b16 %v553
    %v632 = vunpack.c.h.b16 %v553
    %v633 = vunpack.c.l.b16 %v554
    %v634 = vunpack.c.h.b16 %v554
    %v635 = vunpack.c.l.b16 %v555
    %v636 = vunpack.c.h.b16 %v555
    %v637 = vunpack.c.l.b16 %v556
    %v638 = vunpack.c.h.b16 %v556
    %v639 = vunpack.c.l.b16 %v557
    %v640 = vunpack.c.h.b16 %v557
    %v641 = vunpack.c.l.b16 %v558
    %v642 = vunpack.c.h.b16 %v558
    %v643 = vunpack.c.l.b16 %v559
    %v644 = vunpack.c.h.b16 %v559
    %v645 = vunpack.c.l.b16 %v560
    %v646 = vunpack.c.h.b16 %v560
    %v647 = vunpack.c.l.b16 %v561
    %v648 = vunpack.c.h.b16 %v561
    %v649 = vunpack.c.l.b16 %v562
    %v650 = vunpack.c.h.b16 %v562
    %v651 = vunpack.c.l.b16 %v563
    %v652 = vunpack.c.h.b16 %v563
    %v653 = vunpack.c.l.b16 %v564
    %v654 = vunpack.c.h.b16 %v564
    %v655 = vunpack.c.l.b16 %v565
    %v656 = vunpack.c.h.b16 %v565
    %v657 = vunpack.c.l.b16 %v566
    %v658 = vunpack.c.h.b16 %v566
    %v659 = vunpack.c.l.b16 %v567
    %v660 = vunpack.c.h.b16 %v567
    %v661 = vunpack.c.l.b16 %v568
    %v662 = vunpack.c.h.b16 %v568
    %v663 = vunpack.c.l.b16 %v569
    %v664 = vunpack.c.h.b16 %v569
    %v665 = vunpack.c.l.b16 %v570
    %v666 = vunpack.c.h.b16 %v570
    %v667 = vpack.c.b16 %v607, %v603
    %v668 = vpack.c.b16 %v608, %v604
    %v669 = vpack.c.b16 %v609, %v605
    %v670 = vpack.c.b16 %v610, %v606
    %v671 = vpack.c.b16 %v615, %v611
    %v672 = vpack.c.b16 %v616, %v612
    %v673 = vpack.c.b16 %v617, %v613
    %v674 = vpack.c.b16 %v618, %v614
    %v675 = vpack.c.b16 %v623, %v619
    %v676 = vpack.c.b16 %v624, %v620
    %v677 = vpack.c.b16 %v625, %v621
    %v678 = vpack.c.b16 %v626, %v622
    %v679 = vpack.c.b16 %v631, %v627
    %v680 = vpack.c.b16 %v632, %v628
    %v681 = vpack.c.b16 %v633, %v629
    %v682 = vpack.c.b16 %v634, %v630
    %v683 = vpack.c.b16 %v639, %v635
    %v684 = vpack.c.b16 %v640, %v636
    %v685 = vpack.c.b16 %v641, %v637
    %v686 = vpack.c.b16 %v642, %v638
    %v687 = vpack.c.b16 %v647, %v643
    %v688 = vpack.c.b16 %v648, %v644
    %v689 = vpack.c.b16 %v649, %v645
    %v690 = vpack.c.b16 %v650, %v646
    %v691 = vpack.c.b16 %v655, %v651
    %v692 = vpack.c.b16 %v656, %v652
    %v693 = vpack.c.b16 %v657, %v653
    %v694 = vpack.c.b16 %v658, %v654
    %v695 = vpack.c.b16 %v663, %v659
    %v696 = vpack.c.b16 %v664, %v660
    %v697 = vpack.c.b16 %v665, %v661
    %v698 = vpack.c.b16 %v666, %v662
    %731 = vmatprep.subr.bf16.mxu0 %v696
    %732 = vmatpush1.bf16.msra.mxu0 %v695
    %733 = vmatprep.subr.bf16.mxu0 %v692
    %734 = vmatpush1.bf16.msra.mxu0 %v691
    %735 = vmatprep.subr.bf16.mxu0 %v688
    %736 = vmatpush1.bf16.msra.mxu0 %v687
    %737 = vmatprep.subr.bf16.mxu0 %v684
    %738 = vmatpush1.bf16.msra.mxu0 %v683
    %739 = vmatprep.subr.bf16.mxu0 %v680
    %740 = vmatpush1.bf16.msra.mxu0 %v679
    %741 = vmatprep.subr.bf16.mxu0 %v676
    %742 = vmatpush1.bf16.msra.mxu0 %v675
    %743 = vmatprep.subr.bf16.mxu0 %v672
    %744 = vmatpush1.bf16.msra.mxu0 %v671
    %745 = vmatprep.subr.bf16.mxu0 %v668
    %746 = vmatpush1.bf16.msra.mxu0 %v667
    %747 = vmatprep.subr.bf16.mxu0 0
    %748 = vmatpush2.bf16.msra.mxu0 0
    %749 = vmatprep.subr.bf16.mxu0 0
    %750 = vmatpush2.bf16.msra.mxu0 0
    %751 = vmatprep.subr.bf16.mxu0 0
    %752 = vmatpush2.bf16.msra.mxu0 0
    %753 = vmatprep.subr.bf16.mxu0 0
    %754 = vmatpush2.bf16.msra.mxu0 0
    %755 = vmatprep.subr.bf16.mxu0 0
    %756 = vmatpush2.bf16.msra.mxu0 0
    %757 = vmatprep.subr.bf16.mxu0 0
    %758 = vmatpush2.bf16.msra.mxu0 0
    %759 = vmatprep.subr.bf16.mxu0 0
    %760 = vmatpush2.bf16.msra.mxu0 0
    %761 = vmatprep.subr.bf16.mxu0 0
    %762 = vmatpush2.bf16.msra.mxu0 0
    %763 = vmatprep.mubr.bf16.mxu0 0
    %764 = vmatmul.mubr.bf16.gmra.mxu0 0
    %v765 = vpop.f32.mrf.mxu0
    %v766 = vadd.f32 0.0, %v765
    %v767 = vpop.f32.mrf.mxu0
    %v768 = vadd.f32 0.0, %v767
    %v769 = vpop.f32.mrf.mxu0
    %v770 = vpop.f32.mrf.mxu0
    %771 = vdwg.mxu0
    %772 = vmatprep.subr.bf16.mxu0 %v698
    %773 = vmatpush1.bf16.msra.mxu0 %v697
    %774 = vmatprep.subr.bf16.mxu0 %v694
    %775 = vmatpush1.bf16.msra.mxu0 %v693
    %776 = vmatprep.subr.bf16.mxu0 %v690
    %777 = vmatpush1.bf16.msra.mxu0 %v689
    %778 = vmatprep.subr.bf16.mxu0 %v686
    %779 = vmatpush1.bf16.msra.mxu0 %v685
    %780 = vmatprep.subr.bf16.mxu0 %v682
    %781 = vmatpush1.bf16.msra.mxu0 %v681
    %782 = vmatprep.subr.bf16.mxu0 %v678
    %783 = vmatpush1.bf16.msra.mxu0 %v677
    %784 = vmatprep.subr.bf16.mxu0 %v674
    %785 = vmatpush1.bf16.msra.mxu0 %v673
    %786 = vmatprep.subr.bf16.mxu0 %v670
    %787 = vmatpush1.bf16.msra.mxu0 %v669
    %788 = vmatprep.subr.bf16.mxu0 0
    %789 = vmatpush2.bf16.msra.mxu0 0
    %790 = vmatprep.subr.bf16.mxu0 0
    %791 = vmatpush2.bf16.msra.mxu0 0
    %792 = vmatprep.subr.bf16.mxu0 0
    %793 = vmatpush2.bf16.msra.mxu0 0
    %794 = vmatprep.subr.bf16.mxu0 0
    %795 = vmatpush2.bf16.msra.mxu0 0
    %796 = vmatprep.subr.bf16.mxu0 0
    %797 = vmatpush2.bf16.msra.mxu0 0
    %798 = vmatprep.subr.bf16.mxu0 0
    %799 = vmatpush2.bf16.msra.mxu0 0
    %800 = vmatprep.subr.bf16.mxu0 0
    %801 = vmatpush2.bf16.msra.mxu0 0
    %802 = vmatprep.subr.bf16.mxu0 0
    %803 = vmatpush2.bf16.msra.mxu0 0
    %804 = vmatprep.mubr.bf16.mxu0 0
    %805 = vmatmul.mubr.bf16.gmra.mxu0 0
    %v806 = vpop.f32.mrf.mxu0
    %v807 = vadd.f32 0.0, %v806
    %v808 = vpop.f32.mrf.mxu0
    %v809 = vadd.f32 0.0, %v808
    %v810 = vpop.f32.mrf.mxu0
    %v811 = vpop.f32.mrf.mxu0
    %812 = vdwg.mxu0
    %v813 = vld [vmem:[#allocation3] sm:$0xff]
    %v814 = vld [vmem:[#allocation3 + $0x8] sm:$0xff]
    %v815 = vld [vmem:[#allocation3 + $0x10] sm:$0xff]
    %v816 = vld [vmem:[#allocation3 + $0x18] sm:$0xff]
    %v817 = vadd.f32 %v813, %v766
    %v818 = vadd.f32 %v814, %v768
    %v819 = vadd.f32 %v815, %v807
    %v820 = vadd.f32 %v816, %v809
    %v821 = vxor.u32 %v817, 2147483648
    %v822 = vmul.f32 %v821, 1.442695
    %v823 = vpow.pop %v822
    %v824 = vadd.f32 %v823, 1.0
    %v825 = vrcp.pop %v824
    %v826 = vmul.f32 1.0, %v825
    %v827 = vxor.u32 %v818, 2147483648
    %v828 = vmul.f32 %v827, 1.442695
    %v829 = vpow.pop %v828
    %v830 = vadd.f32 %v829, 1.0
    %v831 = vrcp.pop %v830
    %v832 = vmul.f32 1.0, %v831
    %v833 = vtanh.pop %v819
    %v834 = vxor.u32 %v820, 2147483648
    %v835 = vmul.f32 %v834, 1.442695
    %v836 = vpow.pop %v835
    %v837 = vadd.f32 %v836, 1.0
    %v838 = vrcp.pop %v837
    %v839 = vmul.f32 1.0, %v838
    %v840 = vmul.f32 %v832, 0.0
    %v841 = vmul.f32 %v826, %v833
    %v842 = vadd.f32 %v840, %v841
    %v843 = vtanh.pop %v842
    %v844 = vmul.f32 %v839, %v843
    %v845 = vpack.c.bf16 %v844, %v844
    %846 = vst [vmem:[#allocation2] sm:$0xf] %v845
    %v847 = vld [vmem:[#allocation9] sm:$0xff]
    %v848 = vld [vmem:[#allocation9 + $0x8] sm:$0xff]
    %v849 = vld [vmem:[#allocation9 + $0x10] sm:$0xff]
    %v850 = vld [vmem:[#allocation9 + $0x18] sm:$0xff]
    %v851 = vld [vmem:[#allocation9 + $0x20] sm:$0xff]
    %v852 = vld [vmem:[#allocation9 + $0x28] sm:$0xff]
    %v853 = vld [vmem:[#allocation9 + $0x30] sm:$0xff]
    %v854 = vld [vmem:[#allocation9 + $0x38] sm:$0xff]
    %v855 = vld [vmem:[#allocation9 + $0x40] sm:$0xff]
    %v856 = vld [vmem:[#allocation9 + $0x48] sm:$0xff]
    %v857 = vld [vmem:[#allocation9 + $0x50] sm:$0xff]
    %v858 = vld [vmem:[#allocation9 + $0x58] sm:$0xff]
    %v859 = vld [vmem:[#allocation9 + $0x60] sm:$0xff]
    %v860 = vld [vmem:[#allocation9 + $0x68] sm:$0xff]
    %v861 = vld [vmem:[#allocation9 + $0x70] sm:$0xff]
    %v862 = vld [vmem:[#allocation9 + $0x78] sm:$0xff]
    %v863 = vld [vmem:[#allocation9 + $0x80] sm:$0xff]
    %v864 = vld [vmem:[#allocation9 + $0x88] sm:$0xff]
    %v865 = vld [vmem:[#allocation9 + $0x90] sm:$0xff]
    %v866 = vld [vmem:[#allocation9 + $0x98] sm:$0xff]
    %v867 = vld [vmem:[#allocation9 + $0xa0] sm:$0xff]
    %v868 = vld [vmem:[#allocation9 + $0xa8] sm:$0xff]
    %v869 = vld [vmem:[#allocation9 + $0xb0] sm:$0xff]
    %v870 = vld [vmem:[#allocation9 + $0xb8] sm:$0xff]
    %v871 = vld [vmem:[#allocation9 + $0xc0] sm:$0xff]
    %v872 = vld [vmem:[#allocation9 + $0xc8] sm:$0xff]
    %v873 = vld [vmem:[#allocation9 + $0xd0] sm:$0xff]
    %v874 = vld [vmem:[#allocation9 + $0xd8] sm:$0xff]
    %v875 = vld [vmem:[#allocation9 + $0xe0] sm:$0xff]
    %v876 = vld [vmem:[#allocation9 + $0xe8] sm:$0xff]
    %v877 = vld [vmem:[#allocation9 + $0xf0] sm:$0xff]
    %v878 = vld [vmem:[#allocation9 + $0xf8] sm:$0xff]
    %v911 = vunpack.c.l.b16 %v847
    %v912 = vunpack.c.h.b16 %v847
    %v913 = vunpack.c.l.b16 %v848
    %v914 = vunpack.c.h.b16 %v848
    %v915 = vunpack.c.l.b16 %v849
    %v916 = vunpack.c.h.b16 %v849
    %v917 = vunpack.c.l.b16 %v850
    %v918 = vunpack.c.h.b16 %v850
    %v919 = vunpack.c.l.b16 %v851
    %v920 = vunpack.c.h.b16 %v851
    %v921 = vunpack.c.l.b16 %v852
    %v922 = vunpack.c.h.b16 %v852
    %v923 = vunpack.c.l.b16 %v853
    %v924 = vunpack.c.h.b16 %v853
    %v925 = vunpack.c.l.b16 %v854
    %v926 = vunpack.c.h.b16 %v854
    %v927 = vunpack.c.l.b16 %v855
    %v928 = vunpack.c.h.b16 %v855
    %v929 = vunpack.c.l.b16 %v856
    %v930 = vunpack.c.h.b16 %v856
    %v931 = vunpack.c.l.b16 %v857
    %v932 = vunpack.c.h.b16 %v857
    %v933 = vunpack.c.l.b16 %v858
    %v934 = vunpack.c.h.b16 %v858
    %v935 = vunpack.c.l.b16 %v859
    %v936 = vunpack.c.h.b16 %v859
    %v937 = vunpack.c.l.b16 %v860
    %v938 = vunpack.c.h.b16 %v860
    %v939 = vunpack.c.l.b16 %v861
    %v940 = vunpack.c.h.b16 %v861
    %v941 = vunpack.c.l.b16 %v862
    %v942 = vunpack.c.h.b16 %v862
    %v943 = vunpack.c.l.b16 %v863
    %v944 = vunpack.c.h.b16 %v863
    %v945 = vunpack.c.l.b16 %v864
    %v946 = vunpack.c.h.b16 %v864
    %v947 = vunpack.c.l.b16 %v865
    %v948 = vunpack.c.h.b16 %v865
    %v949 = vunpack.c.l.b16 %v866
    %v950 = vunpack.c.h.b16 %v866
    %v951 = vunpack.c.l.b16 %v867
    %v952 = vunpack.c.h.b16 %v867
    %v953 = vunpack.c.l.b16 %v868
    %v954 = vunpack.c.h.b16 %v868
    %v955 = vunpack.c.l.b16 %v869
    %v956 = vunpack.c.h.b16 %v869
    %v957 = vunpack.c.l.b16 %v870
    %v958 = vunpack.c.h.b16 %v870
    %v959 = vunpack.c.l.b16 %v871
    %v960 = vunpack.c.h.b16 %v871
    %v961 = vunpack.c.l.b16 %v872
    %v962 = vunpack.c.h.b16 %v872
    %v963 = vunpack.c.l.b16 %v873
    %v964 = vunpack.c.h.b16 %v873
    %v965 = vunpack.c.l.b16 %v874
    %v966 = vunpack.c.h.b16 %v874
    %v967 = vunpack.c.l.b16 %v875
    %v968 = vunpack.c.h.b16 %v875
    %v969 = vunpack.c.l.b16 %v876
    %v970 = vunpack.c.h.b16 %v876
    %v971 = vunpack.c.l.b16 %v877
    %v972 = vunpack.c.h.b16 %v877
    %v973 = vunpack.c.l.b16 %v878
    %v974 = vunpack.c.h.b16 %v878
    %v975 = vpack.c.b16 %v915, %v911
    %v976 = vpack.c.b16 %v916, %v912
    %v977 = vpack.c.b16 %v917, %v913
    %v978 = vpack.c.b16 %v918, %v914
    %v979 = vpack.c.b16 %v923, %v919
    %v980 = vpack.c.b16 %v924, %v920
    %v981 = vpack.c.b16 %v925, %v921
    %v982 = vpack.c.b16 %v926, %v922
    %v983 = vpack.c.b16 %v931, %v927
    %v984 = vpack.c.b16 %v932, %v928
    %v985 = vpack.c.b16 %v933, %v929
    %v986 = vpack.c.b16 %v934, %v930
    %v987 = vpack.c.b16 %v939, %v935
    %v988 = vpack.c.b16 %v940, %v936
    %v989 = vpack.c.b16 %v941, %v937
    %v990 = vpack.c.b16 %v942, %v938
    %v991 = vpack.c.b16 %v947, %v943
    %v992 = vpack.c.b16 %v948, %v944
    %v993 = vpack.c.b16 %v949, %v945
    %v994 = vpack.c.b16 %v950, %v946
    %v995 = vpack.c.b16 %v955, %v951
    %v996 = vpack.c.b16 %v956, %v952
    %v997 = vpack.c.b16 %v957, %v953
    %v998 = vpack.c.b16 %v958, %v954
    %v999 = vpack.c.b16 %v963, %v959
    %v1000 = vpack.c.b16 %v964, %v960
    %v1001 = vpack.c.b16 %v965, %v961
    %v1002 = vpack.c.b16 %v966, %v962
    %v1003 = vpack.c.b16 %v971, %v967
    %v1004 = vpack.c.b16 %v972, %v968
    %v1005 = vpack.c.b16 %v973, %v969
    %v1006 = vpack.c.b16 %v974, %v970
    %1039 = vmatprep.subr.bf16.mxu0 %v1004
    %1040 = vmatpush1.bf16.msra.mxu0 %v1003
    %1041 = vmatprep.subr.bf16.mxu0 %v1000
    %1042 = vmatpush1.bf16.msra.mxu0 %v999
    %1043 = vmatprep.subr.bf16.mxu0 %v996
    %1044 = vmatpush1.bf16.msra.mxu0 %v995
    %1045 = vmatprep.subr.bf16.mxu0 %v992
    %1046 = vmatpush1.bf16.msra.mxu0 %v991
    %1047 = vmatprep.subr.bf16.mxu0 %v988
    %1048 = vmatpush1.bf16.msra.mxu0 %v987
    %1049 = vmatprep.subr.bf16.mxu0 %v984
    %1050 = vmatpush1.bf16.msra.mxu0 %v983
    %1051 = vmatprep.subr.bf16.mxu0 %v980
    %1052 = vmatpush1.bf16.msra.mxu0 %v979
    %1053 = vmatprep.subr.bf16.mxu0 %v976
    %1054 = vmatpush1.bf16.msra.mxu0 %v975
    %1055 = vmatprep.subr.bf16.mxu0 0
    %1056 = vmatpush2.bf16.msra.mxu0 0
    %1057 = vmatprep.subr.bf16.mxu0 0
    %1058 = vmatpush2.bf16.msra.mxu0 0
    %1059 = vmatprep.subr.bf16.mxu0 0
    %1060 = vmatpush2.bf16.msra.mxu0 0
    %1061 = vmatprep.subr.bf16.mxu0 0
    %1062 = vmatpush2.bf16.msra.mxu0 0
    %1063 = vmatprep.subr.bf16.mxu0 0
    %1064 = vmatpush2.bf16.msra.mxu0 0
    %1065 = vmatprep.subr.bf16.mxu0 0
    %1066 = vmatpush2.bf16.msra.mxu0 0
    %1067 = vmatprep.subr.bf16.mxu0 0
    %1068 = vmatpush2.bf16.msra.mxu0 0
    %1069 = vmatprep.subr.bf16.mxu0 0
    %1070 = vmatpush2.bf16.msra.mxu0 0
    %1071 = vmatprep.mubr.bf16.mxu0 0
    %1072 = vmatmul.mubr.bf16.gmra.mxu0 %v845
    %v1073 = vpop.f32.mrf.mxu0
    %v1074 = vadd.f32 0.0, %v1073
    %v1075 = vpop.f32.mrf.mxu0
    %v1076 = vadd.f32 0.0, %v1075
    %v1077 = vpop.f32.mrf.mxu0
    %v1078 = vpop.f32.mrf.mxu0
    %1079 = vdwg.mxu0
    %1080 = vmatprep.subr.bf16.mxu0 %v1006
    %1081 = vmatpush1.bf16.msra.mxu0 %v1005
    %1082 = vmatprep.subr.bf16.mxu0 %v1002
    %1083 = vmatpush1.bf16.msra.mxu0 %v1001
    %1084 = vmatprep.subr.bf16.mxu0 %v998
    %1085 = vmatpush1.bf16.msra.mxu0 %v997
    %1086 = vmatprep.subr.bf16.mxu0 %v994
    %1087 = vmatpush1.bf16.msra.mxu0 %v993
    %1088 = vmatprep.subr.bf16.mxu0 %v990
    %1089 = vmatpush1.bf16.msra.mxu0 %v989
    %1090 = vmatprep.subr.bf16.mxu0 %v986
    %1091 = vmatpush1.bf16.msra.mxu0 %v985
    %1092 = vmatprep.subr.bf16.mxu0 %v982
    %1093 = vmatpush1.bf16.msra.mxu0 %v981
    %1094 = vmatprep.subr.bf16.mxu0 %v978
    %1095 = vmatpush1.bf16.msra.mxu0 %v977
    %1096 = vmatprep.subr.bf16.mxu0 0
    %1097 = vmatpush2.bf16.msra.mxu0 0
    %1098 = vmatprep.subr.bf16.mxu0 0
    %1099 = vmatpush2.bf16.msra.mxu0 0
    %1100 = vmatprep.subr.bf16.mxu0 0
    %1101 = vmatpush2.bf16.msra.mxu0 0
    %1102 = vmatprep.subr.bf16.mxu0 0
    %1103 = vmatpush2.bf16.msra.mxu0 0
    %1104 = vmatprep.subr.bf16.mxu0 0
    %1105 = vmatpush2.bf16.msra.mxu0 0
    %1106 = vmatprep.subr.bf16.mxu0 0
    %1107 = vmatpush2.bf16.msra.mxu0 0
    %1108 = vmatprep.subr.bf16.mxu0 0
    %1109 = vmatpush2.bf16.msra.mxu0 0
    %1110 = vmatprep.subr.bf16.mxu0 0
    %1111 = vmatpush2.bf16.msra.mxu0 0
    %1112 = vmatprep.mubr.bf16.mxu0 0
    %1113 = vmatmul.mubr.bf16.gmra.mxu0 %v845
    %v1114 = vpop.f32.mrf.mxu0
    %v1115 = vadd.f32 0.0, %v1114
    %v1116 = vpop.f32.mrf.mxu0
    %v1117 = vadd.f32 0.0, %v1116
    %v1118 = vpop.f32.mrf.mxu0
    %v1119 = vpop.f32.mrf.mxu0
    %1120 = vdwg.mxu0
    %s1121 = scalar_lea.vmem [#allocation3], 32
    %v1122 = vld [vmem:[%s1121] sm:$0xff]
    %v1123 = vld [vmem:[%s1121 + $0x8] sm:$0xff]
    %v1124 = vld [vmem:[%s1121 + $0x10] sm:$0xff]
    %v1125 = vld [vmem:[%s1121 + $0x18] sm:$0xff]
    %v1126 = vadd.f32 %v1122, %v1074
    %v1127 = vadd.f32 %v1123, %v1076
    %v1128 = vadd.f32 %v1124, %v1115
    %v1129 = vadd.f32 %v1125, %v1117
    %v1130 = vxor.u32 %v1126, 2147483648
    %v1131 = vmul.f32 %v1130, 1.442695
    %v1132 = vpow.pop %v1131
    %v1133 = vadd.f32 %v1132, 1.0
    %v1134 = vrcp.pop %v1133
    %v1135 = vmul.f32 1.0, %v1134
    %v1136 = vxor.u32 %v1127, 2147483648
    %v1137 = vmul.f32 %v1136, 1.442695
    %v1138 = vpow.pop %v1137
    %v1139 = vadd.f32 %v1138, 1.0
    %v1140 = vrcp.pop %v1139
    %v1141 = vmul.f32 1.0, %v1140
    %v1142 = vtanh.pop %v1128
    %v1143 = vxor.u32 %v1129, 2147483648
    %v1144 = vmul.f32 %v1143, 1.442695
    %v1145 = vpow.pop %v1144
    %v1146 = vadd.f32 %v1145, 1.0
    %v1147 = vrcp.pop %v1146
    %v1148 = vmul.f32 1.0, %v1147
    %v1149 = vmul.f32 %v1141, %v842
    %v1150 = vmul.f32 %v1135, %v1142
    %v1151 = vadd.f32 %v1149, %v1150
    %v1152 = vtanh.pop %v1151
    %v1153 = vmul.f32 %v1148, %v1152
    %v1154 = vpack.c.bf16 %v1153, %v1153
    %s1155 = scalar_lea.vmem [#allocation2], 4
    %1156 = vst [vmem:[%s1155] sm:$0xf] %v1154
    %v1157 = vld [vmem:[#allocation9] sm:$0xff]
    %v1158 = vld [vmem:[#allocation9 + $0x8] sm:$0xff]
    %v1159 = vld [vmem:[#allocation9 + $0x10] sm:$0xff]
    %v1160 = vld [vmem:[#allocation9 + $0x18] sm:$0xff]
    %v1161 = vld [vmem:[#allocation9 + $0x20] sm:$0xff]
    %v1162 = vld [vmem:[#allocation9 + $0x28] sm:$0xff]
    %v1163 = vld [vmem:[#allocation9 + $0x30] sm:$0xff]
    %v1164 = vld [vmem:[#allocation9 + $0x38] sm:$0xff]
    %v1165 = vld [vmem:[#allocation9 + $0x40] sm:$0xff]
    %v1166 = vld [vmem:[#allocation9 + $0x48] sm:$0xff]
    %v1167 = vld [vmem:[#allocation9 + $0x50] sm:$0xff]
    %v1168 = vld [vmem:[#allocation9 + $0x58] sm:$0xff]
    %v1169 = vld [vmem:[#allocation9 + $0x60] sm:$0xff]
    %v1170 = vld [vmem:[#allocation9 + $0x68] sm:$0xff]
    %v1171 = vld [vmem:[#allocation9 + $0x70] sm:$0xff]
    %v1172 = vld [vmem:[#allocation9 + $0x78] sm:$0xff]
    %v1173 = vld [vmem:[#allocation9 + $0x80] sm:$0xff]
    %v1174 = vld [vmem:[#allocation9 + $0x88] sm:$0xff]
    %v1175 = vld [vmem:[#allocation9 + $0x90] sm:$0xff]
    %v1176 = vld [vmem:[#allocation9 + $0x98] sm:$0xff]
    %v1177 = vld [vmem:[#allocation9 + $0xa0] sm:$0xff]
    %v1178 = vld [vmem:[#allocation9 + $0xa8] sm:$0xff]
    %v1179 = vld [vmem:[#allocation9 + $0xb0] sm:$0xff]
    %v1180 = vld [vmem:[#allocation9 + $0xb8] sm:$0xff]
    %v1181 = vld [vmem:[#allocation9 + $0xc0] sm:$0xff]
    %v1182 = vld [vmem:[#allocation9 + $0xc8] sm:$0xff]
    %v1183 = vld [vmem:[#allocation9 + $0xd0] sm:$0xff]
    %v1184 = vld [vmem:[#allocation9 + $0xd8] sm:$0xff]
    %v1185 = vld [vmem:[#allocation9 + $0xe0] sm:$0xff]
    %v1186 = vld [vmem:[#allocation9 + $0xe8] sm:$0xff]
    %v1187 = vld [vmem:[#allocation9 + $0xf0] sm:$0xff]
    %v1188 = vld [vmem:[#allocation9 + $0xf8] sm:$0xff]
    %v1221 = vunpack.c.l.b16 %v1157
    %v1222 = vunpack.c.h.b16 %v1157
    %v1223 = vunpack.c.l.b16 %v1158
    %v1224 = vunpack.c.h.b16 %v1158
    %v1225 = vunpack.c.l.b16 %v1159
    %v1226 = vunpack.c.h.b16 %v1159
    %v1227 = vunpack.c.l.b16 %v1160
    %v1228 = vunpack.c.h.b16 %v1160
    %v1229 = vunpack.c.l.b16 %v1161
    %v1230 = vunpack.c.h.b16 %v1161
    %v1231 = vunpack.c.l.b16 %v1162
    %v1232 = vunpack.c.h.b16 %v1162
    %v1233 = vunpack.c.l.b16 %v1163
    %v1234 = vunpack.c.h.b16 %v1163
    %v1235 = vunpack.c.l.b16 %v1164
    %v1236 = vunpack.c.h.b16 %v1164
    %v1237 = vunpack.c.l.b16 %v1165
    %v1238 = vunpack.c.h.b16 %v1165
    %v1239 = vunpack.c.l.b16 %v1166
    %v1240 = vunpack.c.h.b16 %v1166
    %v1241 = vunpack.c.l.b16 %v1167
    %v1242 = vunpack.c.h.b16 %v1167
    %v1243 = vunpack.c.l.b16 %v1168
    %v1244 = vunpack.c.h.b16 %v1168
    %v1245 = vunpack.c.l.b16 %v1169
    %v1246 = vunpack.c.h.b16 %v1169
    %v1247 = vunpack.c.l.b16 %v1170
    %v1248 = vunpack.c.h.b16 %v1170
    %v1249 = vunpack.c.l.b16 %v1171
    %v1250 = vunpack.c.h.b16 %v1171
    %v1251 = vunpack.c.l.b16 %v1172
    %v1252 = vunpack.c.h.b16 %v1172
    %v1253 = vunpack.c.l.b16 %v1173
    %v1254 = vunpack.c.h.b16 %v1173
    %v1255 = vunpack.c.l.b16 %v1174
    %v1256 = vunpack.c.h.b16 %v1174
    %v1257 = vunpack.c.l.b16 %v1175
    %v1258 = vunpack.c.h.b16 %v1175
    %v1259 = vunpack.c.l.b16 %v1176
    %v1260 = vunpack.c.h.b16 %v1176
    %v1261 = vunpack.c.l.b16 %v1177
    %v1262 = vunpack.c.h.b16 %v1177
    %v1263 = vunpack.c.l.b16 %v1178
    %v1264 = vunpack.c.h.b16 %v1178
    %v1265 = vunpack.c.l.b16 %v1179
    %v1266 = vunpack.c.h.b16 %v1179
    %v1267 = vunpack.c.l.b16 %v1180
    %v1268 = vunpack.c.h.b16 %v1180
    %v1269 = vunpack.c.l.b16 %v1181
    %v1270 = vunpack.c.h.b16 %v1181
    %v1271 = vunpack.c.l.b16 %v1182
    %v1272 = vunpack.c.h.b16 %v1182
    %v1273 = vunpack.c.l.b16 %v1183
    %v1274 = vunpack.c.h.b16 %v1183
    %v1275 = vunpack.c.l.b16 %v1184
    %v1276 = vunpack.c.h.b16 %v1184
    %v1277 = vunpack.c.l.b16 %v1185
    %v1278 = vunpack.c.h.b16 %v1185
    %v1279 = vunpack.c.l.b16 %v1186
    %v1280 = vunpack.c.h.b16 %v1186
    %v1281 = vunpack.c.l.b16 %v1187
    %v1282 = vunpack.c.h.b16 %v1187
    %v1283 = vunpack.c.l.b16 %v1188
    %v1284 = vunpack.c.h.b16 %v1188
    %v1285 = vpack.c.b16 %v1225, %v1221
    %v1286 = vpack.c.b16 %v1226, %v1222
    %v1287 = vpack.c.b16 %v1227, %v1223
    %v1288 = vpack.c.b16 %v1228, %v1224
    %v1289 = vpack.c.b16 %v1233, %v1229
    %v1290 = vpack.c.b16 %v1234, %v1230
    %v1291 = vpack.c.b16 %v1235, %v1231
    %v1292 = vpack.c.b16 %v1236, %v1232
    %v1293 = vpack.c.b16 %v1241, %v1237
    %v1294 = vpack.c.b16 %v1242, %v1238
    %v1295 = vpack.c.b16 %v1243, %v1239
    %v1296 = vpack.c.b16 %v1244, %v1240
    %v1297 = vpack.c.b16 %v1249, %v1245
    %v1298 = vpack.c.b16 %v1250, %v1246
    %v1299 = vpack.c.b16 %v1251, %v1247
    %v1300 = vpack.c.b16 %v1252, %v1248
    %v1301 = vpack.c.b16 %v1257, %v1253
    %v1302 = vpack.c.b16 %v1258, %v1254
    %v1303 = vpack.c.b16 %v1259, %v1255
    %v1304 = vpack.c.b16 %v1260, %v1256
    %v1305 = vpack.c.b16 %v1265, %v1261
    %v1306 = vpack.c.b16 %v1266, %v1262
    %v1307 = vpack.c.b16 %v1267, %v1263
    %v1308 = vpack.c.b16 %v1268, %v1264
    %v1309 = vpack.c.b16 %v1273, %v1269
    %v1310 = vpack.c.b16 %v1274, %v1270
    %v1311 = vpack.c.b16 %v1275, %v1271
    %v1312 = vpack.c.b16 %v1276, %v1272
    %v1313 = vpack.c.b16 %v1281, %v1277
    %v1314 = vpack.c.b16 %v1282, %v1278
    %v1315 = vpack.c.b16 %v1283, %v1279
    %v1316 = vpack.c.b16 %v1284, %v1280
    %1349 = vmatprep.subr.bf16.mxu0 %v1314
    %1350 = vmatpush1.bf16.msra.mxu0 %v1313
    %1351 = vmatprep.subr.bf16.mxu0 %v1310
    %1352 = vmatpush1.bf16.msra.mxu0 %v1309
    %1353 = vmatprep.subr.bf16.mxu0 %v1306
    %1354 = vmatpush1.bf16.msra.mxu0 %v1305
    %1355 = vmatprep.subr.bf16.mxu0 %v1302
    %1356 = vmatpush1.bf16.msra.mxu0 %v1301
    %1357 = vmatprep.subr.bf16.mxu0 %v1298
    %1358 = vmatpush1.bf16.msra.mxu0 %v1297
    %1359 = vmatprep.subr.bf16.mxu0 %v1294
    %1360 = vmatpush1.bf16.msra.mxu0 %v1293
    %1361 = vmatprep.subr.bf16.mxu0 %v1290
    %1362 = vmatpush1.bf16.msra.mxu0 %v1289
    %1363 = vmatprep.subr.bf16.mxu0 %v1286
    %1364 = vmatpush1.bf16.msra.mxu0 %v1285
    %1365 = vmatprep.subr.bf16.mxu0 0
    %1366 = vmatpush2.bf16.msra.mxu0 0
    %1367 = vmatprep.subr.bf16.mxu0 0
    %1368 = vmatpush2.bf16.msra.mxu0 0
    %1369 = vmatprep.subr.bf16.mxu0 0
    %1370 = vmatpush2.bf16.msra.mxu0 0
    %1371 = vmatprep.subr.bf16.mxu0 0
    %1372 = vmatpush2.bf16.msra.mxu0 0
    %1373 = vmatprep.subr.bf16.mxu0 0
    %1374 = vmatpush2.bf16.msra.mxu0 0
    %1375 = vmatprep.subr.bf16.mxu0 0
    %1376 = vmatpush2.bf16.msra.mxu0 0
    %1377 = vmatprep.subr.bf16.mxu0 0
    %1378 = vmatpush2.bf16.msra.mxu0 0
    %1379 = vmatprep.subr.bf16.mxu0 0
    %1380 = vmatpush2.bf16.msra.mxu0 0
    %1381 = vmatprep.mubr.bf16.mxu0 0
    %1382 = vmatmul.mubr.bf16.gmra.mxu0 %v1154
    %v1383 = vpop.f32.mrf.mxu0
    %v1384 = vadd.f32 0.0, %v1383
    %v1385 = vpop.f32.mrf.mxu0
    %v1386 = vadd.f32 0.0, %v1385
    %v1387 = vpop.f32.mrf.mxu0
    %v1388 = vpop.f32.mrf.mxu0
    %1389 = vdwg.mxu0
    %1390 = vmatprep.subr.bf16.mxu0 %v1316
    %1391 = vmatpush1.bf16.msra.mxu0 %v1315
    %1392 = vmatprep.subr.bf16.mxu0 %v1312
    %1393 = vmatpush1.bf16.msra.mxu0 %v1311
    %1394 = vmatprep.subr.bf16.mxu0 %v1308
    %1395 = vmatpush1.bf16.msra.mxu0 %v1307
    %1396 = vmatprep.subr.bf16.mxu0 %v1304
    %1397 = vmatpush1.bf16.msra.mxu0 %v1303
    %1398 = vmatprep.subr.bf16.mxu0 %v1300
    %1399 = vmatpush1.bf16.msra.mxu0 %v1299
    %1400 = vmatprep.subr.bf16.mxu0 %v1296
    %1401 = vmatpush1.bf16.msra.mxu0 %v1295
    %1402 = vmatprep.subr.bf16.mxu0 %v1292
    %1403 = vmatpush1.bf16.msra.mxu0 %v1291
    %1404 = vmatprep.subr.bf16.mxu0 %v1288
    %1405 = vmatpush1.bf16.msra.mxu0 %v1287
    %1406 = vmatprep.subr.bf16.mxu0 0
    %1407 = vmatpush2.bf16.msra.mxu0 0
    %1408 = vmatprep.subr.bf16.mxu0 0
    %1409 = vmatpush2.bf16.msra.mxu0 0
    %1410 = vmatprep.subr.bf16.mxu0 0
    %1411 = vmatpush2.bf16.msra.mxu0 0
    %1412 = vmatprep.subr.bf16.mxu0 0
    %1413 = vmatpush2.bf16.msra.mxu0 0
    %1414 = vmatprep.subr.bf16.mxu0 0
    %1415 = vmatpush2.bf16.msra.mxu0 0
    %1416 = vmatprep.subr.bf16.mxu0 0
    %1417 = vmatpush2.bf16.msra.mxu0 0
    %1418 = vmatprep.subr.bf16.mxu0 0
    %1419 = vmatpush2.bf16.msra.mxu0 0
    %1420 = vmatprep.subr.bf16.mxu0 0
    %1421 = vmatpush2.bf16.msra.mxu0 0
    %1422 = vmatprep.mubr.bf16.mxu0 0
    %1423 = vmatmul.mubr.bf16.gmra.mxu0 %v1154
    %v1424 = vpop.f32.mrf.mxu0
    %v1425 = vadd.f32 0.0, %v1424
    %v1426 = vpop.f32.mrf.mxu0
    %v1427 = vadd.f32 0.0, %v1426
    %v1428 = vpop.f32.mrf.mxu0
    %v1429 = vpop.f32.mrf.mxu0
    %1430 = vdwg.mxu0
    %s1431 = scalar_lea.vmem [#allocation3], 64
    %v1432 = vld [vmem:[%s1431] sm:$0xff]
    %v1433 = vld [vmem:[%s1431 + $0x8] sm:$0xff]
    %v1434 = vld [vmem:[%s1431 + $0x10] sm:$0xff]
    %v1435 = vld [vmem:[%s1431 + $0x18] sm:$0xff]
    %v1436 = vadd.f32 %v1432, %v1384
    %v1437 = vadd.f32 %v1433, %v1386
    %v1438 = vadd.f32 %v1434, %v1425
    %v1439 = vadd.f32 %v1435, %v1427
    %v1440 = vxor.u32 %v1436, 2147483648
    %v1441 = vmul.f32 %v1440, 1.442695
    %v1442 = vpow.pop %v1441
    %v1443 = vadd.f32 %v1442, 1.0
    %v1444 = vrcp.pop %v1443
    %v1445 = vmul.f32 1.0, %v1444
    %v1446 = vxor.u32 %v1437, 2147483648
    %v1447 = vmul.f32 %v1446, 1.442695
    %v1448 = vpow.pop %v1447
    %v1449 = vadd.f32 %v1448, 1.0
    %v1450 = vrcp.pop %v1449
    %v1451 = vmul.f32 1.0, %v1450
    %v1452 = vtanh.pop %v1438
    %v1453 = vxor.u32 %v1439, 2147483648
    %v1454 = vmul.f32 %v1453, 1.442695
    %v1455 = vpow.pop %v1454
    %v1456 = vadd.f32 %v1455, 1.0
    %v1457 = vrcp.pop %v1456
    %v1458 = vmul.f32 1.0, %v1457
    %v1459 = vmul.f32 %v1451, %v1151
    %v1460 = vmul.f32 %v1445, %v1452
    %v1461 = vadd.f32 %v1459, %v1460
    %v1462 = vtanh.pop %v1461
    %v1463 = vmul.f32 %v1458, %v1462
    %v1464 = vpack.c.bf16 %v1463, %v1463
    %s1465 = scalar_lea.vmem [#allocation2], 8
    %1466 = vst [vmem:[%s1465] sm:$0xf] %v1464
    %v1467 = vld [vmem:[#allocation9] sm:$0xff]
    %v1468 = vld [vmem:[#allocation9 + $0x8] sm:$0xff]
    %v1469 = vld [vmem:[#allocation9 + $0x10] sm:$0xff]
    %v1470 = vld [vmem:[#allocation9 + $0x18] sm:$0xff]
    %v1471 = vld [vmem:[#allocation9 + $0x20] sm:$0xff]
    %v1472 = vld [vmem:[#allocation9 + $0x28] sm:$0xff]
    %v1473 = vld [vmem:[#allocation9 + $0x30] sm:$0xff]
    %v1474 = vld [vmem:[#allocation9 + $0x38] sm:$0xff]
    %v1475 = vld [vmem:[#allocation9 + $0x40] sm:$0xff]
    %v1476 = vld [vmem:[#allocation9 + $0x48] sm:$0xff]
    %v1477 = vld [vmem:[#allocation9 + $0x50] sm:$0xff]
    %v1478 = vld [vmem:[#allocation9 + $0x58] sm:$0xff]
    %v1479 = vld [vmem:[#allocation9 + $0x60] sm:$0xff]
    %v1480 = vld [vmem:[#allocation9 + $0x68] sm:$0xff]
    %v1481 = vld [vmem:[#allocation9 + $0x70] sm:$0xff]
    %v1482 = vld [vmem:[#allocation9 + $0x78] sm:$0xff]
    %v1483 = vld [vmem:[#allocation9 + $0x80] sm:$0xff]
    %v1484 = vld [vmem:[#allocation9 + $0x88] sm:$0xff]
    %v1485 = vld [vmem:[#allocation9 + $0x90] sm:$0xff]
    %v1486 = vld [vmem:[#allocation9 + $0x98] sm:$0xff]
    %v1487 = vld [vmem:[#allocation9 + $0xa0] sm:$0xff]
    %v1488 = vld [vmem:[#allocation9 + $0xa8] sm:$0xff]
    %v1489 = vld [vmem:[#allocation9 + $0xb0] sm:$0xff]
    %v1490 = vld [vmem:[#allocation9 + $0xb8] sm:$0xff]
    %v1491 = vld [vmem:[#allocation9 + $0xc0] sm:$0xff]
    %v1492 = vld [vmem:[#allocation9 + $0xc8] sm:$0xff]
    %v1493 = vld [vmem:[#allocation9 + $0xd0] sm:$0xff]
    %v1494 = vld [vmem:[#allocation9 + $0xd8] sm:$0xff]
    %v1495 = vld [vmem:[#allocation9 + $0xe0] sm:$0xff]
    %v1496 = vld [vmem:[#allocation9 + $0xe8] sm:$0xff]
    %v1497 = vld [vmem:[#allocation9 + $0xf0] sm:$0xff]
    %v1498 = vld [vmem:[#allocation9 + $0xf8] sm:$0xff]
    %v1531 = vunpack.c.l.b16 %v1467
    %v1532 = vunpack.c.h.b16 %v1467
    %v1533 = vunpack.c.l.b16 %v1468
    %v1534 = vunpack.c.h.b16 %v1468
    %v1535 = vunpack.c.l.b16 %v1469
    %v1536 = vunpack.c.h.b16 %v1469
    %v1537 = vunpack.c.l.b16 %v1470
    %v1538 = vunpack.c.h.b16 %v1470
    %v1539 = vunpack.c.l.b16 %v1471
    %v1540 = vunpack.c.h.b16 %v1471
    %v1541 = vunpack.c.l.b16 %v1472
    %v1542 = vunpack.c.h.b16 %v1472
    %v1543 = vunpack.c.l.b16 %v1473
    %v1544 = vunpack.c.h.b16 %v1473
    %v1545 = vunpack.c.l.b16 %v1474
    %v1546 = vunpack.c.h.b16 %v1474
    %v1547 = vunpack.c.l.b16 %v1475
    %v1548 = vunpack.c.h.b16 %v1475
    %v1549 = vunpack.c.l.b16 %v1476
    %v1550 = vunpack.c.h.b16 %v1476
    %v1551 = vunpack.c.l.b16 %v1477
    %v1552 = vunpack.c.h.b16 %v1477
    %v1553 = vunpack.c.l.b16 %v1478
    %v1554 = vunpack.c.h.b16 %v1478
    %v1555 = vunpack.c.l.b16 %v1479
    %v1556 = vunpack.c.h.b16 %v1479
    %v1557 = vunpack.c.l.b16 %v1480
    %v1558 = vunpack.c.h.b16 %v1480
    %v1559 = vunpack.c.l.b16 %v1481
    %v1560 = vunpack.c.h.b16 %v1481
    %v1561 = vunpack.c.l.b16 %v1482
    %v1562 = vunpack.c.h.b16 %v1482
    %v1563 = vunpack.c.l.b16 %v1483
    %v1564 = vunpack.c.h.b16 %v1483
    %v1565 = vunpack.c.l.b16 %v1484
    %v1566 = vunpack.c.h.b16 %v1484
    %v1567 = vunpack.c.l.b16 %v1485
    %v1568 = vunpack.c.h.b16 %v1485
    %v1569 = vunpack.c.l.b16 %v1486
    %v1570 = vunpack.c.h.b16 %v1486
    %v1571 = vunpack.c.l.b16 %v1487
    %v1572 = vunpack.c.h.b16 %v1487
    %v1573 = vunpack.c.l.b16 %v1488
    %v1574 = vunpack.c.h.b16 %v1488
    %v1575 = vunpack.c.l.b16 %v1489
    %v1576 = vunpack.c.h.b16 %v1489
    %v1577 = vunpack.c.l.b16 %v1490
    %v1578 = vunpack.c.h.b16 %v1490
    %v1579 = vunpack.c.l.b16 %v1491
    %v1580 = vunpack.c.h.b16 %v1491
    %v1581 = vunpack.c.l.b16 %v1492
    %v1582 = vunpack.c.h.b16 %v1492
    %v1583 = vunpack.c.l.b16 %v1493
    %v1584 = vunpack.c.h.b16 %v1493
    %v1585 = vunpack.c.l.b16 %v1494
    %v1586 = vunpack.c.h.b16 %v1494
    %v1587 = vunpack.c.l.b16 %v1495
    %v1588 = vunpack.c.h.b16 %v1495
    %v1589 = vunpack.c.l.b16 %v1496
    %v1590 = vunpack.c.h.b16 %v1496
    %v1591 = vunpack.c.l.b16 %v1497
    %v1592 = vunpack.c.h.b16 %v1497
    %v1593 = vunpack.c.l.b16 %v1498
    %v1594 = vunpack.c.h.b16 %v1498
    %v1595 = vpack.c.b16 %v1535, %v1531
    %v1596 = vpack.c.b16 %v1536, %v1532
    %v1597 = vpack.c.b16 %v1537, %v1533
    %v1598 = vpack.c.b16 %v1538, %v1534
    %v1599 = vpack.c.b16 %v1543, %v1539
    %v1600 = vpack.c.b16 %v1544, %v1540
    %v1601 = vpack.c.b16 %v1545, %v1541
    %v1602 = vpack.c.b16 %v1546, %v1542
    %v1603 = vpack.c.b16 %v1551, %v1547
    %v1604 = vpack.c.b16 %v1552, %v1548
    %v1605 = vpack.c.b16 %v1553, %v1549
    %v1606 = vpack.c.b16 %v1554, %v1550
    %v1607 = vpack.c.b16 %v1559, %v1555
    %v1608 = vpack.c.b16 %v1560, %v1556
    %v1609 = vpack.c.b16 %v1561, %v1557
    %v1610 = vpack.c.b16 %v1562, %v1558
    %v1611 = vpack.c.b16 %v1567, %v1563
    %v1612 = vpack.c.b16 %v1568, %v1564
    %v1613 = vpack.c.b16 %v1569, %v1565
    %v1614 = vpack.c.b16 %v1570, %v1566
    %v1615 = vpack.c.b16 %v1575, %v1571
    %v1616 = vpack.c.b16 %v1576, %v1572
    %v1617 = vpack.c.b16 %v1577, %v1573
    %v1618 = vpack.c.b16 %v1578, %v1574
    %v1619 = vpack.c.b16 %v1583, %v1579
    %v1620 = vpack.c.b16 %v1584, %v1580
    %v1621 = vpack.c.b16 %v1585, %v1581
    %v1622 = vpack.c.b16 %v1586, %v1582
    %v1623 = vpack.c.b16 %v1591, %v1587
    %v1624 = vpack.c.b16 %v1592, %v1588
    %v1625 = vpack.c.b16 %v1593, %v1589
    %v1626 = vpack.c.b16 %v1594, %v1590
    %1659 = vmatprep.subr.bf16.mxu0 %v1624
    %1660 = vmatpush1.bf16.msra.mxu0 %v1623
    %1661 = vmatprep.subr.bf16.mxu0 %v1620
    %1662 = vmatpush1.bf16.msra.mxu0 %v1619
    %1663 = vmatprep.subr.bf16.mxu0 %v1616
    %1664 = vmatpush1.bf16.msra.mxu0 %v1615
    %1665 = vmatprep.subr.bf16.mxu0 %v1612
    %1666 = vmatpush1.bf16.msra.mxu0 %v1611
    %1667 = vmatprep.subr.bf16.mxu0 %v1608
    %1668 = vmatpush1.bf16.msra.mxu0 %v1607
    %1669 = vmatprep.subr.bf16.mxu0 %v1604
    %1670 = vmatpush1.bf16.msra.mxu0 %v1603
    %1671 = vmatprep.subr.bf16.mxu0 %v1600
    %1672 = vmatpush1.bf16.msra.mxu0 %v1599
    %1673 = vmatprep.subr.bf16.mxu0 %v1596
    %1674 = vmatpush1.bf16.msra.mxu0 %v1595
    %1675 = vmatprep.subr.bf16.mxu0 0
    %1676 = vmatpush2.bf16.msra.mxu0 0
    %1677 = vmatprep.subr.bf16.mxu0 0
    %1678 = vmatpush2.bf16.msra.mxu0 0
    %1679 = vmatprep.subr.bf16.mxu0 0
    %1680 = vmatpush2.bf16.msra.mxu0 0
    %1681 = vmatprep.subr.bf16.mxu0 0
    %1682 = vmatpush2.bf16.msra.mxu0 0
    %1683 = vmatprep.subr.bf16.mxu0 0
    %1684 = vmatpush2.bf16.msra.mxu0 0
    %1685 = vmatprep.subr.bf16.mxu0 0
    %1686 = vmatpush2.bf16.msra.mxu0 0
    %1687 = vmatprep.subr.bf16.mxu0 0
    %1688 = vmatpush2.bf16.msra.mxu0 0
    %1689 = vmatprep.subr.bf16.mxu0 0
    %1690 = vmatpush2.bf16.msra.mxu0 0
    %1691 = vmatprep.mubr.bf16.mxu0 0
    %1692 = vmatmul.mubr.bf16.gmra.mxu0 %v1464
    %v1693 = vpop.f32.mrf.mxu0
    %v1694 = vadd.f32 0.0, %v1693
    %v1695 = vpop.f32.mrf.mxu0
    %v1696 = vadd.f32 0.0, %v1695
    %v1697 = vpop.f32.mrf.mxu0
    %v1698 = vpop.f32.mrf.mxu0
    %1699 = vdwg.mxu0
    %1700 = vmatprep.subr.bf16.mxu0 %v1626
    %1701 = vmatpush1.bf16.msra.mxu0 %v1625
    %1702 = vmatprep.subr.bf16.mxu0 %v1622
    %1703 = vmatpush1.bf16.msra.mxu0 %v1621
    %1704 = vmatprep.subr.bf16.mxu0 %v1618
    %1705 = vmatpush1.bf16.msra.mxu0 %v1617
    %1706 = vmatprep.subr.bf16.mxu0 %v1614
    %1707 = vmatpush1.bf16.msra.mxu0 %v1613
    %1708 = vmatprep.subr.bf16.mxu0 %v1610
    %1709 = vmatpush1.bf16.msra.mxu0 %v1609
    %1710 = vmatprep.subr.bf16.mxu0 %v1606
    %1711 = vmatpush1.bf16.msra.mxu0 %v1605
    %1712 = vmatprep.subr.bf16.mxu0 %v1602
    %1713 = vmatpush1.bf16.msra.mxu0 %v1601
    %1714 = vmatprep.subr.bf16.mxu0 %v1598
    %1715 = vmatpush1.bf16.msra.mxu0 %v1597
    %1716 = vmatprep.subr.bf16.mxu0 0
    %1717 = vmatpush2.bf16.msra.mxu0 0
    %1718 = vmatprep.subr.bf16.mxu0 0
    %1719 = vmatpush2.bf16.msra.mxu0 0
    %1720 = vmatprep.subr.bf16.mxu0 0
    %1721 = vmatpush2.bf16.msra.mxu0 0
    %1722 = vmatprep.subr.bf16.mxu0 0
    %1723 = vmatpush2.bf16.msra.mxu0 0
    %1724 = vmatprep.subr.bf16.mxu0 0
    %1725 = vmatpush2.bf16.msra.mxu0 0
    %1726 = vmatprep.subr.bf16.mxu0 0
    %1727 = vmatpush2.bf16.msra.mxu0 0
    %1728 = vmatprep.subr.bf16.mxu0 0
    %1729 = vmatpush2.bf16.msra.mxu0 0
    %1730 = vmatprep.subr.bf16.mxu0 0
    %1731 = vmatpush2.bf16.msra.mxu0 0
    %1732 = vmatprep.mubr.bf16.mxu0 0
    %1733 = vmatmul.mubr.bf16.gmra.mxu0 %v1464
    %v1734 = vpop.f32.mrf.mxu0
    %v1735 = vadd.f32 0.0, %v1734
    %v1736 = vpop.f32.mrf.mxu0
    %v1737 = vadd.f32 0.0, %v1736
    %v1738 = vpop.f32.mrf.mxu0
    %v1739 = vpop.f32.mrf.mxu0
    %1740 = vdwg.mxu0
    %s1741 = scalar_lea.vmem [#allocation3], 96
    %v1742 = vld [vmem:[%s1741] sm:$0xff]
    %v1743 = vld [vmem:[%s1741 + $0x8] sm:$0xff]
    %v1744 = vld [vmem:[%s1741 + $0x10] sm:$0xff]
    %v1745 = vld [vmem:[%s1741 + $0x18] sm:$0xff]
    %v1746 = vadd.f32 %v1742, %v1694
    %v1747 = vadd.f32 %v1743, %v1696
    %v1748 = vadd.f32 %v1744, %v1735
    %v1749 = vadd.f32 %v1745, %v1737
    %v1750 = vxor.u32 %v1746, 2147483648
    %v1751 = vmul.f32 %v1750, 1.442695
    %v1752 = vpow.pop %v1751
    %v1753 = vadd.f32 %v1752, 1.0
    %v1754 = vrcp.pop %v1753
    %v1755 = vmul.f32 1.0, %v1754
    %v1756 = vxor.u32 %v1747, 2147483648
    %v1757 = vmul.f32 %v1756, 1.442695
    %v1758 = vpow.pop %v1757
    %v1759 = vadd.f32 %v1758, 1.0
    %v1760 = vrcp.pop %v1759
    %v1761 = vmul.f32 1.0, %v1760
    %v1762 = vtanh.pop %v1748
    %v1763 = vxor.u32 %v1749, 2147483648
    %v1764 = vmul.f32 %v1763, 1.442695
    %v1765 = vpow.pop %v1764
    %v1766 = vadd.f32 %v1765, 1.0
    %v1767 = vrcp.pop %v1766
    %v1768 = vmul.f32 1.0, %v1767
    %v1769 = vmul.f32 %v1761, %v1461
    %v1770 = vmul.f32 %v1755, %v1762
    %v1771 = vadd.f32 %v1769, %v1770
    %v1772 = vtanh.pop %v1771
    %v1773 = vmul.f32 %v1768, %v1772
    %v1774 = vpack.c.bf16 %v1773, %v1773
    %s1775 = scalar_lea.vmem [#allocation2], 12
    %1776 = vst [vmem:[%s1775] sm:$0xf] %v1774
    %v1777 = vld [vmem:[#allocation9] sm:$0xff]
    %v1778 = vld [vmem:[#allocation9 + $0x8] sm:$0xff]
    %v1779 = vld [vmem:[#allocation9 + $0x10] sm:$0xff]
    %v1780 = vld [vmem:[#allocation9 + $0x18] sm:$0xff]
    %v1781 = vld [vmem:[#allocation9 + $0x20] sm:$0xff]
    %v1782 = vld [vmem:[#allocation9 + $0x28] sm:$0xff]
    %v1783 = vld [vmem:[#allocation9 + $0x30] sm:$0xff]
    %v1784 = vld [vmem:[#allocation9 + $0x38] sm:$0xff]
    %v1785 = vld [vmem:[#allocation9 + $0x40] sm:$0xff]
    %v1786 = vld [vmem:[#allocation9 + $0x48] sm:$0xff]
    %v1787 = vld [vmem:[#allocation9 + $0x50] sm:$0xff]
    %v1788 = vld [vmem:[#allocation9 + $0x58] sm:$0xff]
    %v1789 = vld [vmem:[#allocation9 + $0x60] sm:$0xff]
    %v1790 = vld [vmem:[#allocation9 + $0x68] sm:$0xff]
    %v1791 = vld [vmem:[#allocation9 + $0x70] sm:$0xff]
    %v1792 = vld [vmem:[#allocation9 + $0x78] sm:$0xff]
    %v1793 = vld [vmem:[#allocation9 + $0x80] sm:$0xff]
    %v1794 = vld [vmem:[#allocation9 + $0x88] sm:$0xff]
    %v1795 = vld [vmem:[#allocation9 + $0x90] sm:$0xff]
    %v1796 = vld [vmem:[#allocation9 + $0x98] sm:$0xff]
    %v1797 = vld [vmem:[#allocation9 + $0xa0] sm:$0xff]
    %v1798 = vld [vmem:[#allocation9 + $0xa8] sm:$0xff]
    %v1799 = vld [vmem:[#allocation9 + $0xb0] sm:$0xff]
    %v1800 = vld [vmem:[#allocation9 + $0xb8] sm:$0xff]
    %v1801 = vld [vmem:[#allocation9 + $0xc0] sm:$0xff]
    %v1802 = vld [vmem:[#allocation9 + $0xc8] sm:$0xff]
    %v1803 = vld [vmem:[#allocation9 + $0xd0] sm:$0xff]
    %v1804 = vld [vmem:[#allocation9 + $0xd8] sm:$0xff]
    %v1805 = vld [vmem:[#allocation9 + $0xe0] sm:$0xff]
    %v1806 = vld [vmem:[#allocation9 + $0xe8] sm:$0xff]
    %v1807 = vld [vmem:[#allocation9 + $0xf0] sm:$0xff]
    %v1808 = vld [vmem:[#allocation9 + $0xf8] sm:$0xff]
    %v1841 = vunpack.c.l.b16 %v1777
    %v1842 = vunpack.c.h.b16 %v1777
    %v1843 = vunpack.c.l.b16 %v1778
    %v1844 = vunpack.c.h.b16 %v1778
    %v1845 = vunpack.c.l.b16 %v1779
    %v1846 = vunpack.c.h.b16 %v1779
    %v1847 = vunpack.c.l.b16 %v1780
    %v1848 = vunpack.c.h.b16 %v1780
    %v1849 = vunpack.c.l.b16 %v1781
    %v1850 = vunpack.c.h.b16 %v1781
    %v1851 = vunpack.c.l.b16 %v1782
    %v1852 = vunpack.c.h.b16 %v1782
    %v1853 = vunpack.c.l.b16 %v1783
    %v1854 = vunpack.c.h.b16 %v1783
    %v1855 = vunpack.c.l.b16 %v1784
    %v1856 = vunpack.c.h.b16 %v1784
    %v1857 = vunpack.c.l.b16 %v1785
    %v1858 = vunpack.c.h.b16 %v1785
    %v1859 = vunpack.c.l.b16 %v1786
    %v1860 = vunpack.c.h.b16 %v1786
    %v1861 = vunpack.c.l.b16 %v1787
    %v1862 = vunpack.c.h.b16 %v1787
    %v1863 = vunpack.c.l.b16 %v1788
    %v1864 = vunpack.c.h.b16 %v1788
    %v1865 = vunpack.c.l.b16 %v1789
    %v1866 = vunpack.c.h.b16 %v1789
    %v1867 = vunpack.c.l.b16 %v1790
    %v1868 = vunpack.c.h.b16 %v1790
    %v1869 = vunpack.c.l.b16 %v1791
    %v1870 = vunpack.c.h.b16 %v1791
    %v1871 = vunpack.c.l.b16 %v1792
    %v1872 = vunpack.c.h.b16 %v1792
    %v1873 = vunpack.c.l.b16 %v1793
    %v1874 = vunpack.c.h.b16 %v1793
    %v1875 = vunpack.c.l.b16 %v1794
    %v1876 = vunpack.c.h.b16 %v1794
    %v1877 = vunpack.c.l.b16 %v1795
    %v1878 = vunpack.c.h.b16 %v1795
    %v1879 = vunpack.c.l.b16 %v1796
    %v1880 = vunpack.c.h.b16 %v1796
    %v1881 = vunpack.c.l.b16 %v1797
    %v1882 = vunpack.c.h.b16 %v1797
    %v1883 = vunpack.c.l.b16 %v1798
    %v1884 = vunpack.c.h.b16 %v1798
    %v1885 = vunpack.c.l.b16 %v1799
    %v1886 = vunpack.c.h.b16 %v1799
    %v1887 = vunpack.c.l.b16 %v1800
    %v1888 = vunpack.c.h.b16 %v1800
    %v1889 = vunpack.c.l.b16 %v1801
    %v1890 = vunpack.c.h.b16 %v1801
    %v1891 = vunpack.c.l.b16 %v1802
    %v1892 = vunpack.c.h.b16 %v1802
    %v1893 = vunpack.c.l.b16 %v1803
    %v1894 = vunpack.c.h.b16 %v1803
    %v1895 = vunpack.c.l.b16 %v1804
    %v1896 = vunpack.c.h.b16 %v1804
    %v1897 = vunpack.c.l.b16 %v1805
    %v1898 = vunpack.c.h.b16 %v1805
    %v1899 = vunpack.c.l.b16 %v1806
    %v1900 = vunpack.c.h.b16 %v1806
    %v1901 = vunpack.c.l.b16 %v1807
    %v1902 = vunpack.c.h.b16 %v1807
    %v1903 = vunpack.c.l.b16 %v1808
    %v1904 = vunpack.c.h.b16 %v1808
    %v1905 = vpack.c.b16 %v1845, %v1841
    %v1906 = vpack.c.b16 %v1846, %v1842
    %v1907 = vpack.c.b16 %v1847, %v1843
    %v1908 = vpack.c.b16 %v1848, %v1844
    %v1909 = vpack.c.b16 %v1853, %v1849
    %v1910 = vpack.c.b16 %v1854, %v1850
    %v1911 = vpack.c.b16 %v1855, %v1851
    %v1912 = vpack.c.b16 %v1856, %v1852
    %v1913 = vpack.c.b16 %v1861, %v1857
    %v1914 = vpack.c.b16 %v1862, %v1858
    %v1915 = vpack.c.b16 %v1863, %v1859
    %v1916 = vpack.c.b16 %v1864, %v1860
    %v1917 = vpack.c.b16 %v1869, %v1865
    %v1918 = vpack.c.b16 %v1870, %v1866
    %v1919 = vpack.c.b16 %v1871, %v1867
    %v1920 = vpack.c.b16 %v1872, %v1868
    %v1921 = vpack.c.b16 %v1877, %v1873
    %v1922 = vpack.c.b16 %v1878, %v1874
    %v1923 = vpack.c.b16 %v1879, %v1875
    %v1924 = vpack.c.b16 %v1880, %v1876
    %v1925 = vpack.c.b16 %v1885, %v1881
    %v1926 = vpack.c.b16 %v1886, %v1882
    %v1927 = vpack.c.b16 %v1887, %v1883
    %v1928 = vpack.c.b16 %v1888, %v1884
    %v1929 = vpack.c.b16 %v1893, %v1889
    %v1930 = vpack.c.b16 %v1894, %v1890
    %v1931 = vpack.c.b16 %v1895, %v1891
    %v1932 = vpack.c.b16 %v1896, %v1892
    %v1933 = vpack.c.b16 %v1901, %v1897
    %v1934 = vpack.c.b16 %v1902, %v1898
    %v1935 = vpack.c.b16 %v1903, %v1899
    %v1936 = vpack.c.b16 %v1904, %v1900
    %1969 = vmatprep.subr.bf16.mxu0 %v1934
    %1970 = vmatpush1.bf16.msra.mxu0 %v1933
    %1971 = vmatprep.subr.bf16.mxu0 %v1930
    %1972 = vmatpush1.bf16.msra.mxu0 %v1929
    %1973 = vmatprep.subr.bf16.mxu0 %v1926
    %1974 = vmatpush1.bf16.msra.mxu0 %v1925
    %1975 = vmatprep.subr.bf16.mxu0 %v1922
    %1976 = vmatpush1.bf16.msra.mxu0 %v1921
    %1977 = vmatprep.subr.bf16.mxu0 %v1918
    %1978 = vmatpush1.bf16.msra.mxu0 %v1917
    %1979 = vmatprep.subr.bf16.mxu0 %v1914
    %1980 = vmatpush1.bf16.msra.mxu0 %v1913
    %1981 = vmatprep.subr.bf16.mxu0 %v1910
    %1982 = vmatpush1.bf16.msra.mxu0 %v1909
    %1983 = vmatprep.subr.bf16.mxu0 %v1906
    %1984 = vmatpush1.bf16.msra.mxu0 %v1905
    %1985 = vmatprep.subr.bf16.mxu0 0
    %1986 = vmatpush2.bf16.msra.mxu0 0
    %1987 = vmatprep.subr.bf16.mxu0 0
    %1988 = vmatpush2.bf16.msra.mxu0 0
    %1989 = vmatprep.subr.bf16.mxu0 0
    %1990 = vmatpush2.bf16.msra.mxu0 0
    %1991 = vmatprep.subr.bf16.mxu0 0
    %1992 = vmatpush2.bf16.msra.mxu0 0
    %1993 = vmatprep.subr.bf16.mxu0 0
    %1994 = vmatpush2.bf16.msra.mxu0 0
    %1995 = vmatprep.subr.bf16.mxu0 0
    %1996 = vmatpush2.bf16.msra.mxu0 0
    %1997 = vmatprep.subr.bf16.mxu0 0
    %1998 = vmatpush2.bf16.msra.mxu0 0
    %1999 = vmatprep.subr.bf16.mxu0 0
    %2000 = vmatpush2.bf16.msra.mxu0 0
    %2001 = vmatprep.mubr.bf16.mxu0 0
    %2002 = vmatmul.mubr.bf16.gmra.mxu0 %v1774
    %v2003 = vpop.f32.mrf.mxu0
    %v2004 = vadd.f32 0.0, %v2003
    %v2005 = vpop.f32.mrf.mxu0
    %v2006 = vadd.f32 0.0, %v2005
    %v2007 = vpop.f32.mrf.mxu0
    %v2008 = vpop.f32.mrf.mxu0
    %2009 = vdwg.mxu0
    %2010 = vmatprep.subr.bf16.mxu0 %v1936
    %2011 = vmatpush1.bf16.msra.mxu0 %v1935
    %2012 = vmatprep.subr.bf16.mxu0 %v1932
    %2013 = vmatpush1.bf16.msra.mxu0 %v1931
    %2014 = vmatprep.subr.bf16.mxu0 %v1928
    %2015 = vmatpush1.bf16.msra.mxu0 %v1927
    %2016 = vmatprep.subr.bf16.mxu0 %v1924
    %2017 = vmatpush1.bf16.msra.mxu0 %v1923
    %2018 = vmatprep.subr.bf16.mxu0 %v1920
    %2019 = vmatpush1.bf16.msra.mxu0 %v1919
    %2020 = vmatprep.subr.bf16.mxu0 %v1916
    %2021 = vmatpush1.bf16.msra.mxu0 %v1915
    %2022 = vmatprep.subr.bf16.mxu0 %v1912
    %2023 = vmatpush1.bf16.msra.mxu0 %v1911
    %2024 = vmatprep.subr.bf16.mxu0 %v1908
    %2025 = vmatpush1.bf16.msra.mxu0 %v1907
    %2026 = vmatprep.subr.bf16.mxu0 0
    %2027 = vmatpush2.bf16.msra.mxu0 0
    %2028 = vmatprep.subr.bf16.mxu0 0
    %2029 = vmatpush2.bf16.msra.mxu0 0
    %2030 = vmatprep.subr.bf16.mxu0 0
    %2031 = vmatpush2.bf16.msra.mxu0 0
    %2032 = vmatprep.subr.bf16.mxu0 0
    %2033 = vmatpush2.bf16.msra.mxu0 0
    %2034 = vmatprep.subr.bf16.mxu0 0
    %2035 = vmatpush2.bf16.msra.mxu0 0
    %2036 = vmatprep.subr.bf16.mxu0 0
    %2037 = vmatpush2.bf16.msra.mxu0 0
    %2038 = vmatprep.subr.bf16.mxu0 0
    %2039 = vmatpush2.bf16.msra.mxu0 0
    %2040 = vmatprep.subr.bf16.mxu0 0
    %2041 = vmatpush2.bf16.msra.mxu0 0
    %2042 = vmatprep.mubr.bf16.mxu0 0
    %2043 = vmatmul.mubr.bf16.gmra.mxu0 %v1774
    %v2044 = vpop.f32.mrf.mxu0
    %v2045 = vadd.f32 0.0, %v2044
    %v2046 = vpop.f32.mrf.mxu0
    %v2047 = vadd.f32 0.0, %v2046
    %v2048 = vpop.f32.mrf.mxu0
    %v2049 = vpop.f32.mrf.mxu0
    %2050 = vdwg.mxu0
    %s2051 = scalar_lea.vmem [#allocation3], 128
    %v2052 = vld [vmem:[%s2051] sm:$0xff]
    %v2053 = vld [vmem:[%s2051 + $0x8] sm:$0xff]
    %v2054 = vld [vmem:[%s2051 + $0x10] sm:$0xff]
    %v2055 = vld [vmem:[%s2051 + $0x18] sm:$0xff]
    %v2056 = vadd.f32 %v2052, %v2004
    %v2057 = vadd.f32 %v2053, %v2006
    %v2058 = vadd.f32 %v2054, %v2045
    %v2059 = vadd.f32 %v2055, %v2047
    %v2060 = vxor.u32 %v2056, 2147483648
    %v2061 = vmul.f32 %v2060, 1.442695
    %v2062 = vpow.pop %v2061
    %v2063 = vadd.f32 %v2062, 1.0
    %v2064 = vrcp.pop %v2063
    %v2065 = vmul.f32 1.0, %v2064
    %v2066 = vxor.u32 %v2057, 2147483648
    %v2067 = vmul.f32 %v2066, 1.442695
    %v2068 = vpow.pop %v2067
    %v2069 = vadd.f32 %v2068, 1.0
    %v2070 = vrcp.pop %v2069
    %v2071 = vmul.f32 1.0, %v2070
    %v2072 = vtanh.pop %v2058
    %v2073 = vxor.u32 %v2059, 2147483648
    %v2074 = vmul.f32 %v2073, 1.442695
    %v2075 = vpow.pop %v2074
    %v2076 = vadd.f32 %v2075, 1.0
    %v2077 = vrcp.pop %v2076
    %v2078 = vmul.f32 1.0, %v2077
    %v2079 = vmul.f32 %v2071, %v1771
    %v2080 = vmul.f32 %v2065, %v2072
    %v2081 = vadd.f32 %v2079, %v2080
    %v2082 = vtanh.pop %v2081
    %v2083 = vmul.f32 %v2078, %v2082
    %v2084 = vpack.c.bf16 %v2083, %v2083
    %s2085 = scalar_lea.vmem [#allocation2], 16
    %2086 = vst [vmem:[%s2085] sm:$0xf] %v2084
    %v2087 = vld [vmem:[#allocation9] sm:$0xff]
    %v2088 = vld [vmem:[#allocation9 + $0x8] sm:$0xff]
    %v2089 = vld [vmem:[#allocation9 + $0x10] sm:$0xff]
    %v2090 = vld [vmem:[#allocation9 + $0x18] sm:$0xff]
    %v2091 = vld [vmem:[#allocation9 + $0x20] sm:$0xff]
    %v2092 = vld [vmem:[#allocation9 + $0x28] sm:$0xff]
    %v2093 = vld [vmem:[#allocation9 + $0x30] sm:$0xff]
    %v2094 = vld [vmem:[#allocation9 + $0x38] sm:$0xff]
    %v2095 = vld [vmem:[#allocation9 + $0x40] sm:$0xff]
    %v2096 = vld [vmem:[#allocation9 + $0x48] sm:$0xff]
    %v2097 = vld [vmem:[#allocation9 + $0x50] sm:$0xff]
    %v2098 = vld [vmem:[#allocation9 + $0x58] sm:$0xff]
    %v2099 = vld [vmem:[#allocation9 + $0x60] sm:$0xff]
    %v2100 = vld [vmem:[#allocation9 + $0x68] sm:$0xff]
    %v2101 = vld [vmem:[#allocation9 + $0x70] sm:$0xff]
    %v2102 = vld [vmem:[#allocation9 + $0x78] sm:$0xff]
    %v2103 = vld [vmem:[#allocation9 + $0x80] sm:$0xff]
    %v2104 = vld [vmem:[#allocation9 + $0x88] sm:$0xff]
    %v2105 = vld [vmem:[#allocation9 + $0x90] sm:$0xff]
    %v2106 = vld [vmem:[#allocation9 + $0x98] sm:$0xff]
    %v2107 = vld [vmem:[#allocation9 + $0xa0] sm:$0xff]
    %v2108 = vld [vmem:[#allocation9 + $0xa8] sm:$0xff]
    %v2109 = vld [vmem:[#allocation9 + $0xb0] sm:$0xff]
    %v2110 = vld [vmem:[#allocation9 + $0xb8] sm:$0xff]
    %v2111 = vld [vmem:[#allocation9 + $0xc0] sm:$0xff]
    %v2112 = vld [vmem:[#allocation9 + $0xc8] sm:$0xff]
    %v2113 = vld [vmem:[#allocation9 + $0xd0] sm:$0xff]
    %v2114 = vld [vmem:[#allocation9 + $0xd8] sm:$0xff]
    %v2115 = vld [vmem:[#allocation9 + $0xe0] sm:$0xff]
    %v2116 = vld [vmem:[#allocation9 + $0xe8] sm:$0xff]
    %v2117 = vld [vmem:[#allocation9 + $0xf0] sm:$0xff]
    %v2118 = vld [vmem:[#allocation9 + $0xf8] sm:$0xff]
    %v2151 = vunpack.c.l.b16 %v2087
    %v2152 = vunpack.c.h.b16 %v2087
    %v2153 = vunpack.c.l.b16 %v2088
    %v2154 = vunpack.c.h.b16 %v2088
    %v2155 = vunpack.c.l.b16 %v2089
    %v2156 = vunpack.c.h.b16 %v2089
    %v2157 = vunpack.c.l.b16 %v2090
    %v2158 = vunpack.c.h.b16 %v2090
    %v2159 = vunpack.c.l.b16 %v2091
    %v2160 = vunpack.c.h.b16 %v2091
    %v2161 = vunpack.c.l.b16 %v2092
    %v2162 = vunpack.c.h.b16 %v2092
    %v2163 = vunpack.c.l.b16 %v2093
    %v2164 = vunpack.c.h.b16 %v2093
    %v2165 = vunpack.c.l.b16 %v2094
    %v2166 = vunpack.c.h.b16 %v2094
    %v2167 = vunpack.c.l.b16 %v2095
    %v2168 = vunpack.c.h.b16 %v2095
    %v2169 = vunpack.c.l.b16 %v2096
    %v2170 = vunpack.c.h.b16 %v2096
    %v2171 = vunpack.c.l.b16 %v2097
    %v2172 = vunpack.c.h.b16 %v2097
    %v2173 = vunpack.c.l.b16 %v2098
    %v2174 = vunpack.c.h.b16 %v2098
    %v2175 = vunpack.c.l.b16 %v2099
    %v2176 = vunpack.c.h.b16 %v2099
    %v2177 = vunpack.c.l.b16 %v2100
    %v2178 = vunpack.c.h.b16 %v2100
    %v2179 = vunpack.c.l.b16 %v2101
    %v2180 = vunpack.c.h.b16 %v2101
    %v2181 = vunpack.c.l.b16 %v2102
    %v2182 = vunpack.c.h.b16 %v2102
    %v2183 = vunpack.c.l.b16 %v2103
    %v2184 = vunpack.c.h.b16 %v2103
    %v2185 = vunpack.c.l.b16 %v2104
    %v2186 = vunpack.c.h.b16 %v2104
    %v2187 = vunpack.c.l.b16 %v2105
    %v2188 = vunpack.c.h.b16 %v2105
    %v2189 = vunpack.c.l.b16 %v2106
    %v2190 = vunpack.c.h.b16 %v2106
    %v2191 = vunpack.c.l.b16 %v2107
    %v2192 = vunpack.c.h.b16 %v2107
    %v2193 = vunpack.c.l.b16 %v2108
    %v2194 = vunpack.c.h.b16 %v2108
    %v2195 = vunpack.c.l.b16 %v2109
    %v2196 = vunpack.c.h.b16 %v2109
    %v2197 = vunpack.c.l.b16 %v2110
    %v2198 = vunpack.c.h.b16 %v2110
    %v2199 = vunpack.c.l.b16 %v2111
    %v2200 = vunpack.c.h.b16 %v2111
    %v2201 = vunpack.c.l.b16 %v2112
    %v2202 = vunpack.c.h.b16 %v2112
    %v2203 = vunpack.c.l.b16 %v2113
    %v2204 = vunpack.c.h.b16 %v2113
    %v2205 = vunpack.c.l.b16 %v2114
    %v2206 = vunpack.c.h.b16 %v2114
    %v2207 = vunpack.c.l.b16 %v2115
    %v2208 = vunpack.c.h.b16 %v2115
    %v2209 = vunpack.c.l.b16 %v2116
    %v2210 = vunpack.c.h.b16 %v2116
    %v2211 = vunpack.c.l.b16 %v2117
    %v2212 = vunpack.c.h.b16 %v2117
    %v2213 = vunpack.c.l.b16 %v2118
    %v2214 = vunpack.c.h.b16 %v2118
    %v2215 = vpack.c.b16 %v2155, %v2151
    %v2216 = vpack.c.b16 %v2156, %v2152
    %v2217 = vpack.c.b16 %v2157, %v2153
    %v2218 = vpack.c.b16 %v2158, %v2154
    %v2219 = vpack.c.b16 %v2163, %v2159
    %v2220 = vpack.c.b16 %v2164, %v2160
    %v2221 = vpack.c.b16 %v2165, %v2161
    %v2222 = vpack.c.b16 %v2166, %v2162
    %v2223 = vpack.c.b16 %v2171, %v2167
    %v2224 = vpack.c.b16 %v2172, %v2168
    %v2225 = vpack.c.b16 %v2173, %v2169
    %v2226 = vpack.c.b16 %v2174, %v2170
    %v2227 = vpack.c.b16 %v2179, %v2175
    %v2228 = vpack.c.b16 %v2180, %v2176
    %v2229 = vpack.c.b16 %v2181, %v2177
    %v2230 = vpack.c.b16 %v2182, %v2178
    %v2231 = vpack.c.b16 %v2187, %v2183
    %v2232 = vpack.c.b16 %v2188, %v2184
    %v2233 = vpack.c.b16 %v2189, %v2185
    %v2234 = vpack.c.b16 %v2190, %v2186
    %v2235 = vpack.c.b16 %v2195, %v2191
    %v2236 = vpack.c.b16 %v2196, %v2192
    %v2237 = vpack.c.b16 %v2197, %v2193
    %v2238 = vpack.c.b16 %v2198, %v2194
    %v2239 = vpack.c.b16 %v2203, %v2199
    %v2240 = vpack.c.b16 %v2204, %v2200
    %v2241 = vpack.c.b16 %v2205, %v2201
    %v2242 = vpack.c.b16 %v2206, %v2202
    %v2243 = vpack.c.b16 %v2211, %v2207
    %v2244 = vpack.c.b16 %v2212, %v2208
    %v2245 = vpack.c.b16 %v2213, %v2209
    %v2246 = vpack.c.b16 %v2214, %v2210
    %2279 = vmatprep.subr.bf16.mxu0 %v2244
    %2280 = vmatpush1.bf16.msra.mxu0 %v2243
    %2281 = vmatprep.subr.bf16.mxu0 %v2240
    %2282 = vmatpush1.bf16.msra.mxu0 %v2239
    %2283 = vmatprep.subr.bf16.mxu0 %v2236
    %2284 = vmatpush1.bf16.msra.mxu0 %v2235
    %2285 = vmatprep.subr.bf16.mxu0 %v2232
    %2286 = vmatpush1.bf16.msra.mxu0 %v2231
    %2287 = vmatprep.subr.bf16.mxu0 %v2228
    %2288 = vmatpush1.bf16.msra.mxu0 %v2227
    %2289 = vmatprep.subr.bf16.mxu0 %v2224
    %2290 = vmatpush1.bf16.msra.mxu0 %v2223
    %2291 = vmatprep.subr.bf16.mxu0 %v2220
    %2292 = vmatpush1.bf16.msra.mxu0 %v2219
    %2293 = vmatprep.subr.bf16.mxu0 %v2216
    %2294 = vmatpush1.bf16.msra.mxu0 %v2215
    %2295 = vmatprep.subr.bf16.mxu0 0
    %2296 = vmatpush2.bf16.msra.mxu0 0
    %2297 = vmatprep.subr.bf16.mxu0 0
    %2298 = vmatpush2.bf16.msra.mxu0 0
    %2299 = vmatprep.subr.bf16.mxu0 0
    %2300 = vmatpush2.bf16.msra.mxu0 0
    %2301 = vmatprep.subr.bf16.mxu0 0
    %2302 = vmatpush2.bf16.msra.mxu0 0
    %2303 = vmatprep.subr.bf16.mxu0 0
    %2304 = vmatpush2.bf16.msra.mxu0 0
    %2305 = vmatprep.subr.bf16.mxu0 0
    %2306 = vmatpush2.bf16.msra.mxu0 0
    %2307 = vmatprep.subr.bf16.mxu0 0
    %2308 = vmatpush2.bf16.msra.mxu0 0
    %2309 = vmatprep.subr.bf16.mxu0 0
    %2310 = vmatpush2.bf16.msra.mxu0 0
    %2311 = vmatprep.mubr.bf16.mxu0 0
    %2312 = vmatmul.mubr.bf16.gmra.mxu0 %v2084
    %v2313 = vpop.f32.mrf.mxu0
    %v2314 = vadd.f32 0.0, %v2313
    %v2315 = vpop.f32.mrf.mxu0
    %v2316 = vadd.f32 0.0, %v2315
    %v2317 = vpop.f32.mrf.mxu0
    %v2318 = vpop.f32.mrf.mxu0
    %2319 = vdwg.mxu0
    %2320 = vmatprep.subr.bf16.mxu0 %v2246
    %2321 = vmatpush1.bf16.msra.mxu0 %v2245
    %2322 = vmatprep.subr.bf16.mxu0 %v2242
    %2323 = vmatpush1.bf16.msra.mxu0 %v2241
    %2324 = vmatprep.subr.bf16.mxu0 %v2238
    %2325 = vmatpush1.bf16.msra.mxu0 %v2237
    %2326 = vmatprep.subr.bf16.mxu0 %v2234
    %2327 = vmatpush1.bf16.msra.mxu0 %v2233
    %2328 = vmatprep.subr.bf16.mxu0 %v2230
    %2329 = vmatpush1.bf16.msra.mxu0 %v2229
    %2330 = vmatprep.subr.bf16.mxu0 %v2226
    %2331 = vmatpush1.bf16.msra.mxu0 %v2225
    %2332 = vmatprep.subr.bf16.mxu0 %v2222
    %2333 = vmatpush1.bf16.msra.mxu0 %v2221
    %2334 = vmatprep.subr.bf16.mxu0 %v2218
    %2335 = vmatpush1.bf16.msra.mxu0 %v2217
    %2336 = vmatprep.subr.bf16.mxu0 0
    %2337 = vmatpush2.bf16.msra.mxu0 0
    %2338 = vmatprep.subr.bf16.mxu0 0
    %2339 = vmatpush2.bf16.msra.mxu0 0
    %2340 = vmatprep.subr.bf16.mxu0 0
    %2341 = vmatpush2.bf16.msra.mxu0 0
    %2342 = vmatprep.subr.bf16.mxu0 0
    %2343 = vmatpush2.bf16.msra.mxu0 0
    %2344 = vmatprep.subr.bf16.mxu0 0
    %2345 = vmatpush2.bf16.msra.mxu0 0
    %2346 = vmatprep.subr.bf16.mxu0 0
    %2347 = vmatpush2.bf16.msra.mxu0 0
    %2348 = vmatprep.subr.bf16.mxu0 0
    %2349 = vmatpush2.bf16.msra.mxu0 0
    %2350 = vmatprep.subr.bf16.mxu0 0
    %2351 = vmatpush2.bf16.msra.mxu0 0
    %2352 = vmatprep.mubr.bf16.mxu0 0
    %2353 = vmatmul.mubr.bf16.gmra.mxu0 %v2084
    %v2354 = vpop.f32.mrf.mxu0
    %v2355 = vadd.f32 0.0, %v2354
    %v2356 = vpop.f32.mrf.mxu0
    %v2357 = vadd.f32 0.0, %v2356
    %v2358 = vpop.f32.mrf.mxu0
    %v2359 = vpop.f32.mrf.mxu0
    %2360 = vdwg.mxu0
    %s2361 = scalar_lea.vmem [#allocation3], 160
    %v2362 = vld [vmem:[%s2361] sm:$0xff]
    %v2363 = vld [vmem:[%s2361 + $0x8] sm:$0xff]
    %v2364 = vld [vmem:[%s2361 + $0x10] sm:$0xff]
    %v2365 = vld [vmem:[%s2361 + $0x18] sm:$0xff]
    %v2366 = vadd.f32 %v2362, %v2314
    %v2367 = vadd.f32 %v2363, %v2316
    %v2368 = vadd.f32 %v2364, %v2355
    %v2369 = vadd.f32 %v2365, %v2357
    %v2370 = vxor.u32 %v2366, 2147483648
    %v2371 = vmul.f32 %v2370, 1.442695
    %v2372 = vpow.pop %v2371
    %v2373 = vadd.f32 %v2372, 1.0
    %v2374 = vrcp.pop %v2373
    %v2375 = vmul.f32 1.0, %v2374
    %v2376 = vxor.u32 %v2367, 2147483648
    %v2377 = vmul.f32 %v2376, 1.442695
    %v2378 = vpow.pop %v2377
    %v2379 = vadd.f32 %v2378, 1.0
    %v2380 = vrcp.pop %v2379
    %v2381 = vmul.f32 1.0, %v2380
    %v2382 = vtanh.pop %v2368
    %v2383 = vxor.u32 %v2369, 2147483648
    %v2384 = vmul.f32 %v2383, 1.442695
    %v2385 = vpow.pop %v2384
    %v2386 = vadd.f32 %v2385, 1.0
    %v2387 = vrcp.pop %v2386
    %v2388 = vmul.f32 1.0, %v2387
    %v2389 = vmul.f32 %v2381, %v2081
    %v2390 = vmul.f32 %v2375, %v2382
    %v2391 = vadd.f32 %v2389, %v2390
    %v2392 = vtanh.pop %v2391
    %v2393 = vmul.f32 %v2388, %v2392
    %v2394 = vpack.c.bf16 %v2393, %v2393
    %s2395 = scalar_lea.vmem [#allocation2], 20
    %2396 = vst [vmem:[%s2395] sm:$0xf] %v2394
    %v2397 = vld [vmem:[#allocation9] sm:$0xff]
    %v2398 = vld [vmem:[#allocation9 + $0x8] sm:$0xff]
    %v2399 = vld [vmem:[#allocation9 + $0x10] sm:$0xff]
    %v2400 = vld [vmem:[#allocation9 + $0x18] sm:$0xff]
    %v2401 = vld [vmem:[#allocation9 + $0x20] sm:$0xff]
    %v2402 = vld [vmem:[#allocation9 + $0x28] sm:$0xff]
    %v2403 = vld [vmem:[#allocation9 + $0x30] sm:$0xff]
    %v2404 = vld [vmem:[#allocation9 + $0x38] sm:$0xff]
    %v2405 = vld [vmem:[#allocation9 + $0x40] sm:$0xff]
    %v2406 = vld [vmem:[#allocation9 + $0x48] sm:$0xff]
    %v2407 = vld [vmem:[#allocation9 + $0x50] sm:$0xff]
    %v2408 = vld [vmem:[#allocation9 + $0x58] sm:$0xff]
    %v2409 = vld [vmem:[#allocation9 + $0x60] sm:$0xff]
    %v2410 = vld [vmem:[#allocation9 + $0x68] sm:$0xff]
    %v2411 = vld [vmem:[#allocation9 + $0x70] sm:$0xff]
    %v2412 = vld [vmem:[#allocation9 + $0x78] sm:$0xff]
    %v2413 = vld [vmem:[#allocation9 + $0x80] sm:$0xff]
    %v2414 = vld [vmem:[#allocation9 + $0x88] sm:$0xff]
    %v2415 = vld [vmem:[#allocation9 + $0x90] sm:$0xff]
    %v2416 = vld [vmem:[#allocation9 + $0x98] sm:$0xff]
    %v2417 = vld [vmem:[#allocation9 + $0xa0] sm:$0xff]
    %v2418 = vld [vmem:[#allocation9 + $0xa8] sm:$0xff]
    %v2419 = vld [vmem:[#allocation9 + $0xb0] sm:$0xff]
    %v2420 = vld [vmem:[#allocation9 + $0xb8] sm:$0xff]
    %v2421 = vld [vmem:[#allocation9 + $0xc0] sm:$0xff]
    %v2422 = vld [vmem:[#allocation9 + $0xc8] sm:$0xff]
    %v2423 = vld [vmem:[#allocation9 + $0xd0] sm:$0xff]
    %v2424 = vld [vmem:[#allocation9 + $0xd8] sm:$0xff]
    %v2425 = vld [vmem:[#allocation9 + $0xe0] sm:$0xff]
    %v2426 = vld [vmem:[#allocation9 + $0xe8] sm:$0xff]
    %v2427 = vld [vmem:[#allocation9 + $0xf0] sm:$0xff]
    %v2428 = vld [vmem:[#allocation9 + $0xf8] sm:$0xff]
    %v2461 = vunpack.c.l.b16 %v2397
    %v2462 = vunpack.c.h.b16 %v2397
    %v2463 = vunpack.c.l.b16 %v2398
    %v2464 = vunpack.c.h.b16 %v2398
    %v2465 = vunpack.c.l.b16 %v2399
    %v2466 = vunpack.c.h.b16 %v2399
    %v2467 = vunpack.c.l.b16 %v2400
    %v2468 = vunpack.c.h.b16 %v2400
    %v2469 = vunpack.c.l.b16 %v2401
    %v2470 = vunpack.c.h.b16 %v2401
    %v2471 = vunpack.c.l.b16 %v2402
    %v2472 = vunpack.c.h.b16 %v2402
    %v2473 = vunpack.c.l.b16 %v2403
    %v2474 = vunpack.c.h.b16 %v2403
    %v2475 = vunpack.c.l.b16 %v2404
    %v2476 = vunpack.c.h.b16 %v2404
    %v2477 = vunpack.c.l.b16 %v2405
    %v2478 = vunpack.c.h.b16 %v2405
    %v2479 = vunpack.c.l.b16 %v2406
    %v2480 = vunpack.c.h.b16 %v2406
    %v2481 = vunpack.c.l.b16 %v2407
    %v2482 = vunpack.c.h.b16 %v2407
    %v2483 = vunpack.c.l.b16 %v2408
    %v2484 = vunpack.c.h.b16 %v2408
    %v2485 = vunpack.c.l.b16 %v2409
    %v2486 = vunpack.c.h.b16 %v2409
    %v2487 = vunpack.c.l.b16 %v2410
    %v2488 = vunpack.c.h.b16 %v2410
    %v2489 = vunpack.c.l.b16 %v2411
    %v2490 = vunpack.c.h.b16 %v2411
    %v2491 = vunpack.c.l.b16 %v2412
    %v2492 = vunpack.c.h.b16 %v2412
    %v2493 = vunpack.c.l.b16 %v2413
    %v2494 = vunpack.c.h.b16 %v2413
    %v2495 = vunpack.c.l.b16 %v2414
    %v2496 = vunpack.c.h.b16 %v2414
    %v2497 = vunpack.c.l.b16 %v2415
    %v2498 = vunpack.c.h.b16 %v2415
    %v2499 = vunpack.c.l.b16 %v2416
    %v2500 = vunpack.c.h.b16 %v2416
    %v2501 = vunpack.c.l.b16 %v2417
    %v2502 = vunpack.c.h.b16 %v2417
    %v2503 = vunpack.c.l.b16 %v2418
    %v2504 = vunpack.c.h.b16 %v2418
    %v2505 = vunpack.c.l.b16 %v2419
    %v2506 = vunpack.c.h.b16 %v2419
    %v2507 = vunpack.c.l.b16 %v2420
    %v2508 = vunpack.c.h.b16 %v2420
    %v2509 = vunpack.c.l.b16 %v2421
    %v2510 = vunpack.c.h.b16 %v2421
    %v2511 = vunpack.c.l.b16 %v2422
    %v2512 = vunpack.c.h.b16 %v2422
    %v2513 = vunpack.c.l.b16 %v2423
    %v2514 = vunpack.c.h.b16 %v2423
    %v2515 = vunpack.c.l.b16 %v2424
    %v2516 = vunpack.c.h.b16 %v2424
    %v2517 = vunpack.c.l.b16 %v2425
    %v2518 = vunpack.c.h.b16 %v2425
    %v2519 = vunpack.c.l.b16 %v2426
    %v2520 = vunpack.c.h.b16 %v2426
    %v2521 = vunpack.c.l.b16 %v2427
    %v2522 = vunpack.c.h.b16 %v2427
    %v2523 = vunpack.c.l.b16 %v2428
    %v2524 = vunpack.c.h.b16 %v2428
    %v2525 = vpack.c.b16 %v2465, %v2461
    %v2526 = vpack.c.b16 %v2466, %v2462
    %v2527 = vpack.c.b16 %v2467, %v2463
    %v2528 = vpack.c.b16 %v2468, %v2464
    %v2529 = vpack.c.b16 %v2473, %v2469
    %v2530 = vpack.c.b16 %v2474, %v2470
    %v2531 = vpack.c.b16 %v2475, %v2471
    %v2532 = vpack.c.b16 %v2476, %v2472
    %v2533 = vpack.c.b16 %v2481, %v2477
    %v2534 = vpack.c.b16 %v2482, %v2478
    %v2535 = vpack.c.b16 %v2483, %v2479
    %v2536 = vpack.c.b16 %v2484, %v2480
    %v2537 = vpack.c.b16 %v2489, %v2485
    %v2538 = vpack.c.b16 %v2490, %v2486
    %v2539 = vpack.c.b16 %v2491, %v2487
    %v2540 = vpack.c.b16 %v2492, %v2488
    %v2541 = vpack.c.b16 %v2497, %v2493
    %v2542 = vpack.c.b16 %v2498, %v2494
    %v2543 = vpack.c.b16 %v2499, %v2495
    %v2544 = vpack.c.b16 %v2500, %v2496
    %v2545 = vpack.c.b16 %v2505, %v2501
    %v2546 = vpack.c.b16 %v2506, %v2502
    %v2547 = vpack.c.b16 %v2507, %v2503
    %v2548 = vpack.c.b16 %v2508, %v2504
    %v2549 = vpack.c.b16 %v2513, %v2509
    %v2550 = vpack.c.b16 %v2514, %v2510
    %v2551 = vpack.c.b16 %v2515, %v2511
    %v2552 = vpack.c.b16 %v2516, %v2512
    %v2553 = vpack.c.b16 %v2521, %v2517
    %v2554 = vpack.c.b16 %v2522, %v2518
    %v2555 = vpack.c.b16 %v2523, %v2519
    %v2556 = vpack.c.b16 %v2524, %v2520
    %2589 = vmatprep.subr.bf16.mxu0 %v2554
    %2590 = vmatpush1.bf16.msra.mxu0 %v2553
    %2591 = vmatprep.subr.bf16.mxu0 %v2550
    %2592 = vmatpush1.bf16.msra.mxu0 %v2549
    %2593 = vmatprep.subr.bf16.mxu0 %v2546
    %2594 = vmatpush1.bf16.msra.mxu0 %v2545
    %2595 = vmatprep.subr.bf16.mxu0 %v2542
    %2596 = vmatpush1.bf16.msra.mxu0 %v2541
    %2597 = vmatprep.subr.bf16.mxu0 %v2538
    %2598 = vmatpush1.bf16.msra.mxu0 %v2537
    %2599 = vmatprep.subr.bf16.mxu0 %v2534
    %2600 = vmatpush1.bf16.msra.mxu0 %v2533
    %2601 = vmatprep.subr.bf16.mxu0 %v2530
    %2602 = vmatpush1.bf16.msra.mxu0 %v2529
    %2603 = vmatprep.subr.bf16.mxu0 %v2526
    %2604 = vmatpush1.bf16.msra.mxu0 %v2525
    %2605 = vmatprep.subr.bf16.mxu0 0
    %2606 = vmatpush2.bf16.msra.mxu0 0
    %2607 = vmatprep.subr.bf16.mxu0 0
    %2608 = vmatpush2.bf16.msra.mxu0 0
    %2609 = vmatprep.subr.bf16.mxu0 0
    %2610 = vmatpush2.bf16.msra.mxu0 0
    %2611 = vmatprep.subr.bf16.mxu0 0
    %2612 = vmatpush2.bf16.msra.mxu0 0
    %2613 = vmatprep.subr.bf16.mxu0 0
    %2614 = vmatpush2.bf16.msra.mxu0 0
    %2615 = vmatprep.subr.bf16.mxu0 0
    %2616 = vmatpush2.bf16.msra.mxu0 0
    %2617 = vmatprep.subr.bf16.mxu0 0
    %2618 = vmatpush2.bf16.msra.mxu0 0
    %2619 = vmatprep.subr.bf16.mxu0 0
    %2620 = vmatpush2.bf16.msra.mxu0 0
    %2621 = vmatprep.mubr.bf16.mxu0 0
    %2622 = vmatmul.mubr.bf16.gmra.mxu0 %v2394
    %v2623 = vpop.f32.mrf.mxu0
    %v2624 = vadd.f32 0.0, %v2623
    %v2625 = vpop.f32.mrf.mxu0
    %v2626 = vadd.f32 0.0, %v2625
    %v2627 = vpop.f32.mrf.mxu0
    %v2628 = vpop.f32.mrf.mxu0
    %2629 = vdwg.mxu0
    %2630 = vmatprep.subr.bf16.mxu0 %v2556
    %2631 = vmatpush1.bf16.msra.mxu0 %v2555
    %2632 = vmatprep.subr.bf16.mxu0 %v2552
    %2633 = vmatpush1.bf16.msra.mxu0 %v2551
    %2634 = vmatprep.subr.bf16.mxu0 %v2548
    %2635 = vmatpush1.bf16.msra.mxu0 %v2547
    %2636 = vmatprep.subr.bf16.mxu0 %v2544
    %2637 = vmatpush1.bf16.msra.mxu0 %v2543
    %2638 = vmatprep.subr.bf16.mxu0 %v2540
    %2639 = vmatpush1.bf16.msra.mxu0 %v2539
    %2640 = vmatprep.subr.bf16.mxu0 %v2536
    %2641 = vmatpush1.bf16.msra.mxu0 %v2535
    %2642 = vmatprep.subr.bf16.mxu0 %v2532
    %2643 = vmatpush1.bf16.msra.mxu0 %v2531
    %2644 = vmatprep.subr.bf16.mxu0 %v2528
    %2645 = vmatpush1.bf16.msra.mxu0 %v2527
    %2646 = vmatprep.subr.bf16.mxu0 0
    %2647 = vmatpush2.bf16.msra.mxu0 0
    %2648 = vmatprep.subr.bf16.mxu0 0
    %2649 = vmatpush2.bf16.msra.mxu0 0
    %2650 = vmatprep.subr.bf16.mxu0 0
    %2651 = vmatpush2.bf16.msra.mxu0 0
    %2652 = vmatprep.subr.bf16.mxu0 0
    %2653 = vmatpush2.bf16.msra.mxu0 0
    %2654 = vmatprep.subr.bf16.mxu0 0
    %2655 = vmatpush2.bf16.msra.mxu0 0
    %2656 = vmatprep.subr.bf16.mxu0 0
    %2657 = vmatpush2.bf16.msra.mxu0 0
    %2658 = vmatprep.subr.bf16.mxu0 0
    %2659 = vmatpush2.bf16.msra.mxu0 0
    %2660 = vmatprep.subr.bf16.mxu0 0
    %2661 = vmatpush2.bf16.msra.mxu0 0
    %2662 = vmatprep.mubr.bf16.mxu0 0
    %2663 = vmatmul.mubr.bf16.gmra.mxu0 %v2394
    %v2664 = vpop.f32.mrf.mxu0
    %v2665 = vadd.f32 0.0, %v2664
    %v2666 = vpop.f32.mrf.mxu0
    %v2667 = vadd.f32 0.0, %v2666
    %v2668 = vpop.f32.mrf.mxu0
    %v2669 = vpop.f32.mrf.mxu0
    %2670 = vdwg.mxu0
    %s2671 = scalar_lea.vmem [#allocation3], 192
    %v2672 = vld [vmem:[%s2671] sm:$0xff]
    %v2673 = vld [vmem:[%s2671 + $0x8] sm:$0xff]
    %v2674 = vld [vmem:[%s2671 + $0x10] sm:$0xff]
    %v2675 = vld [vmem:[%s2671 + $0x18] sm:$0xff]
    %v2676 = vadd.f32 %v2672, %v2624
    %v2677 = vadd.f32 %v2673, %v2626
    %v2678 = vadd.f32 %v2674, %v2665
    %v2679 = vadd.f32 %v2675, %v2667
    %v2680 = vxor.u32 %v2676, 2147483648
    %v2681 = vmul.f32 %v2680, 1.442695
    %v2682 = vpow.pop %v2681
    %v2683 = vadd.f32 %v2682, 1.0
    %v2684 = vrcp.pop %v2683
    %v2685 = vmul.f32 1.0, %v2684
    %v2686 = vxor.u32 %v2677, 2147483648
    %v2687 = vmul.f32 %v2686, 1.442695
    %v2688 = vpow.pop %v2687
    %v2689 = vadd.f32 %v2688, 1.0
    %v2690 = vrcp.pop %v2689
    %v2691 = vmul.f32 1.0, %v2690
    %v2692 = vtanh.pop %v2678
    %v2693 = vxor.u32 %v2679, 2147483648
    %v2694 = vmul.f32 %v2693, 1.442695
    %v2695 = vpow.pop %v2694
    %v2696 = vadd.f32 %v2695, 1.0
    %v2697 = vrcp.pop %v2696
    %v2698 = vmul.f32 1.0, %v2697
    %v2699 = vmul.f32 %v2691, %v2391
    %v2700 = vmul.f32 %v2685, %v2692
    %v2701 = vadd.f32 %v2699, %v2700
    %v2702 = vtanh.pop %v2701
    %v2703 = vmul.f32 %v2698, %v2702
    %v2704 = vpack.c.bf16 %v2703, %v2703
    %s2705 = scalar_lea.vmem [#allocation2], 24
    %2706 = vst [vmem:[%s2705] sm:$0xf] %v2704
    %v2707 = vld [vmem:[#allocation9] sm:$0xff]
    %v2708 = vld [vmem:[#allocation9 + $0x8] sm:$0xff]
    %v2709 = vld [vmem:[#allocation9 + $0x10] sm:$0xff]
    %v2710 = vld [vmem:[#allocation9 + $0x18] sm:$0xff]
    %v2711 = vld [vmem:[#allocation9 + $0x20] sm:$0xff]
    %v2712 = vld [vmem:[#allocation9 + $0x28] sm:$0xff]
    %v2713 = vld [vmem:[#allocation9 + $0x30] sm:$0xff]
    %v2714 = vld [vmem:[#allocation9 + $0x38] sm:$0xff]
    %v2715 = vld [vmem:[#allocation9 + $0x40] sm:$0xff]
    %v2716 = vld [vmem:[#allocation9 + $0x48] sm:$0xff]
    %v2717 = vld [vmem:[#allocation9 + $0x50] sm:$0xff]
    %v2718 = vld [vmem:[#allocation9 + $0x58] sm:$0xff]
    %v2719 = vld [vmem:[#allocation9 + $0x60] sm:$0xff]
    %v2720 = vld [vmem:[#allocation9 + $0x68] sm:$0xff]
    %v2721 = vld [vmem:[#allocation9 + $0x70] sm:$0xff]
    %v2722 = vld [vmem:[#allocation9 + $0x78] sm:$0xff]
    %v2723 = vld [vmem:[#allocation9 + $0x80] sm:$0xff]
    %v2724 = vld [vmem:[#allocation9 + $0x88] sm:$0xff]
    %v2725 = vld [vmem:[#allocation9 + $0x90] sm:$0xff]
    %v2726 = vld [vmem:[#allocation9 + $0x98] sm:$0xff]
    %v2727 = vld [vmem:[#allocation9 + $0xa0] sm:$0xff]
    %v2728 = vld [vmem:[#allocation9 + $0xa8] sm:$0xff]
    %v2729 = vld [vmem:[#allocation9 + $0xb0] sm:$0xff]
    %v2730 = vld [vmem:[#allocation9 + $0xb8] sm:$0xff]
    %v2731 = vld [vmem:[#allocation9 + $0xc0] sm:$0xff]
    %v2732 = vld [vmem:[#allocation9 + $0xc8] sm:$0xff]
    %v2733 = vld [vmem:[#allocation9 + $0xd0] sm:$0xff]
    %v2734 = vld [vmem:[#allocation9 + $0xd8] sm:$0xff]
    %v2735 = vld [vmem:[#allocation9 + $0xe0] sm:$0xff]
    %v2736 = vld [vmem:[#allocation9 + $0xe8] sm:$0xff]
    %v2737 = vld [vmem:[#allocation9 + $0xf0] sm:$0xff]
    %v2738 = vld [vmem:[#allocation9 + $0xf8] sm:$0xff]
    %v2771 = vunpack.c.l.b16 %v2707
    %v2772 = vunpack.c.h.b16 %v2707
    %v2773 = vunpack.c.l.b16 %v2708
    %v2774 = vunpack.c.h.b16 %v2708
    %v2775 = vunpack.c.l.b16 %v2709
    %v2776 = vunpack.c.h.b16 %v2709
    %v2777 = vunpack.c.l.b16 %v2710
    %v2778 = vunpack.c.h.b16 %v2710
    %v2779 = vunpack.c.l.b16 %v2711
    %v2780 = vunpack.c.h.b16 %v2711
    %v2781 = vunpack.c.l.b16 %v2712
    %v2782 = vunpack.c.h.b16 %v2712
    %v2783 = vunpack.c.l.b16 %v2713
    %v2784 = vunpack.c.h.b16 %v2713
    %v2785 = vunpack.c.l.b16 %v2714
    %v2786 = vunpack.c.h.b16 %v2714
    %v2787 = vunpack.c.l.b16 %v2715
    %v2788 = vunpack.c.h.b16 %v2715
    %v2789 = vunpack.c.l.b16 %v2716
    %v2790 = vunpack.c.h.b16 %v2716
    %v2791 = vunpack.c.l.b16 %v2717
    %v2792 = vunpack.c.h.b16 %v2717
    %v2793 = vunpack.c.l.b16 %v2718
    %v2794 = vunpack.c.h.b16 %v2718
    %v2795 = vunpack.c.l.b16 %v2719
    %v2796 = vunpack.c.h.b16 %v2719
    %v2797 = vunpack.c.l.b16 %v2720
    %v2798 = vunpack.c.h.b16 %v2720
    %v2799 = vunpack.c.l.b16 %v2721
    %v2800 = vunpack.c.h.b16 %v2721
    %v2801 = vunpack.c.l.b16 %v2722
    %v2802 = vunpack.c.h.b16 %v2722
    %v2803 = vunpack.c.l.b16 %v2723
    %v2804 = vunpack.c.h.b16 %v2723
    %v2805 = vunpack.c.l.b16 %v2724
    %v2806 = vunpack.c.h.b16 %v2724
    %v2807 = vunpack.c.l.b16 %v2725
    %v2808 = vunpack.c.h.b16 %v2725
    %v2809 = vunpack.c.l.b16 %v2726
    %v2810 = vunpack.c.h.b16 %v2726
    %v2811 = vunpack.c.l.b16 %v2727
    %v2812 = vunpack.c.h.b16 %v2727
    %v2813 = vunpack.c.l.b16 %v2728
    %v2814 = vunpack.c.h.b16 %v2728
    %v2815 = vunpack.c.l.b16 %v2729
    %v2816 = vunpack.c.h.b16 %v2729
    %v2817 = vunpack.c.l.b16 %v2730
    %v2818 = vunpack.c.h.b16 %v2730
    %v2819 = vunpack.c.l.b16 %v2731
    %v2820 = vunpack.c.h.b16 %v2731
    %v2821 = vunpack.c.l.b16 %v2732
    %v2822 = vunpack.c.h.b16 %v2732
    %v2823 = vunpack.c.l.b16 %v2733
    %v2824 = vunpack.c.h.b16 %v2733
    %v2825 = vunpack.c.l.b16 %v2734
    %v2826 = vunpack.c.h.b16 %v2734
    %v2827 = vunpack.c.l.b16 %v2735
    %v2828 = vunpack.c.h.b16 %v2735
    %v2829 = vunpack.c.l.b16 %v2736
    %v2830 = vunpack.c.h.b16 %v2736
    %v2831 = vunpack.c.l.b16 %v2737
    %v2832 = vunpack.c.h.b16 %v2737
    %v2833 = vunpack.c.l.b16 %v2738
    %v2834 = vunpack.c.h.b16 %v2738
    %v2835 = vpack.c.b16 %v2775, %v2771
    %v2836 = vpack.c.b16 %v2776, %v2772
    %v2837 = vpack.c.b16 %v2777, %v2773
    %v2838 = vpack.c.b16 %v2778, %v2774
    %v2839 = vpack.c.b16 %v2783, %v2779
    %v2840 = vpack.c.b16 %v2784, %v2780
    %v2841 = vpack.c.b16 %v2785, %v2781
    %v2842 = vpack.c.b16 %v2786, %v2782
    %v2843 = vpack.c.b16 %v2791, %v2787
    %v2844 = vpack.c.b16 %v2792, %v2788
    %v2845 = vpack.c.b16 %v2793, %v2789
    %v2846 = vpack.c.b16 %v2794, %v2790
    %v2847 = vpack.c.b16 %v2799, %v2795
    %v2848 = vpack.c.b16 %v2800, %v2796
    %v2849 = vpack.c.b16 %v2801, %v2797
    %v2850 = vpack.c.b16 %v2802, %v2798
    %v2851 = vpack.c.b16 %v2807, %v2803
    %v2852 = vpack.c.b16 %v2808, %v2804
    %v2853 = vpack.c.b16 %v2809, %v2805
    %v2854 = vpack.c.b16 %v2810, %v2806
    %v2855 = vpack.c.b16 %v2815, %v2811
    %v2856 = vpack.c.b16 %v2816, %v2812
    %v2857 = vpack.c.b16 %v2817, %v2813
    %v2858 = vpack.c.b16 %v2818, %v2814
    %v2859 = vpack.c.b16 %v2823, %v2819
    %v2860 = vpack.c.b16 %v2824, %v2820
    %v2861 = vpack.c.b16 %v2825, %v2821
    %v2862 = vpack.c.b16 %v2826, %v2822
    %v2863 = vpack.c.b16 %v2831, %v2827
    %v2864 = vpack.c.b16 %v2832, %v2828
    %v2865 = vpack.c.b16 %v2833, %v2829
    %v2866 = vpack.c.b16 %v2834, %v2830
    %2899 = vmatprep.subr.bf16.mxu0 %v2864
    %2900 = vmatpush1.bf16.msra.mxu0 %v2863
    %2901 = vmatprep.subr.bf16.mxu0 %v2860
    %2902 = vmatpush1.bf16.msra.mxu0 %v2859
    %2903 = vmatprep.subr.bf16.mxu0 %v2856
    %2904 = vmatpush1.bf16.msra.mxu0 %v2855
    %2905 = vmatprep.subr.bf16.mxu0 %v2852
    %2906 = vmatpush1.bf16.msra.mxu0 %v2851
    %2907 = vmatprep.subr.bf16.mxu0 %v2848
    %2908 = vmatpush1.bf16.msra.mxu0 %v2847
    %2909 = vmatprep.subr.bf16.mxu0 %v2844
    %2910 = vmatpush1.bf16.msra.mxu0 %v2843
    %2911 = vmatprep.subr.bf16.mxu0 %v2840
    %2912 = vmatpush1.bf16.msra.mxu0 %v2839
    %2913 = vmatprep.subr.bf16.mxu0 %v2836
    %2914 = vmatpush1.bf16.msra.mxu0 %v2835
    %2915 = vmatprep.subr.bf16.mxu0 0
    %2916 = vmatpush2.bf16.msra.mxu0 0
    %2917 = vmatprep.subr.bf16.mxu0 0
    %2918 = vmatpush2.bf16.msra.mxu0 0
    %2919 = vmatprep.subr.bf16.mxu0 0
    %2920 = vmatpush2.bf16.msra.mxu0 0
    %2921 = vmatprep.subr.bf16.mxu0 0
    %2922 = vmatpush2.bf16.msra.mxu0 0
    %2923 = vmatprep.subr.bf16.mxu0 0
    %2924 = vmatpush2.bf16.msra.mxu0 0
    %2925 = vmatprep.subr.bf16.mxu0 0
    %2926 = vmatpush2.bf16.msra.mxu0 0
    %2927 = vmatprep.subr.bf16.mxu0 0
    %2928 = vmatpush2.bf16.msra.mxu0 0
    %2929 = vmatprep.subr.bf16.mxu0 0
    %2930 = vmatpush2.bf16.msra.mxu0 0
    %2931 = vmatprep.mubr.bf16.mxu0 0
    %2932 = vmatmul.mubr.bf16.gmra.mxu0 %v2704
    %v2933 = vpop.f32.mrf.mxu0
    %v2934 = vadd.f32 0.0, %v2933
    %v2935 = vpop.f32.mrf.mxu0
    %v2936 = vadd.f32 0.0, %v2935
    %v2937 = vpop.f32.mrf.mxu0
    %v2938 = vpop.f32.mrf.mxu0
    %2939 = vdwg.mxu0
    %2940 = vmatprep.subr.bf16.mxu0 %v2866
    %2941 = vmatpush1.bf16.msra.mxu0 %v2865
    %2942 = vmatprep.subr.bf16.mxu0 %v2862
    %2943 = vmatpush1.bf16.msra.mxu0 %v2861
    %2944 = vmatprep.subr.bf16.mxu0 %v2858
    %2945 = vmatpush1.bf16.msra.mxu0 %v2857
    %2946 = vmatprep.subr.bf16.mxu0 %v2854
    %2947 = vmatpush1.bf16.msra.mxu0 %v2853
    %2948 = vmatprep.subr.bf16.mxu0 %v2850
    %2949 = vmatpush1.bf16.msra.mxu0 %v2849
    %2950 = vmatprep.subr.bf16.mxu0 %v2846
    %2951 = vmatpush1.bf16.msra.mxu0 %v2845
    %2952 = vmatprep.subr.bf16.mxu0 %v2842
    %2953 = vmatpush1.bf16.msra.mxu0 %v2841
    %2954 = vmatprep.subr.bf16.mxu0 %v2838
    %2955 = vmatpush1.bf16.msra.mxu0 %v2837
    %2956 = vmatprep.subr.bf16.mxu0 0
    %2957 = vmatpush2.bf16.msra.mxu0 0
    %2958 = vmatprep.subr.bf16.mxu0 0
    %2959 = vmatpush2.bf16.msra.mxu0 0
    %2960 = vmatprep.subr.bf16.mxu0 0
    %2961 = vmatpush2.bf16.msra.mxu0 0
    %2962 = vmatprep.subr.bf16.mxu0 0
    %2963 = vmatpush2.bf16.msra.mxu0 0
    %2964 = vmatprep.subr.bf16.mxu0 0
    %2965 = vmatpush2.bf16.msra.mxu0 0
    %2966 = vmatprep.subr.bf16.mxu0 0
    %2967 = vmatpush2.bf16.msra.mxu0 0
    %2968 = vmatprep.subr.bf16.mxu0 0
    %2969 = vmatpush2.bf16.msra.mxu0 0
    %2970 = vmatprep.subr.bf16.mxu0 0
    %2971 = vmatpush2.bf16.msra.mxu0 0
    %2972 = vmatprep.mubr.bf16.mxu0 0
    %2973 = vmatmul.mubr.bf16.gmra.mxu0 %v2704
    %v2974 = vpop.f32.mrf.mxu0
    %v2975 = vadd.f32 0.0, %v2974
    %v2976 = vpop.f32.mrf.mxu0
    %v2977 = vadd.f32 0.0, %v2976
    %v2978 = vpop.f32.mrf.mxu0
    %v2979 = vpop.f32.mrf.mxu0
    %2980 = vdwg.mxu0
    %s2981 = scalar_lea.vmem [#allocation3], 224
    %v2982 = vld [vmem:[%s2981] sm:$0xff]
    %v2983 = vld [vmem:[%s2981 + $0x8] sm:$0xff]
    %v2984 = vld [vmem:[%s2981 + $0x10] sm:$0xff]
    %v2985 = vld [vmem:[%s2981 + $0x18] sm:$0xff]
    %v2986 = vadd.f32 %v2982, %v2934
    %v2987 = vadd.f32 %v2983, %v2936
    %v2988 = vadd.f32 %v2984, %v2975
    %v2989 = vadd.f32 %v2985, %v2977
    %v2990 = vxor.u32 %v2986, 2147483648
    %v2991 = vmul.f32 %v2990, 1.442695
    %v2992 = vpow.pop %v2991
    %v2993 = vadd.f32 %v2992, 1.0
    %v2994 = vrcp.pop %v2993
    %v2995 = vmul.f32 1.0, %v2994
    %v2996 = vxor.u32 %v2987, 2147483648
    %v2997 = vmul.f32 %v2996, 1.442695
    %v2998 = vpow.pop %v2997
    %v2999 = vadd.f32 %v2998, 1.0
    %v3000 = vrcp.pop %v2999
    %v3001 = vmul.f32 1.0, %v3000
    %v3002 = vtanh.pop %v2988
    %v3003 = vxor.u32 %v2989, 2147483648
    %v3004 = vmul.f32 %v3003, 1.442695
    %v3005 = vpow.pop %v3004
    %v3006 = vadd.f32 %v3005, 1.0
    %v3007 = vrcp.pop %v3006
    %v3008 = vmul.f32 1.0, %v3007
    %v3009 = vmul.f32 %v3001, %v2701
    %v3010 = vmul.f32 %v2995, %v3002
    %v3011 = vadd.f32 %v3009, %v3010
    %v3012 = vtanh.pop %v3011
    %v3013 = vmul.f32 %v3008, %v3012
    %v3014 = vpack.c.bf16 %v3013, %v3013
    %s3015 = scalar_lea.vmem [#allocation2], 28
    %3016 = vst [vmem:[%s3015] sm:$0xf] %v3014
    %v3017 = vld [vmem:[#allocation2] sm:$0xf]
    %v3018 = vld [vmem:[#allocation2 + $0x4] sm:$0xf]
    %v3019 = vld [vmem:[#allocation2 + $0x8] sm:$0xf]
    %v3020 = vld [vmem:[#allocation2 + $0xc] sm:$0xf]
    %v3021 = vld [vmem:[#allocation2 + $0x10] sm:$0xf]
    %v3022 = vld [vmem:[#allocation2 + $0x14] sm:$0xf]
    %v3023 = vld [vmem:[#allocation2 + $0x18] sm:$0xf]
    %v3024 = vld [vmem:[#allocation2 + $0x1c] sm:$0xf]
    %v3025 = vld [vmem:[#allocation10] sm:$0xff]
    %v3026 = vld [vmem:[#allocation10 + $0x8] sm:$0xff]
    %v3027 = vld [vmem:[#allocation10 + $0x10] sm:$0xff]
    %v3028 = vld [vmem:[#allocation10 + $0x18] sm:$0xff]
    %v3029 = vld [vmem:[#allocation10 + $0x20] sm:$0xff]
    %v3030 = vld [vmem:[#allocation10 + $0x28] sm:$0xff]
    %v3031 = vld [vmem:[#allocation10 + $0x30] sm:$0xff]
    %v3032 = vld [vmem:[#allocation10 + $0x38] sm:$0xff]
    %v3033 = vld [vmem:[#allocation10 + $0x40] sm:$0xff]
    %v3034 = vld [vmem:[#allocation10 + $0x48] sm:$0xff]
    %v3035 = vld [vmem:[#allocation10 + $0x50] sm:$0xff]
    %v3036 = vld [vmem:[#allocation10 + $0x58] sm:$0xff]
    %v3037 = vld [vmem:[#allocation10 + $0x60] sm:$0xff]
    %v3038 = vld [vmem:[#allocation10 + $0x68] sm:$0xff]
    %v3039 = vld [vmem:[#allocation10 + $0x70] sm:$0xff]
    %v3040 = vld [vmem:[#allocation10 + $0x78] sm:$0xff]
    %v3041 = vld [vmem:[#allocation10 + $0x80] sm:$0xff]
    %v3042 = vld [vmem:[#allocation10 + $0x88] sm:$0xff]
    %v3043 = vld [vmem:[#allocation10 + $0x90] sm:$0xff]
    %v3044 = vld [vmem:[#allocation10 + $0x98] sm:$0xff]
    %v3045 = vld [vmem:[#allocation10 + $0xa0] sm:$0xff]
    %v3046 = vld [vmem:[#allocation10 + $0xa8] sm:$0xff]
    %v3047 = vld [vmem:[#allocation10 + $0xb0] sm:$0xff]
    %v3048 = vld [vmem:[#allocation10 + $0xb8] sm:$0xff]
    %v3049 = vld [vmem:[#allocation10 + $0xc0] sm:$0xff]
    %v3050 = vld [vmem:[#allocation10 + $0xc8] sm:$0xff]
    %v3051 = vld [vmem:[#allocation10 + $0xd0] sm:$0xff]
    %v3052 = vld [vmem:[#allocation10 + $0xd8] sm:$0xff]
    %v3053 = vld [vmem:[#allocation10 + $0xe0] sm:$0xff]
    %v3054 = vld [vmem:[#allocation10 + $0xe8] sm:$0xff]
    %v3055 = vld [vmem:[#allocation10 + $0xf0] sm:$0xff]
    %v3056 = vld [vmem:[#allocation10 + $0xf8] sm:$0xff]
    %v3057 = vld [vmem:[%s6] sm:$0xf]
    %v3059 = vlaneseq
    %v3060 = vshrl.u32 %v3059, 7
    %v3061 = vsub.s32 0, %v3060
    %v3062 = vrot.slane %v3057, %v3061
    %v3063 = vlaneseq
    %v3064 = vshrl.u32 %v3063, 7
    %v3065 = vsub.s32 1, %v3064
    %v3066 = vrot.slane %v3057, %v3065
    %v3067 = vlaneseq
    %v3068 = vshrl.u32 %v3067, 7
    %v3069 = vsub.s32 2, %v3068
    %v3070 = vrot.slane %v3057, %v3069
    %v3071 = vlaneseq
    %v3072 = vshrl.u32 %v3071, 7
    %v3073 = vsub.s32 3, %v3072
    %v3074 = vrot.slane %v3057, %v3073
    %v3087 = vunpack.c.l.b16 %v3017
    %v3088 = vunpack.c.l.b16 %v3018
    %v3089 = vunpack.c.l.b16 %v3019
    %v3090 = vunpack.c.l.b16 %v3020
    %v3091 = vunpack.c.l.b16 %v3021
    %v3092 = vunpack.c.l.b16 %v3022
    %v3093 = vunpack.c.l.b16 %v3023
    %v3094 = vunpack.c.l.b16 %v3024
    %v3095 = vpack.c.b16 %v3088, %v3087
    %v3096 = vpack.c.b16 %v3090, %v3089
    %v3097 = vpack.c.b16 %v3092, %v3091
    %v3098 = vpack.c.b16 %v3094, %v3093
    %v3135 = vunpack.c.l.b16 %v3025
    %v3136 = vunpack.c.h.b16 %v3025
    %v3137 = vunpack.c.l.b16 %v3026
    %v3138 = vunpack.c.h.b16 %v3026
    %v3139 = vunpack.c.l.b16 %v3027
    %v3140 = vunpack.c.h.b16 %v3027
    %v3141 = vunpack.c.l.b16 %v3028
    %v3142 = vunpack.c.h.b16 %v3028
    %v3143 = vunpack.c.l.b16 %v3029
    %v3144 = vunpack.c.h.b16 %v3029
    %v3145 = vunpack.c.l.b16 %v3030
    %v3146 = vunpack.c.h.b16 %v3030
    %v3147 = vunpack.c.l.b16 %v3031
    %v3148 = vunpack.c.h.b16 %v3031
    %v3149 = vunpack.c.l.b16 %v3032
    %v3150 = vunpack.c.h.b16 %v3032
    %v3151 = vunpack.c.l.b16 %v3033
    %v3152 = vunpack.c.h.b16 %v3033
    %v3153 = vunpack.c.l.b16 %v3034
    %v3154 = vunpack.c.h.b16 %v3034
    %v3155 = vunpack.c.l.b16 %v3035
    %v3156 = vunpack.c.h.b16 %v3035
    %v3157 = vunpack.c.l.b16 %v3036
    %v3158 = vunpack.c.h.b16 %v3036
    %v3159 = vunpack.c.l.b16 %v3037
    %v3160 = vunpack.c.h.b16 %v3037
    %v3161 = vunpack.c.l.b16 %v3038
    %v3162 = vunpack.c.h.b16 %v3038
    %v3163 = vunpack.c.l.b16 %v3039
    %v3164 = vunpack.c.h.b16 %v3039
    %v3165 = vunpack.c.l.b16 %v3040
    %v3166 = vunpack.c.h.b16 %v3040
    %v3167 = vunpack.c.l.b16 %v3041
    %v3168 = vunpack.c.h.b16 %v3041
    %v3169 = vunpack.c.l.b16 %v3042
    %v3170 = vunpack.c.h.b16 %v3042
    %v3171 = vunpack.c.l.b16 %v3043
    %v3172 = vunpack.c.h.b16 %v3043
    %v3173 = vunpack.c.l.b16 %v3044
    %v3174 = vunpack.c.h.b16 %v3044
    %v3175 = vunpack.c.l.b16 %v3045
    %v3176 = vunpack.c.h.b16 %v3045
    %v3177 = vunpack.c.l.b16 %v3046
    %v3178 = vunpack.c.h.b16 %v3046
    %v3179 = vunpack.c.l.b16 %v3047
    %v3180 = vunpack.c.h.b16 %v3047
    %v3181 = vunpack.c.l.b16 %v3048
    %v3182 = vunpack.c.h.b16 %v3048
    %v3183 = vunpack.c.l.b16 %v3049
    %v3184 = vunpack.c.h.b16 %v3049
    %v3185 = vunpack.c.l.b16 %v3050
    %v3186 = vunpack.c.h.b16 %v3050
    %v3187 = vunpack.c.l.b16 %v3051
    %v3188 = vunpack.c.h.b16 %v3051
    %v3189 = vunpack.c.l.b16 %v3052
    %v3190 = vunpack.c.h.b16 %v3052
    %v3191 = vunpack.c.l.b16 %v3053
    %v3192 = vunpack.c.h.b16 %v3053
    %v3193 = vunpack.c.l.b16 %v3054
    %v3194 = vunpack.c.h.b16 %v3054
    %v3195 = vunpack.c.l.b16 %v3055
    %v3196 = vunpack.c.h.b16 %v3055
    %v3197 = vunpack.c.l.b16 %v3056
    %v3198 = vunpack.c.h.b16 %v3056
    %v3199 = vpack.c.b16 %v3139, %v3135
    %v3200 = vpack.c.b16 %v3140, %v3136
    %v3201 = vpack.c.b16 %v3141, %v3137
    %v3202 = vpack.c.b16 %v3142, %v3138
    %v3203 = vpack.c.b16 %v3147, %v3143
    %v3204 = vpack.c.b16 %v3148, %v3144
    %v3205 = vpack.c.b16 %v3149, %v3145
    %v3206 = vpack.c.b16 %v3150, %v3146
    %v3207 = vpack.c.b16 %v3155, %v3151
    %v3208 = vpack.c.b16 %v3156, %v3152
    %v3209 = vpack.c.b16 %v3157, %v3153
    %v3210 = vpack.c.b16 %v3158, %v3154
    %v3211 = vpack.c.b16 %v3163, %v3159
    %v3212 = vpack.c.b16 %v3164, %v3160
    %v3213 = vpack.c.b16 %v3165, %v3161
    %v3214 = vpack.c.b16 %v3166, %v3162
    %v3215 = vpack.c.b16 %v3171, %v3167
    %v3216 = vpack.c.b16 %v3172, %v3168
    %v3217 = vpack.c.b16 %v3173, %v3169
    %v3218 = vpack.c.b16 %v3174, %v3170
    %v3219 = vpack.c.b16 %v3179, %v3175
    %v3220 = vpack.c.b16 %v3180, %v3176
    %v3221 = vpack.c.b16 %v3181, %v3177
    %v3222 = vpack.c.b16 %v3182, %v3178
    %v3223 = vpack.c.b16 %v3187, %v3183
    %v3224 = vpack.c.b16 %v3188, %v3184
    %v3225 = vpack.c.b16 %v3189, %v3185
    %v3226 = vpack.c.b16 %v3190, %v3186
    %v3227 = vpack.c.b16 %v3195, %v3191
    %v3228 = vpack.c.b16 %v3196, %v3192
    %v3229 = vpack.c.b16 %v3197, %v3193
    %v3230 = vpack.c.b16 %v3198, %v3194
    %3263 = vmatprep.subr.bf16.mxu0 %v3228
    %3264 = vmatpush1.bf16.msra.mxu0 %v3227
    %3265 = vmatprep.subr.bf16.mxu0 %v3224
    %3266 = vmatpush1.bf16.msra.mxu0 %v3223
    %3267 = vmatprep.subr.bf16.mxu0 %v3220
    %3268 = vmatpush1.bf16.msra.mxu0 %v3219
    %3269 = vmatprep.subr.bf16.mxu0 %v3216
    %3270 = vmatpush1.bf16.msra.mxu0 %v3215
    %3271 = vmatprep.subr.bf16.mxu0 %v3212
    %3272 = vmatpush1.bf16.msra.mxu0 %v3211
    %3273 = vmatprep.subr.bf16.mxu0 %v3208
    %3274 = vmatpush1.bf16.msra.mxu0 %v3207
    %3275 = vmatprep.subr.bf16.mxu0 %v3204
    %3276 = vmatpush1.bf16.msra.mxu0 %v3203
    %3277 = vmatprep.subr.bf16.mxu0 %v3200
    %3278 = vmatpush1.bf16.msra.mxu0 %v3199
    %3279 = vmatprep.subr.bf16.mxu0 0
    %3280 = vmatpush2.bf16.msra.mxu0 0
    %3281 = vmatprep.subr.bf16.mxu0 0
    %3282 = vmatpush2.bf16.msra.mxu0 0
    %3283 = vmatprep.subr.bf16.mxu0 0
    %3284 = vmatpush2.bf16.msra.mxu0 0
    %3285 = vmatprep.subr.bf16.mxu0 0
    %3286 = vmatpush2.bf16.msra.mxu0 0
    %3287 = vmatprep.subr.bf16.mxu0 0
    %3288 = vmatpush2.bf16.msra.mxu0 0
    %3289 = vmatprep.subr.bf16.mxu0 0
    %3290 = vmatpush2.bf16.msra.mxu0 0
    %3291 = vmatprep.subr.bf16.mxu0 0
    %3292 = vmatpush2.bf16.msra.mxu0 0
    %3293 = vmatprep.subr.bf16.mxu0 0
    %3294 = vmatpush2.bf16.msra.mxu0 0
    %3295 = vmatprep.mubr.bf16.mxu0 0
    %3296 = vmatmul.mubr.bf16.gmra.mxu0 %v3095
    %v3297 = vpop.f32.mrf.mxu0
    %v3298 = vadd.f32 %v3062, %v3297
    %v3299 = vpop.f32.mrf.mxu0
    %v3300 = vadd.f32 %v3066, %v3299
    %v3301 = vpop.f32.mrf.mxu0
    %v3302 = vadd.f32 %v3062, %v3301
    %v3303 = vpop.f32.mrf.mxu0
    %v3304 = vadd.f32 %v3066, %v3303
    %3305 = vmatprep.mubr.bf16.mxu0 0
    %3306 = vmatmul.mubr.bf16.gmra.mxu0 %v3096
    %v3307 = vpop.f32.mrf.mxu0
    %v3308 = vadd.f32 %v3062, %v3307
    %v3309 = vpop.f32.mrf.mxu0
    %v3310 = vadd.f32 %v3066, %v3309
    %v3311 = vpop.f32.mrf.mxu0
    %v3312 = vadd.f32 %v3062, %v3311
    %v3313 = vpop.f32.mrf.mxu0
    %v3314 = vadd.f32 %v3066, %v3313
    %3315 = vmatprep.mubr.bf16.mxu0 0
    %3316 = vmatmul.mubr.bf16.gmra.mxu0 %v3097
    %v3317 = vpop.f32.mrf.mxu0
    %v3318 = vadd.f32 %v3062, %v3317
    %v3319 = vpop.f32.mrf.mxu0
    %v3320 = vadd.f32 %v3066, %v3319
    %v3321 = vpop.f32.mrf.mxu0
    %v3322 = vadd.f32 %v3062, %v3321
    %v3323 = vpop.f32.mrf.mxu0
    %v3324 = vadd.f32 %v3066, %v3323
    %3325 = vmatprep.mubr.bf16.mxu0 0
    %3326 = vmatmul.mubr.bf16.gmra.mxu0 %v3098
    %v3327 = vpop.f32.mrf.mxu0
    %v3328 = vadd.f32 %v3062, %v3327
    %v3329 = vpop.f32.mrf.mxu0
    %v3330 = vadd.f32 %v3066, %v3329
    %v3331 = vpop.f32.mrf.mxu0
    %v3332 = vadd.f32 %v3062, %v3331
    %v3333 = vpop.f32.mrf.mxu0
    %v3334 = vadd.f32 %v3066, %v3333
    %3335 = vdwg.mxu0
    %3336 = vmatprep.subr.bf16.mxu0 %v3230
    %3337 = vmatpush1.bf16.msra.mxu0 %v3229
    %3338 = vmatprep.subr.bf16.mxu0 %v3226
    %3339 = vmatpush1.bf16.msra.mxu0 %v3225
    %3340 = vmatprep.subr.bf16.mxu0 %v3222
    %3341 = vmatpush1.bf16.msra.mxu0 %v3221
    %3342 = vmatprep.subr.bf16.mxu0 %v3218
    %3343 = vmatpush1.bf16.msra.mxu0 %v3217
    %3344 = vmatprep.subr.bf16.mxu0 %v3214
    %3345 = vmatpush1.bf16.msra.mxu0 %v3213
    %3346 = vmatprep.subr.bf16.mxu0 %v3210
    %3347 = vmatpush1.bf16.msra.mxu0 %v3209
    %3348 = vmatprep.subr.bf16.mxu0 %v3206
    %3349 = vmatpush1.bf16.msra.mxu0 %v3205
    %3350 = vmatprep.subr.bf16.mxu0 %v3202
    %3351 = vmatpush1.bf16.msra.mxu0 %v3201
    %3352 = vmatprep.subr.bf16.mxu0 0
    %3353 = vmatpush2.bf16.msra.mxu0 0
    %3354 = vmatprep.subr.bf16.mxu0 0
    %3355 = vmatpush2.bf16.msra.mxu0 0
    %3356 = vmatprep.subr.bf16.mxu0 0
    %3357 = vmatpush2.bf16.msra.mxu0 0
    %3358 = vmatprep.subr.bf16.mxu0 0
    %3359 = vmatpush2.bf16.msra.mxu0 0
    %3360 = vmatprep.subr.bf16.mxu0 0
    %3361 = vmatpush2.bf16.msra.mxu0 0
    %3362 = vmatprep.subr.bf16.mxu0 0
    %3363 = vmatpush2.bf16.msra.mxu0 0
    %3364 = vmatprep.subr.bf16.mxu0 0
    %3365 = vmatpush2.bf16.msra.mxu0 0
    %3366 = vmatprep.subr.bf16.mxu0 0
    %3367 = vmatpush2.bf16.msra.mxu0 0
    %3368 = vmatprep.mubr.bf16.mxu0 0
    %3369 = vmatmul.mubr.bf16.gmra.mxu0 %v3095
    %v3370 = vpop.f32.mrf.mxu0
    %v3371 = vadd.f32 %v3070, %v3370
    %v3372 = vpop.f32.mrf.mxu0
    %v3373 = vadd.f32 %v3074, %v3372
    %v3374 = vpop.f32.mrf.mxu0
    %v3375 = vadd.f32 %v3070, %v3374
    %v3376 = vpop.f32.mrf.mxu0
    %v3377 = vadd.f32 %v3074, %v3376
    %3378 = vmatprep.mubr.bf16.mxu0 0
    %3379 = vmatmul.mubr.bf16.gmra.mxu0 %v3096
    %v3380 = vpop.f32.mrf.mxu0
    %v3381 = vadd.f32 %v3070, %v3380
    %v3382 = vpop.f32.mrf.mxu0
    %v3383 = vadd.f32 %v3074, %v3382
    %v3384 = vpop.f32.mrf.mxu0
    %v3385 = vadd.f32 %v3070, %v3384
    %v3386 = vpop.f32.mrf.mxu0
    %v3387 = vadd.f32 %v3074, %v3386
    %3388 = vmatprep.mubr.bf16.mxu0 0
    %3389 = vmatmul.mubr.bf16.gmra.mxu0 %v3097
    %v3390 = vpop.f32.mrf.mxu0
    %v3391 = vadd.f32 %v3070, %v3390
    %v3392 = vpop.f32.mrf.mxu0
    %v3393 = vadd.f32 %v3074, %v3392
    %v3394 = vpop.f32.mrf.mxu0
    %v3395 = vadd.f32 %v3070, %v3394
    %v3396 = vpop.f32.mrf.mxu0
    %v3397 = vadd.f32 %v3074, %v3396
    %3398 = vmatprep.mubr.bf16.mxu0 0
    %3399 = vmatmul.mubr.bf16.gmra.mxu0 %v3098
    %v3400 = vpop.f32.mrf.mxu0
    %v3401 = vadd.f32 %v3070, %v3400
    %v3402 = vpop.f32.mrf.mxu0
    %v3403 = vadd.f32 %v3074, %v3402
    %v3404 = vpop.f32.mrf.mxu0
    %v3405 = vadd.f32 %v3070, %v3404
    %v3406 = vpop.f32.mrf.mxu0
    %v3407 = vadd.f32 %v3074, %v3406
    %3408 = vdwg.mxu0
    %3409 = vst [vmem:[#allocation3] sm:$0xff] %v3298
    %3410 = vst [vmem:[#allocation3 + $0x8] sm:$0xff] %v3300
    %3411 = vst [vmem:[#allocation3 + $0x10] sm:$0xff] %v3371
    %3412 = vst [vmem:[#allocation3 + $0x18] sm:$0xff] %v3373
    %3413 = vst [vmem:[#allocation3 + $0x20] sm:$0xff] %v3302
    %3414 = vst [vmem:[#allocation3 + $0x28] sm:$0xff] %v3304
    %3415 = vst [vmem:[#allocation3 + $0x30] sm:$0xff] %v3375
    %3416 = vst [vmem:[#allocation3 + $0x38] sm:$0xff] %v3377
    %3417 = vst [vmem:[#allocation3 + $0x40] sm:$0xff] %v3308
    %3418 = vst [vmem:[#allocation3 + $0x48] sm:$0xff] %v3310
    %3419 = vst [vmem:[#allocation3 + $0x50] sm:$0xff] %v3381
    %3420 = vst [vmem:[#allocation3 + $0x58] sm:$0xff] %v3383
    %3421 = vst [vmem:[#allocation3 + $0x60] sm:$0xff] %v3312
    %3422 = vst [vmem:[#allocation3 + $0x68] sm:$0xff] %v3314
    %3423 = vst [vmem:[#allocation3 + $0x70] sm:$0xff] %v3385
    %3424 = vst [vmem:[#allocation3 + $0x78] sm:$0xff] %v3387
    %3425 = vst [vmem:[#allocation3 + $0x80] sm:$0xff] %v3318
    %3426 = vst [vmem:[#allocation3 + $0x88] sm:$0xff] %v3320
    %3427 = vst [vmem:[#allocation3 + $0x90] sm:$0xff] %v3391
    %3428 = vst [vmem:[#allocation3 + $0x98] sm:$0xff] %v3393
    %3429 = vst [vmem:[#allocation3 + $0xa0] sm:$0xff] %v3322
    %3430 = vst [vmem:[#allocation3 + $0xa8] sm:$0xff] %v3324
    %3431 = vst [vmem:[#allocation3 + $0xb0] sm:$0xff] %v3395
    %3432 = vst [vmem:[#allocation3 + $0xb8] sm:$0xff] %v3397
    %3433 = vst [vmem:[#allocation3 + $0xc0] sm:$0xff] %v3328
    %3434 = vst [vmem:[#allocation3 + $0xc8] sm:$0xff] %v3330
    %3435 = vst [vmem:[#allocation3 + $0xd0] sm:$0xff] %v3401
    %3436 = vst [vmem:[#allocation3 + $0xd8] sm:$0xff] %v3403
    %3437 = vst [vmem:[#allocation3 + $0xe0] sm:$0xff] %v3332
    %3438 = vst [vmem:[#allocation3 + $0xe8] sm:$0xff] %v3334
    %3439 = vst [vmem:[#allocation3 + $0xf0] sm:$0xff] %v3405
    %3440 = vst [vmem:[#allocation3 + $0xf8] sm:$0xff] %v3407
    %v3441 = vld [vmem:[#allocation12] sm:$0xff]
    %v3442 = vld [vmem:[#allocation12 + $0x8] sm:$0xff]
    %v3443 = vld [vmem:[#allocation12 + $0x10] sm:$0xff]
    %v3444 = vld [vmem:[#allocation12 + $0x18] sm:$0xff]
    %v3445 = vld [vmem:[#allocation12 + $0x20] sm:$0xff]
    %v3446 = vld [vmem:[#allocation12 + $0x28] sm:$0xff]
    %v3447 = vld [vmem:[#allocation12 + $0x30] sm:$0xff]
    %v3448 = vld [vmem:[#allocation12 + $0x38] sm:$0xff]
    %v3449 = vld [vmem:[#allocation12 + $0x40] sm:$0xff]
    %v3450 = vld [vmem:[#allocation12 + $0x48] sm:$0xff]
    %v3451 = vld [vmem:[#allocation12 + $0x50] sm:$0xff]
    %v3452 = vld [vmem:[#allocation12 + $0x58] sm:$0xff]
    %v3453 = vld [vmem:[#allocation12 + $0x60] sm:$0xff]
    %v3454 = vld [vmem:[#allocation12 + $0x68] sm:$0xff]
    %v3455 = vld [vmem:[#allocation12 + $0x70] sm:$0xff]
    %v3456 = vld [vmem:[#allocation12 + $0x78] sm:$0xff]
    %v3457 = vld [vmem:[#allocation12 + $0x80] sm:$0xff]
    %v3458 = vld [vmem:[#allocation12 + $0x88] sm:$0xff]
    %v3459 = vld [vmem:[#allocation12 + $0x90] sm:$0xff]
    %v3460 = vld [vmem:[#allocation12 + $0x98] sm:$0xff]
    %v3461 = vld [vmem:[#allocation12 + $0xa0] sm:$0xff]
    %v3462 = vld [vmem:[#allocation12 + $0xa8] sm:$0xff]
    %v3463 = vld [vmem:[#allocation12 + $0xb0] sm:$0xff]
    %v3464 = vld [vmem:[#allocation12 + $0xb8] sm:$0xff]
    %v3465 = vld [vmem:[#allocation12 + $0xc0] sm:$0xff]
    %v3466 = vld [vmem:[#allocation12 + $0xc8] sm:$0xff]
    %v3467 = vld [vmem:[#allocation12 + $0xd0] sm:$0xff]
    %v3468 = vld [vmem:[#allocation12 + $0xd8] sm:$0xff]
    %v3469 = vld [vmem:[#allocation12 + $0xe0] sm:$0xff]
    %v3470 = vld [vmem:[#allocation12 + $0xe8] sm:$0xff]
    %v3471 = vld [vmem:[#allocation12 + $0xf0] sm:$0xff]
    %v3472 = vld [vmem:[#allocation12 + $0xf8] sm:$0xff]
    %v3505 = vunpack.c.l.b16 %v3441
    %v3506 = vunpack.c.h.b16 %v3441
    %v3507 = vunpack.c.l.b16 %v3442
    %v3508 = vunpack.c.h.b16 %v3442
    %v3509 = vunpack.c.l.b16 %v3443
    %v3510 = vunpack.c.h.b16 %v3443
    %v3511 = vunpack.c.l.b16 %v3444
    %v3512 = vunpack.c.h.b16 %v3444
    %v3513 = vunpack.c.l.b16 %v3445
    %v3514 = vunpack.c.h.b16 %v3445
    %v3515 = vunpack.c.l.b16 %v3446
    %v3516 = vunpack.c.h.b16 %v3446
    %v3517 = vunpack.c.l.b16 %v3447
    %v3518 = vunpack.c.h.b16 %v3447
    %v3519 = vunpack.c.l.b16 %v3448
    %v3520 = vunpack.c.h.b16 %v3448
    %v3521 = vunpack.c.l.b16 %v3449
    %v3522 = vunpack.c.h.b16 %v3449
    %v3523 = vunpack.c.l.b16 %v3450
    %v3524 = vunpack.c.h.b16 %v3450
    %v3525 = vunpack.c.l.b16 %v3451
    %v3526 = vunpack.c.h.b16 %v3451
    %v3527 = vunpack.c.l.b16 %v3452
    %v3528 = vunpack.c.h.b16 %v3452
    %v3529 = vunpack.c.l.b16 %v3453
    %v3530 = vunpack.c.h.b16 %v3453
    %v3531 = vunpack.c.l.b16 %v3454
    %v3532 = vunpack.c.h.b16 %v3454
    %v3533 = vunpack.c.l.b16 %v3455
    %v3534 = vunpack.c.h.b16 %v3455
    %v3535 = vunpack.c.l.b16 %v3456
    %v3536 = vunpack.c.h.b16 %v3456
    %v3537 = vunpack.c.l.b16 %v3457
    %v3538 = vunpack.c.h.b16 %v3457
    %v3539 = vunpack.c.l.b16 %v3458
    %v3540 = vunpack.c.h.b16 %v3458
    %v3541 = vunpack.c.l.b16 %v3459
    %v3542 = vunpack.c.h.b16 %v3459
    %v3543 = vunpack.c.l.b16 %v3460
    %v3544 = vunpack.c.h.b16 %v3460
    %v3545 = vunpack.c.l.b16 %v3461
    %v3546 = vunpack.c.h.b16 %v3461
    %v3547 = vunpack.c.l.b16 %v3462
    %v3548 = vunpack.c.h.b16 %v3462
    %v3549 = vunpack.c.l.b16 %v3463
    %v3550 = vunpack.c.h.b16 %v3463
    %v3551 = vunpack.c.l.b16 %v3464
    %v3552 = vunpack.c.h.b16 %v3464
    %v3553 = vunpack.c.l.b16 %v3465
    %v3554 = vunpack.c.h.b16 %v3465
    %v3555 = vunpack.c.l.b16 %v3466
    %v3556 = vunpack.c.h.b16 %v3466
    %v3557 = vunpack.c.l.b16 %v3467
    %v3558 = vunpack.c.h.b16 %v3467
    %v3559 = vunpack.c.l.b16 %v3468
    %v3560 = vunpack.c.h.b16 %v3468
    %v3561 = vunpack.c.l.b16 %v3469
    %v3562 = vunpack.c.h.b16 %v3469
    %v3563 = vunpack.c.l.b16 %v3470
    %v3564 = vunpack.c.h.b16 %v3470
    %v3565 = vunpack.c.l.b16 %v3471
    %v3566 = vunpack.c.h.b16 %v3471
    %v3567 = vunpack.c.l.b16 %v3472
    %v3568 = vunpack.c.h.b16 %v3472
    %v3569 = vpack.c.b16 %v3509, %v3505
    %v3570 = vpack.c.b16 %v3510, %v3506
    %v3571 = vpack.c.b16 %v3511, %v3507
    %v3572 = vpack.c.b16 %v3512, %v3508
    %v3573 = vpack.c.b16 %v3517, %v3513
    %v3574 = vpack.c.b16 %v3518, %v3514
    %v3575 = vpack.c.b16 %v3519, %v3515
    %v3576 = vpack.c.b16 %v3520, %v3516
    %v3577 = vpack.c.b16 %v3525, %v3521
    %v3578 = vpack.c.b16 %v3526, %v3522
    %v3579 = vpack.c.b16 %v3527, %v3523
    %v3580 = vpack.c.b16 %v3528, %v3524
    %v3581 = vpack.c.b16 %v3533, %v3529
    %v3582 = vpack.c.b16 %v3534, %v3530
    %v3583 = vpack.c.b16 %v3535, %v3531
    %v3584 = vpack.c.b16 %v3536, %v3532
    %v3585 = vpack.c.b16 %v3541, %v3537
    %v3586 = vpack.c.b16 %v3542, %v3538
    %v3587 = vpack.c.b16 %v3543, %v3539
    %v3588 = vpack.c.b16 %v3544, %v3540
    %v3589 = vpack.c.b16 %v3549, %v3545
    %v3590 = vpack.c.b16 %v3550, %v3546
    %v3591 = vpack.c.b16 %v3551, %v3547
    %v3592 = vpack.c.b16 %v3552, %v3548
    %v3593 = vpack.c.b16 %v3557, %v3553
    %v3594 = vpack.c.b16 %v3558, %v3554
    %v3595 = vpack.c.b16 %v3559, %v3555
    %v3596 = vpack.c.b16 %v3560, %v3556
    %v3597 = vpack.c.b16 %v3565, %v3561
    %v3598 = vpack.c.b16 %v3566, %v3562
    %v3599 = vpack.c.b16 %v3567, %v3563
    %v3600 = vpack.c.b16 %v3568, %v3564
    %3633 = vmatprep.subr.bf16.mxu0 %v3598
    %3634 = vmatpush1.bf16.msra.mxu0 %v3597
    %3635 = vmatprep.subr.bf16.mxu0 %v3594
    %3636 = vmatpush1.bf16.msra.mxu0 %v3593
    %3637 = vmatprep.subr.bf16.mxu0 %v3590
    %3638 = vmatpush1.bf16.msra.mxu0 %v3589
    %3639 = vmatprep.subr.bf16.mxu0 %v3586
    %3640 = vmatpush1.bf16.msra.mxu0 %v3585
    %3641 = vmatprep.subr.bf16.mxu0 %v3582
    %3642 = vmatpush1.bf16.msra.mxu0 %v3581
    %3643 = vmatprep.subr.bf16.mxu0 %v3578
    %3644 = vmatpush1.bf16.msra.mxu0 %v3577
    %3645 = vmatprep.subr.bf16.mxu0 %v3574
    %3646 = vmatpush1.bf16.msra.mxu0 %v3573
    %3647 = vmatprep.subr.bf16.mxu0 %v3570
    %3648 = vmatpush1.bf16.msra.mxu0 %v3569
    %3649 = vmatprep.subr.bf16.mxu0 0
    %3650 = vmatpush2.bf16.msra.mxu0 0
    %3651 = vmatprep.subr.bf16.mxu0 0
    %3652 = vmatpush2.bf16.msra.mxu0 0
    %3653 = vmatprep.subr.bf16.mxu0 0
    %3654 = vmatpush2.bf16.msra.mxu0 0
    %3655 = vmatprep.subr.bf16.mxu0 0
    %3656 = vmatpush2.bf16.msra.mxu0 0
    %3657 = vmatprep.subr.bf16.mxu0 0
    %3658 = vmatpush2.bf16.msra.mxu0 0
    %3659 = vmatprep.subr.bf16.mxu0 0
    %3660 = vmatpush2.bf16.msra.mxu0 0
    %3661 = vmatprep.subr.bf16.mxu0 0
    %3662 = vmatpush2.bf16.msra.mxu0 0
    %3663 = vmatprep.subr.bf16.mxu0 0
    %3664 = vmatpush2.bf16.msra.mxu0 0
    %3665 = vmatprep.mubr.bf16.mxu0 0
    %3666 = vmatmul.mubr.bf16.gmra.mxu0 0
    %v3667 = vpop.f32.mrf.mxu0
    %v3668 = vadd.f32 0.0, %v3667
    %v3669 = vpop.f32.mrf.mxu0
    %v3670 = vadd.f32 0.0, %v3669
    %v3671 = vpop.f32.mrf.mxu0
    %v3672 = vpop.f32.mrf.mxu0
    %3673 = vdwg.mxu0
    %3674 = vmatprep.subr.bf16.mxu0 %v3600
    %3675 = vmatpush1.bf16.msra.mxu0 %v3599
    %3676 = vmatprep.subr.bf16.mxu0 %v3596
    %3677 = vmatpush1.bf16.msra.mxu0 %v3595
    %3678 = vmatprep.subr.bf16.mxu0 %v3592
    %3679 = vmatpush1.bf16.msra.mxu0 %v3591
    %3680 = vmatprep.subr.bf16.mxu0 %v3588
    %3681 = vmatpush1.bf16.msra.mxu0 %v3587
    %3682 = vmatprep.subr.bf16.mxu0 %v3584
    %3683 = vmatpush1.bf16.msra.mxu0 %v3583
    %3684 = vmatprep.subr.bf16.mxu0 %v3580
    %3685 = vmatpush1.bf16.msra.mxu0 %v3579
    %3686 = vmatprep.subr.bf16.mxu0 %v3576
    %3687 = vmatpush1.bf16.msra.mxu0 %v3575
    %3688 = vmatprep.subr.bf16.mxu0 %v3572
    %3689 = vmatpush1.bf16.msra.mxu0 %v3571
    %3690 = vmatprep.subr.bf16.mxu0 0
    %3691 = vmatpush2.bf16.msra.mxu0 0
    %3692 = vmatprep.subr.bf16.mxu0 0
    %3693 = vmatpush2.bf16.msra.mxu0 0
    %3694 = vmatprep.subr.bf16.mxu0 0
    %3695 = vmatpush2.bf16.msra.mxu0 0
    %3696 = vmatprep.subr.bf16.mxu0 0
    %3697 = vmatpush2.bf16.msra.mxu0 0
    %3698 = vmatprep.subr.bf16.mxu0 0
    %3699 = vmatpush2.bf16.msra.mxu0 0
    %3700 = vmatprep.subr.bf16.mxu0 0
    %3701 = vmatpush2.bf16.msra.mxu0 0
    %3702 = vmatprep.subr.bf16.mxu0 0
    %3703 = vmatpush2.bf16.msra.mxu0 0
    %3704 = vmatprep.subr.bf16.mxu0 0
    %3705 = vmatpush2.bf16.msra.mxu0 0
    %3706 = vmatprep.mubr.bf16.mxu0 0
    %3707 = vmatmul.mubr.bf16.gmra.mxu0 0
    %v3708 = vpop.f32.mrf.mxu0
    %v3709 = vadd.f32 0.0, %v3708
    %v3710 = vpop.f32.mrf.mxu0
    %v3711 = vadd.f32 0.0, %v3710
    %v3712 = vpop.f32.mrf.mxu0
    %v3713 = vpop.f32.mrf.mxu0
    %3714 = vdwg.mxu0
    %v3715 = vld [vmem:[#allocation3] sm:$0xff]
    %v3716 = vld [vmem:[#allocation3 + $0x8] sm:$0xff]
    %v3717 = vld [vmem:[#allocation3 + $0x10] sm:$0xff]
    %v3718 = vld [vmem:[#allocation3 + $0x18] sm:$0xff]
    %v3719 = vadd.f32 %v3715, %v3668
    %v3720 = vadd.f32 %v3716, %v3670
    %v3721 = vadd.f32 %v3717, %v3709
    %v3722 = vadd.f32 %v3718, %v3711
    %v3723 = vxor.u32 %v3719, 2147483648
    %v3724 = vmul.f32 %v3723, 1.442695
    %v3725 = vpow.pop %v3724
    %v3726 = vadd.f32 %v3725, 1.0
    %v3727 = vrcp.pop %v3726
    %v3728 = vmul.f32 1.0, %v3727
    %v3729 = vxor.u32 %v3720, 2147483648
    %v3730 = vmul.f32 %v3729, 1.442695
    %v3731 = vpow.pop %v3730
    %v3732 = vadd.f32 %v3731, 1.0
    %v3733 = vrcp.pop %v3732
    %v3734 = vmul.f32 1.0, %v3733
    %v3735 = vtanh.pop %v3721
    %v3736 = vxor.u32 %v3722, 2147483648
    %v3737 = vmul.f32 %v3736, 1.442695
    %v3738 = vpow.pop %v3737
    %v3739 = vadd.f32 %v3738, 1.0
    %v3740 = vrcp.pop %v3739
    %v3741 = vmul.f32 1.0, %v3740
    %v3742 = vmul.f32 %v3734, 0.0
    %v3743 = vmul.f32 %v3728, %v3735
    %v3744 = vadd.f32 %v3742, %v3743
    %v3745 = vtanh.pop %v3744
    %v3746 = vmul.f32 %v3741, %v3745
    %v3747 = vpack.c.bf16 %v3746, %v3746
    %3748 = vmatprep.subr.bf16.mxu0 %v3598
    %3749 = vmatpush1.bf16.msra.mxu0 %v3597
    %3750 = vmatprep.subr.bf16.mxu0 %v3594
    %3751 = vmatpush1.bf16.msra.mxu0 %v3593
    %3752 = vmatprep.subr.bf16.mxu0 %v3590
    %3753 = vmatpush1.bf16.msra.mxu0 %v3589
    %3754 = vmatprep.subr.bf16.mxu0 %v3586
    %3755 = vmatpush1.bf16.msra.mxu0 %v3585
    %3756 = vmatprep.subr.bf16.mxu0 %v3582
    %3757 = vmatpush1.bf16.msra.mxu0 %v3581
    %3758 = vmatprep.subr.bf16.mxu0 %v3578
    %3759 = vmatpush1.bf16.msra.mxu0 %v3577
    %3760 = vmatprep.subr.bf16.mxu0 %v3574
    %3761 = vmatpush1.bf16.msra.mxu0 %v3573
    %3762 = vmatprep.subr.bf16.mxu0 %v3570
    %3763 = vmatpush1.bf16.msra.mxu0 %v3569
    %3764 = vmatprep.subr.bf16.mxu0 0
    %3765 = vmatpush2.bf16.msra.mxu0 0
    %3766 = vmatprep.subr.bf16.mxu0 0
    %3767 = vmatpush2.bf16.msra.mxu0 0
    %3768 = vmatprep.subr.bf16.mxu0 0
    %3769 = vmatpush2.bf16.msra.mxu0 0
    %3770 = vmatprep.subr.bf16.mxu0 0
    %3771 = vmatpush2.bf16.msra.mxu0 0
    %3772 = vmatprep.subr.bf16.mxu0 0
    %3773 = vmatpush2.bf16.msra.mxu0 0
    %3774 = vmatprep.subr.bf16.mxu0 0
    %3775 = vmatpush2.bf16.msra.mxu0 0
    %3776 = vmatprep.subr.bf16.mxu0 0
    %3777 = vmatpush2.bf16.msra.mxu0 0
    %3778 = vmatprep.subr.bf16.mxu0 0
    %3779 = vmatpush2.bf16.msra.mxu0 0
    %3780 = vmatprep.mubr.bf16.mxu0 0
    %3781 = vmatmul.mubr.bf16.gmra.mxu0 %v3747
    %v3782 = vpop.f32.mrf.mxu0
    %v3783 = vadd.f32 0.0, %v3782
    %v3784 = vpop.f32.mrf.mxu0
    %v3785 = vadd.f32 0.0, %v3784
    %v3786 = vpop.f32.mrf.mxu0
    %v3787 = vpop.f32.mrf.mxu0
    %3788 = vdwg.mxu0
    %3789 = vmatprep.subr.bf16.mxu0 %v3600
    %3790 = vmatpush1.bf16.msra.mxu0 %v3599
    %3791 = vmatprep.subr.bf16.mxu0 %v3596
    %3792 = vmatpush1.bf16.msra.mxu0 %v3595
    %3793 = vmatprep.subr.bf16.mxu0 %v3592
    %3794 = vmatpush1.bf16.msra.mxu0 %v3591
    %3795 = vmatprep.subr.bf16.mxu0 %v3588
    %3796 = vmatpush1.bf16.msra.mxu0 %v3587
    %3797 = vmatprep.subr.bf16.mxu0 %v3584
    %3798 = vmatpush1.bf16.msra.mxu0 %v3583
    %3799 = vmatprep.subr.bf16.mxu0 %v3580
    %3800 = vmatpush1.bf16.msra.mxu0 %v3579
    %3801 = vmatprep.subr.bf16.mxu0 %v3576
    %3802 = vmatpush1.bf16.msra.mxu0 %v3575
    %3803 = vmatprep.subr.bf16.mxu0 %v3572
    %3804 = vmatpush1.bf16.msra.mxu0 %v3571
    %3805 = vmatprep.subr.bf16.mxu0 0
    %3806 = vmatpush2.bf16.msra.mxu0 0
    %3807 = vmatprep.subr.bf16.mxu0 0
    %3808 = vmatpush2.bf16.msra.mxu0 0
    %3809 = vmatprep.subr.bf16.mxu0 0
    %3810 = vmatpush2.bf16.msra.mxu0 0
    %3811 = vmatprep.subr.bf16.mxu0 0
    %3812 = vmatpush2.bf16.msra.mxu0 0
    %3813 = vmatprep.subr.bf16.mxu0 0
    %3814 = vmatpush2.bf16.msra.mxu0 0
    %3815 = vmatprep.subr.bf16.mxu0 0
    %3816 = vmatpush2.bf16.msra.mxu0 0
    %3817 = vmatprep.subr.bf16.mxu0 0
    %3818 = vmatpush2.bf16.msra.mxu0 0
    %3819 = vmatprep.subr.bf16.mxu0 0
    %3820 = vmatpush2.bf16.msra.mxu0 0
    %3821 = vmatprep.mubr.bf16.mxu0 0
    %3822 = vmatmul.mubr.bf16.gmra.mxu0 %v3747
    %v3823 = vpop.f32.mrf.mxu0
    %v3824 = vadd.f32 0.0, %v3823
    %v3825 = vpop.f32.mrf.mxu0
    %v3826 = vadd.f32 0.0, %v3825
    %v3827 = vpop.f32.mrf.mxu0
    %v3828 = vpop.f32.mrf.mxu0
    %3829 = vdwg.mxu0
    %v3830 = vld [vmem:[%s1121] sm:$0xff]
    %v3831 = vld [vmem:[%s1121 + $0x8] sm:$0xff]
    %v3832 = vld [vmem:[%s1121 + $0x10] sm:$0xff]
    %v3833 = vld [vmem:[%s1121 + $0x18] sm:$0xff]
    %v3834 = vadd.f32 %v3830, %v3783
    %v3835 = vadd.f32 %v3831, %v3785
    %v3836 = vadd.f32 %v3832, %v3824
    %v3837 = vadd.f32 %v3833, %v3826
    %v3838 = vxor.u32 %v3834, 2147483648
    %v3839 = vmul.f32 %v3838, 1.442695
    %v3840 = vpow.pop %v3839
    %v3841 = vadd.f32 %v3840, 1.0
    %v3842 = vrcp.pop %v3841
    %v3843 = vmul.f32 1.0, %v3842
    %v3844 = vxor.u32 %v3835, 2147483648
    %v3845 = vmul.f32 %v3844, 1.442695
    %v3846 = vpow.pop %v3845
    %v3847 = vadd.f32 %v3846, 1.0
    %v3848 = vrcp.pop %v3847
    %v3849 = vmul.f32 1.0, %v3848
    %v3850 = vtanh.pop %v3836
    %v3851 = vxor.u32 %v3837, 2147483648
    %v3852 = vmul.f32 %v3851, 1.442695
    %v3853 = vpow.pop %v3852
    %v3854 = vadd.f32 %v3853, 1.0
    %v3855 = vrcp.pop %v3854
    %v3856 = vmul.f32 1.0, %v3855
    %v3857 = vmul.f32 %v3849, %v3744
    %v3858 = vmul.f32 %v3843, %v3850
    %v3859 = vadd.f32 %v3857, %v3858
    %v3860 = vtanh.pop %v3859
    %v3861 = vmul.f32 %v3856, %v3860
    %v3862 = vpack.c.bf16 %v3861, %v3861
    %3863 = vmatprep.subr.bf16.mxu0 %v3598
    %3864 = vmatpush1.bf16.msra.mxu0 %v3597
    %3865 = vmatprep.subr.bf16.mxu0 %v3594
    %3866 = vmatpush1.bf16.msra.mxu0 %v3593
    %3867 = vmatprep.subr.bf16.mxu0 %v3590
    %3868 = vmatpush1.bf16.msra.mxu0 %v3589
    %3869 = vmatprep.subr.bf16.mxu0 %v3586
    %3870 = vmatpush1.bf16.msra.mxu0 %v3585
    %3871 = vmatprep.subr.bf16.mxu0 %v3582
    %3872 = vmatpush1.bf16.msra.mxu0 %v3581
    %3873 = vmatprep.subr.bf16.mxu0 %v3578
    %3874 = vmatpush1.bf16.msra.mxu0 %v3577
    %3875 = vmatprep.subr.bf16.mxu0 %v3574
    %3876 = vmatpush1.bf16.msra.mxu0 %v3573
    %3877 = vmatprep.subr.bf16.mxu0 %v3570
    %3878 = vmatpush1.bf16.msra.mxu0 %v3569
    %3879 = vmatprep.subr.bf16.mxu0 0
    %3880 = vmatpush2.bf16.msra.mxu0 0
    %3881 = vmatprep.subr.bf16.mxu0 0
    %3882 = vmatpush2.bf16.msra.mxu0 0
    %3883 = vmatprep.subr.bf16.mxu0 0
    %3884 = vmatpush2.bf16.msra.mxu0 0
    %3885 = vmatprep.subr.bf16.mxu0 0
    %3886 = vmatpush2.bf16.msra.mxu0 0
    %3887 = vmatprep.subr.bf16.mxu0 0
    %3888 = vmatpush2.bf16.msra.mxu0 0
    %3889 = vmatprep.subr.bf16.mxu0 0
    %3890 = vmatpush2.bf16.msra.mxu0 0
    %3891 = vmatprep.subr.bf16.mxu0 0
    %3892 = vmatpush2.bf16.msra.mxu0 0
    %3893 = vmatprep.subr.bf16.mxu0 0
    %3894 = vmatpush2.bf16.msra.mxu0 0
    %3895 = vmatprep.mubr.bf16.mxu0 0
    %3896 = vmatmul.mubr.bf16.gmra.mxu0 %v3862
    %v3897 = vpop.f32.mrf.mxu0
    %v3898 = vadd.f32 0.0, %v3897
    %v3899 = vpop.f32.mrf.mxu0
    %v3900 = vadd.f32 0.0, %v3899
    %v3901 = vpop.f32.mrf.mxu0
    %v3902 = vpop.f32.mrf.mxu0
    %3903 = vdwg.mxu0
    %3904 = vmatprep.subr.bf16.mxu0 %v3600
    %3905 = vmatpush1.bf16.msra.mxu0 %v3599
    %3906 = vmatprep.subr.bf16.mxu0 %v3596
    %3907 = vmatpush1.bf16.msra.mxu0 %v3595
    %3908 = vmatprep.subr.bf16.mxu0 %v3592
    %3909 = vmatpush1.bf16.msra.mxu0 %v3591
    %3910 = vmatprep.subr.bf16.mxu0 %v3588
    %3911 = vmatpush1.bf16.msra.mxu0 %v3587
    %3912 = vmatprep.subr.bf16.mxu0 %v3584
    %3913 = vmatpush1.bf16.msra.mxu0 %v3583
    %3914 = vmatprep.subr.bf16.mxu0 %v3580
    %3915 = vmatpush1.bf16.msra.mxu0 %v3579
    %3916 = vmatprep.subr.bf16.mxu0 %v3576
    %3917 = vmatpush1.bf16.msra.mxu0 %v3575
    %3918 = vmatprep.subr.bf16.mxu0 %v3572
    %3919 = vmatpush1.bf16.msra.mxu0 %v3571
    %3920 = vmatprep.subr.bf16.mxu0 0
    %3921 = vmatpush2.bf16.msra.mxu0 0
    %3922 = vmatprep.subr.bf16.mxu0 0
    %3923 = vmatpush2.bf16.msra.mxu0 0
    %3924 = vmatprep.subr.bf16.mxu0 0
    %3925 = vmatpush2.bf16.msra.mxu0 0
    %3926 = vmatprep.subr.bf16.mxu0 0
    %3927 = vmatpush2.bf16.msra.mxu0 0
    %3928 = vmatprep.subr.bf16.mxu0 0
    %3929 = vmatpush2.bf16.msra.mxu0 0
    %3930 = vmatprep.subr.bf16.mxu0 0
    %3931 = vmatpush2.bf16.msra.mxu0 0
    %3932 = vmatprep.subr.bf16.mxu0 0
    %3933 = vmatpush2.bf16.msra.mxu0 0
    %3934 = vmatprep.subr.bf16.mxu0 0
    %3935 = vmatpush2.bf16.msra.mxu0 0
    %3936 = vmatprep.mubr.bf16.mxu0 0
    %3937 = vmatmul.mubr.bf16.gmra.mxu0 %v3862
    %v3938 = vpop.f32.mrf.mxu0
    %v3939 = vadd.f32 0.0, %v3938
    %v3940 = vpop.f32.mrf.mxu0
    %v3941 = vadd.f32 0.0, %v3940
    %v3942 = vpop.f32.mrf.mxu0
    %v3943 = vpop.f32.mrf.mxu0
    %3944 = vdwg.mxu0
    %v3945 = vld [vmem:[%s1431] sm:$0xff]
    %v3946 = vld [vmem:[%s1431 + $0x8] sm:$0xff]
    %v3947 = vld [vmem:[%s1431 + $0x10] sm:$0xff]
    %v3948 = vld [vmem:[%s1431 + $0x18] sm:$0xff]
    %v3949 = vadd.f32 %v3945, %v3898
    %v3950 = vadd.f32 %v3946, %v3900
    %v3951 = vadd.f32 %v3947, %v3939
    %v3952 = vadd.f32 %v3948, %v3941
    %v3953 = vxor.u32 %v3949, 2147483648
    %v3954 = vmul.f32 %v3953, 1.442695
    %v3955 = vpow.pop %v3954
    %v3956 = vadd.f32 %v3955, 1.0
    %v3957 = vrcp.pop %v3956
    %v3958 = vmul.f32 1.0, %v3957
    %v3959 = vxor.u32 %v3950, 2147483648
    %v3960 = vmul.f32 %v3959, 1.442695
    %v3961 = vpow.pop %v3960
    %v3962 = vadd.f32 %v3961, 1.0
    %v3963 = vrcp.pop %v3962
    %v3964 = vmul.f32 1.0, %v3963
    %v3965 = vtanh.pop %v3951
    %v3966 = vxor.u32 %v3952, 2147483648
    %v3967 = vmul.f32 %v3966, 1.442695
    %v3968 = vpow.pop %v3967
    %v3969 = vadd.f32 %v3968, 1.0
    %v3970 = vrcp.pop %v3969
    %v3971 = vmul.f32 1.0, %v3970
    %v3972 = vmul.f32 %v3964, %v3859
    %v3973 = vmul.f32 %v3958, %v3965
    %v3974 = vadd.f32 %v3972, %v3973
    %v3975 = vtanh.pop %v3974
    %v3976 = vmul.f32 %v3971, %v3975
    %v3977 = vpack.c.bf16 %v3976, %v3976
    %3978 = vmatprep.subr.bf16.mxu0 %v3598
    %3979 = vmatpush1.bf16.msra.mxu0 %v3597
    %3980 = vmatprep.subr.bf16.mxu0 %v3594
    %3981 = vmatpush1.bf16.msra.mxu0 %v3593
    %3982 = vmatprep.subr.bf16.mxu0 %v3590
    %3983 = vmatpush1.bf16.msra.mxu0 %v3589
    %3984 = vmatprep.subr.bf16.mxu0 %v3586
    %3985 = vmatpush1.bf16.msra.mxu0 %v3585
    %3986 = vmatprep.subr.bf16.mxu0 %v3582
    %3987 = vmatpush1.bf16.msra.mxu0 %v3581
    %3988 = vmatprep.subr.bf16.mxu0 %v3578
    %3989 = vmatpush1.bf16.msra.mxu0 %v3577
    %3990 = vmatprep.subr.bf16.mxu0 %v3574
    %3991 = vmatpush1.bf16.msra.mxu0 %v3573
    %3992 = vmatprep.subr.bf16.mxu0 %v3570
    %3993 = vmatpush1.bf16.msra.mxu0 %v3569
    %3994 = vmatprep.subr.bf16.mxu0 0
    %3995 = vmatpush2.bf16.msra.mxu0 0
    %3996 = vmatprep.subr.bf16.mxu0 0
    %3997 = vmatpush2.bf16.msra.mxu0 0
    %3998 = vmatprep.subr.bf16.mxu0 0
    %3999 = vmatpush2.bf16.msra.mxu0 0
    %4000 = vmatprep.subr.bf16.mxu0 0
    %4001 = vmatpush2.bf16.msra.mxu0 0
    %4002 = vmatprep.subr.bf16.mxu0 0
    %4003 = vmatpush2.bf16.msra.mxu0 0
    %4004 = vmatprep.subr.bf16.mxu0 0
    %4005 = vmatpush2.bf16.msra.mxu0 0
    %4006 = vmatprep.subr.bf16.mxu0 0
    %4007 = vmatpush2.bf16.msra.mxu0 0
    %4008 = vmatprep.subr.bf16.mxu0 0
    %4009 = vmatpush2.bf16.msra.mxu0 0
    %4010 = vmatprep.mubr.bf16.mxu0 0
    %4011 = vmatmul.mubr.bf16.gmra.mxu0 %v3977
    %v4012 = vpop.f32.mrf.mxu0
    %v4013 = vadd.f32 0.0, %v4012
    %v4014 = vpop.f32.mrf.mxu0
    %v4015 = vadd.f32 0.0, %v4014
    %v4016 = vpop.f32.mrf.mxu0
    %v4017 = vpop.f32.mrf.mxu0
    %4018 = vdwg.mxu0
    %4019 = vmatprep.subr.bf16.mxu0 %v3600
    %4020 = vmatpush1.bf16.msra.mxu0 %v3599
    %4021 = vmatprep.subr.bf16.mxu0 %v3596
    %4022 = vmatpush1.bf16.msra.mxu0 %v3595
    %4023 = vmatprep.subr.bf16.mxu0 %v3592
    %4024 = vmatpush1.bf16.msra.mxu0 %v3591
    %4025 = vmatprep.subr.bf16.mxu0 %v3588
    %4026 = vmatpush1.bf16.msra.mxu0 %v3587
    %4027 = vmatprep.subr.bf16.mxu0 %v3584
    %4028 = vmatpush1.bf16.msra.mxu0 %v3583
    %4029 = vmatprep.subr.bf16.mxu0 %v3580
    %4030 = vmatpush1.bf16.msra.mxu0 %v3579
    %4031 = vmatprep.subr.bf16.mxu0 %v3576
    %4032 = vmatpush1.bf16.msra.mxu0 %v3575
    %4033 = vmatprep.subr.bf16.mxu0 %v3572
    %4034 = vmatpush1.bf16.msra.mxu0 %v3571
    %4035 = vmatprep.subr.bf16.mxu0 0
    %4036 = vmatpush2.bf16.msra.mxu0 0
    %4037 = vmatprep.subr.bf16.mxu0 0
    %4038 = vmatpush2.bf16.msra.mxu0 0
    %4039 = vmatprep.subr.bf16.mxu0 0
    %4040 = vmatpush2.bf16.msra.mxu0 0
    %4041 = vmatprep.subr.bf16.mxu0 0
    %4042 = vmatpush2.bf16.msra.mxu0 0
    %4043 = vmatprep.subr.bf16.mxu0 0
    %4044 = vmatpush2.bf16.msra.mxu0 0
    %4045 = vmatprep.subr.bf16.mxu0 0
    %4046 = vmatpush2.bf16.msra.mxu0 0
    %4047 = vmatprep.subr.bf16.mxu0 0
    %4048 = vmatpush2.bf16.msra.mxu0 0
    %4049 = vmatprep.subr.bf16.mxu0 0
    %4050 = vmatpush2.bf16.msra.mxu0 0
    %4051 = vmatprep.mubr.bf16.mxu0 0
    %4052 = vmatmul.mubr.bf16.gmra.mxu0 %v3977
    %v4053 = vpop.f32.mrf.mxu0
    %v4054 = vadd.f32 0.0, %v4053
    %v4055 = vpop.f32.mrf.mxu0
    %v4056 = vadd.f32 0.0, %v4055
    %v4057 = vpop.f32.mrf.mxu0
    %v4058 = vpop.f32.mrf.mxu0
    %4059 = vdwg.mxu0
    %v4060 = vld [vmem:[%s1741] sm:$0xff]
    %v4061 = vld [vmem:[%s1741 + $0x8] sm:$0xff]
    %v4062 = vld [vmem:[%s1741 + $0x10] sm:$0xff]
    %v4063 = vld [vmem:[%s1741 + $0x18] sm:$0xff]
    %v4064 = vadd.f32 %v4060, %v4013
    %v4065 = vadd.f32 %v4061, %v4015
    %v4066 = vadd.f32 %v4062, %v4054
    %v4067 = vadd.f32 %v4063, %v4056
    %v4068 = vxor.u32 %v4064, 2147483648
    %v4069 = vmul.f32 %v4068, 1.442695
    %v4070 = vpow.pop %v4069
    %v4071 = vadd.f32 %v4070, 1.0
    %v4072 = vrcp.pop %v4071
    %v4073 = vmul.f32 1.0, %v4072
    %v4074 = vxor.u32 %v4065, 2147483648
    %v4075 = vmul.f32 %v4074, 1.442695
    %v4076 = vpow.pop %v4075
    %v4077 = vadd.f32 %v4076, 1.0
    %v4078 = vrcp.pop %v4077
    %v4079 = vmul.f32 1.0, %v4078
    %v4080 = vtanh.pop %v4066
    %v4081 = vxor.u32 %v4067, 2147483648
    %v4082 = vmul.f32 %v4081, 1.442695
    %v4083 = vpow.pop %v4082
    %v4084 = vadd.f32 %v4083, 1.0
    %v4085 = vrcp.pop %v4084
    %v4086 = vmul.f32 1.0, %v4085
    %v4087 = vmul.f32 %v4079, %v3974
    %v4088 = vmul.f32 %v4073, %v4080
    %v4089 = vadd.f32 %v4087, %v4088
    %v4090 = vtanh.pop %v4089
    %v4091 = vmul.f32 %v4086, %v4090
    %v4092 = vpack.c.bf16 %v4091, %v4091
    %4093 = vmatprep.subr.bf16.mxu0 %v3598
    %4094 = vmatpush1.bf16.msra.mxu0 %v3597
    %4095 = vmatprep.subr.bf16.mxu0 %v3594
    %4096 = vmatpush1.bf16.msra.mxu0 %v3593
    %4097 = vmatprep.subr.bf16.mxu0 %v3590
    %4098 = vmatpush1.bf16.msra.mxu0 %v3589
    %4099 = vmatprep.subr.bf16.mxu0 %v3586
    %4100 = vmatpush1.bf16.msra.mxu0 %v3585
    %4101 = vmatprep.subr.bf16.mxu0 %v3582
    %4102 = vmatpush1.bf16.msra.mxu0 %v3581
    %4103 = vmatprep.subr.bf16.mxu0 %v3578
    %4104 = vmatpush1.bf16.msra.mxu0 %v3577
    %4105 = vmatprep.subr.bf16.mxu0 %v3574
    %4106 = vmatpush1.bf16.msra.mxu0 %v3573
    %4107 = vmatprep.subr.bf16.mxu0 %v3570
    %4108 = vmatpush1.bf16.msra.mxu0 %v3569
    %4109 = vmatprep.subr.bf16.mxu0 0
    %4110 = vmatpush2.bf16.msra.mxu0 0
    %4111 = vmatprep.subr.bf16.mxu0 0
    %4112 = vmatpush2.bf16.msra.mxu0 0
    %4113 = vmatprep.subr.bf16.mxu0 0
    %4114 = vmatpush2.bf16.msra.mxu0 0
    %4115 = vmatprep.subr.bf16.mxu0 0
    %4116 = vmatpush2.bf16.msra.mxu0 0
    %4117 = vmatprep.subr.bf16.mxu0 0
    %4118 = vmatpush2.bf16.msra.mxu0 0
    %4119 = vmatprep.subr.bf16.mxu0 0
    %4120 = vmatpush2.bf16.msra.mxu0 0
    %4121 = vmatprep.subr.bf16.mxu0 0
    %4122 = vmatpush2.bf16.msra.mxu0 0
    %4123 = vmatprep.subr.bf16.mxu0 0
    %4124 = vmatpush2.bf16.msra.mxu0 0
    %4125 = vmatprep.mubr.bf16.mxu0 0
    %4126 = vmatmul.mubr.bf16.gmra.mxu0 %v4092
    %v4127 = vpop.f32.mrf.mxu0
    %v4128 = vadd.f32 0.0, %v4127
    %v4129 = vpop.f32.mrf.mxu0
    %v4130 = vadd.f32 0.0, %v4129
    %v4131 = vpop.f32.mrf.mxu0
    %v4132 = vpop.f32.mrf.mxu0
    %4133 = vdwg.mxu0
    %4134 = vmatprep.subr.bf16.mxu0 %v3600
    %4135 = vmatpush1.bf16.msra.mxu0 %v3599
    %4136 = vmatprep.subr.bf16.mxu0 %v3596
    %4137 = vmatpush1.bf16.msra.mxu0 %v3595
    %4138 = vmatprep.subr.bf16.mxu0 %v3592
    %4139 = vmatpush1.bf16.msra.mxu0 %v3591
    %4140 = vmatprep.subr.bf16.mxu0 %v3588
    %4141 = vmatpush1.bf16.msra.mxu0 %v3587
    %4142 = vmatprep.subr.bf16.mxu0 %v3584
    %4143 = vmatpush1.bf16.msra.mxu0 %v3583
    %4144 = vmatprep.subr.bf16.mxu0 %v3580
    %4145 = vmatpush1.bf16.msra.mxu0 %v3579
    %4146 = vmatprep.subr.bf16.mxu0 %v3576
    %4147 = vmatpush1.bf16.msra.mxu0 %v3575
    %4148 = vmatprep.subr.bf16.mxu0 %v3572
    %4149 = vmatpush1.bf16.msra.mxu0 %v3571
    %4150 = vmatprep.subr.bf16.mxu0 0
    %4151 = vmatpush2.bf16.msra.mxu0 0
    %4152 = vmatprep.subr.bf16.mxu0 0
    %4153 = vmatpush2.bf16.msra.mxu0 0
    %4154 = vmatprep.subr.bf16.mxu0 0
    %4155 = vmatpush2.bf16.msra.mxu0 0
    %4156 = vmatprep.subr.bf16.mxu0 0
    %4157 = vmatpush2.bf16.msra.mxu0 0
    %4158 = vmatprep.subr.bf16.mxu0 0
    %4159 = vmatpush2.bf16.msra.mxu0 0
    %4160 = vmatprep.subr.bf16.mxu0 0
    %4161 = vmatpush2.bf16.msra.mxu0 0
    %4162 = vmatprep.subr.bf16.mxu0 0
    %4163 = vmatpush2.bf16.msra.mxu0 0
    %4164 = vmatprep.subr.bf16.mxu0 0
    %4165 = vmatpush2.bf16.msra.mxu0 0
    %4166 = vmatprep.mubr.bf16.mxu0 0
    %4167 = vmatmul.mubr.bf16.gmra.mxu0 %v4092
    %v4168 = vpop.f32.mrf.mxu0
    %v4169 = vadd.f32 0.0, %v4168
    %v4170 = vpop.f32.mrf.mxu0
    %v4171 = vadd.f32 0.0, %v4170
    %v4172 = vpop.f32.mrf.mxu0
    %v4173 = vpop.f32.mrf.mxu0
    %4174 = vdwg.mxu0
    %v4175 = vld [vmem:[%s2051] sm:$0xff]
    %v4176 = vld [vmem:[%s2051 + $0x8] sm:$0xff]
    %v4177 = vld [vmem:[%s2051 + $0x10] sm:$0xff]
    %v4178 = vld [vmem:[%s2051 + $0x18] sm:$0xff]
    %v4179 = vadd.f32 %v4175, %v4128
    %v4180 = vadd.f32 %v4176, %v4130
    %v4181 = vadd.f32 %v4177, %v4169
    %v4182 = vadd.f32 %v4178, %v4171
    %v4183 = vxor.u32 %v4179, 2147483648
    %v4184 = vmul.f32 %v4183, 1.442695
    %v4185 = vpow.pop %v4184
    %v4186 = vadd.f32 %v4185, 1.0
    %v4187 = vrcp.pop %v4186
    %v4188 = vmul.f32 1.0, %v4187
    %v4189 = vxor.u32 %v4180, 2147483648
    %v4190 = vmul.f32 %v4189, 1.442695
    %v4191 = vpow.pop %v4190
    %v4192 = vadd.f32 %v4191, 1.0
    %v4193 = vrcp.pop %v4192
    %v4194 = vmul.f32 1.0, %v4193
    %v4195 = vtanh.pop %v4181
    %v4196 = vxor.u32 %v4182, 2147483648
    %v4197 = vmul.f32 %v4196, 1.442695
    %v4198 = vpow.pop %v4197
    %v4199 = vadd.f32 %v4198, 1.0
    %v4200 = vrcp.pop %v4199
    %v4201 = vmul.f32 1.0, %v4200
    %v4202 = vmul.f32 %v4194, %v4089
    %v4203 = vmul.f32 %v4188, %v4195
    %v4204 = vadd.f32 %v4202, %v4203
    %v4205 = vtanh.pop %v4204
    %v4206 = vmul.f32 %v4201, %v4205
    %v4207 = vpack.c.bf16 %v4206, %v4206
    %4208 = vmatprep.subr.bf16.mxu0 %v3598
    %4209 = vmatpush1.bf16.msra.mxu0 %v3597
    %4210 = vmatprep.subr.bf16.mxu0 %v3594
    %4211 = vmatpush1.bf16.msra.mxu0 %v3593
    %4212 = vmatprep.subr.bf16.mxu0 %v3590
    %4213 = vmatpush1.bf16.msra.mxu0 %v3589
    %4214 = vmatprep.subr.bf16.mxu0 %v3586
    %4215 = vmatpush1.bf16.msra.mxu0 %v3585
    %4216 = vmatprep.subr.bf16.mxu0 %v3582
    %4217 = vmatpush1.bf16.msra.mxu0 %v3581
    %4218 = vmatprep.subr.bf16.mxu0 %v3578
    %4219 = vmatpush1.bf16.msra.mxu0 %v3577
    %4220 = vmatprep.subr.bf16.mxu0 %v3574
    %4221 = vmatpush1.bf16.msra.mxu0 %v3573
    %4222 = vmatprep.subr.bf16.mxu0 %v3570
    %4223 = vmatpush1.bf16.msra.mxu0 %v3569
    %4224 = vmatprep.subr.bf16.mxu0 0
    %4225 = vmatpush2.bf16.msra.mxu0 0
    %4226 = vmatprep.subr.bf16.mxu0 0
    %4227 = vmatpush2.bf16.msra.mxu0 0
    %4228 = vmatprep.subr.bf16.mxu0 0
    %4229 = vmatpush2.bf16.msra.mxu0 0
    %4230 = vmatprep.subr.bf16.mxu0 0
    %4231 = vmatpush2.bf16.msra.mxu0 0
    %4232 = vmatprep.subr.bf16.mxu0 0
    %4233 = vmatpush2.bf16.msra.mxu0 0
    %4234 = vmatprep.subr.bf16.mxu0 0
    %4235 = vmatpush2.bf16.msra.mxu0 0
    %4236 = vmatprep.subr.bf16.mxu0 0
    %4237 = vmatpush2.bf16.msra.mxu0 0
    %4238 = vmatprep.subr.bf16.mxu0 0
    %4239 = vmatpush2.bf16.msra.mxu0 0
    %4240 = vmatprep.mubr.bf16.mxu0 0
    %4241 = vmatmul.mubr.bf16.gmra.mxu0 %v4207
    %v4242 = vpop.f32.mrf.mxu0
    %v4243 = vadd.f32 0.0, %v4242
    %v4244 = vpop.f32.mrf.mxu0
    %v4245 = vadd.f32 0.0, %v4244
    %v4246 = vpop.f32.mrf.mxu0
    %v4247 = vpop.f32.mrf.mxu0
    %4248 = vdwg.mxu0
    %4249 = vmatprep.subr.bf16.mxu0 %v3600
    %4250 = vmatpush1.bf16.msra.mxu0 %v3599
    %4251 = vmatprep.subr.bf16.mxu0 %v3596
    %4252 = vmatpush1.bf16.msra.mxu0 %v3595
    %4253 = vmatprep.subr.bf16.mxu0 %v3592
    %4254 = vmatpush1.bf16.msra.mxu0 %v3591
    %4255 = vmatprep.subr.bf16.mxu0 %v3588
    %4256 = vmatpush1.bf16.msra.mxu0 %v3587
    %4257 = vmatprep.subr.bf16.mxu0 %v3584
    %4258 = vmatpush1.bf16.msra.mxu0 %v3583
    %4259 = vmatprep.subr.bf16.mxu0 %v3580
    %4260 = vmatpush1.bf16.msra.mxu0 %v3579
    %4261 = vmatprep.subr.bf16.mxu0 %v3576
    %4262 = vmatpush1.bf16.msra.mxu0 %v3575
    %4263 = vmatprep.subr.bf16.mxu0 %v3572
    %4264 = vmatpush1.bf16.msra.mxu0 %v3571
    %4265 = vmatprep.subr.bf16.mxu0 0
    %4266 = vmatpush2.bf16.msra.mxu0 0
    %4267 = vmatprep.subr.bf16.mxu0 0
    %4268 = vmatpush2.bf16.msra.mxu0 0
    %4269 = vmatprep.subr.bf16.mxu0 0
    %4270 = vmatpush2.bf16.msra.mxu0 0
    %4271 = vmatprep.subr.bf16.mxu0 0
    %4272 = vmatpush2.bf16.msra.mxu0 0
    %4273 = vmatprep.subr.bf16.mxu0 0
    %4274 = vmatpush2.bf16.msra.mxu0 0
    %4275 = vmatprep.subr.bf16.mxu0 0
    %4276 = vmatpush2.bf16.msra.mxu0 0
    %4277 = vmatprep.subr.bf16.mxu0 0
    %4278 = vmatpush2.bf16.msra.mxu0 0
    %4279 = vmatprep.subr.bf16.mxu0 0
    %4280 = vmatpush2.bf16.msra.mxu0 0
    %4281 = vmatprep.mubr.bf16.mxu0 0
    %4282 = vmatmul.mubr.bf16.gmra.mxu0 %v4207
    %v4283 = vpop.f32.mrf.mxu0
    %v4284 = vadd.f32 0.0, %v4283
    %v4285 = vpop.f32.mrf.mxu0
    %v4286 = vadd.f32 0.0, %v4285
    %v4287 = vpop.f32.mrf.mxu0
    %v4288 = vpop.f32.mrf.mxu0
    %4289 = vdwg.mxu0
    %v4290 = vld [vmem:[%s2361] sm:$0xff]
    %v4291 = vld [vmem:[%s2361 + $0x8] sm:$0xff]
    %v4292 = vld [vmem:[%s2361 + $0x10] sm:$0xff]
    %v4293 = vld [vmem:[%s2361 + $0x18] sm:$0xff]
    %v4294 = vadd.f32 %v4290, %v4243
    %v4295 = vadd.f32 %v4291, %v4245
    %v4296 = vadd.f32 %v4292, %v4284
    %v4297 = vadd.f32 %v4293, %v4286
    %v4298 = vxor.u32 %v4294, 2147483648
    %v4299 = vmul.f32 %v4298, 1.442695
    %v4300 = vpow.pop %v4299
    %v4301 = vadd.f32 %v4300, 1.0
    %v4302 = vrcp.pop %v4301
    %v4303 = vmul.f32 1.0, %v4302
    %v4304 = vxor.u32 %v4295, 2147483648
    %v4305 = vmul.f32 %v4304, 1.442695
    %v4306 = vpow.pop %v4305
    %v4307 = vadd.f32 %v4306, 1.0
    %v4308 = vrcp.pop %v4307
    %v4309 = vmul.f32 1.0, %v4308
    %v4310 = vtanh.pop %v4296
    %v4311 = vxor.u32 %v4297, 2147483648
    %v4312 = vmul.f32 %v4311, 1.442695
    %v4313 = vpow.pop %v4312
    %v4314 = vadd.f32 %v4313, 1.0
    %v4315 = vrcp.pop %v4314
    %v4316 = vmul.f32 1.0, %v4315
    %v4317 = vmul.f32 %v4309, %v4204
    %v4318 = vmul.f32 %v4303, %v4310
    %v4319 = vadd.f32 %v4317, %v4318
    %v4320 = vtanh.pop %v4319
    %v4321 = vmul.f32 %v4316, %v4320
    %v4322 = vpack.c.bf16 %v4321, %v4321
    %4323 = vmatprep.subr.bf16.mxu0 %v3598
    %4324 = vmatpush1.bf16.msra.mxu0 %v3597
    %4325 = vmatprep.subr.bf16.mxu0 %v3594
    %4326 = vmatpush1.bf16.msra.mxu0 %v3593
    %4327 = vmatprep.subr.bf16.mxu0 %v3590
    %4328 = vmatpush1.bf16.msra.mxu0 %v3589
    %4329 = vmatprep.subr.bf16.mxu0 %v3586
    %4330 = vmatpush1.bf16.msra.mxu0 %v3585
    %4331 = vmatprep.subr.bf16.mxu0 %v3582
    %4332 = vmatpush1.bf16.msra.mxu0 %v3581
    %4333 = vmatprep.subr.bf16.mxu0 %v3578
    %4334 = vmatpush1.bf16.msra.mxu0 %v3577
    %4335 = vmatprep.subr.bf16.mxu0 %v3574
    %4336 = vmatpush1.bf16.msra.mxu0 %v3573
    %4337 = vmatprep.subr.bf16.mxu0 %v3570
    %4338 = vmatpush1.bf16.msra.mxu0 %v3569
    %4339 = vmatprep.subr.bf16.mxu0 0
    %4340 = vmatpush2.bf16.msra.mxu0 0
    %4341 = vmatprep.subr.bf16.mxu0 0
    %4342 = vmatpush2.bf16.msra.mxu0 0
    %4343 = vmatprep.subr.bf16.mxu0 0
    %4344 = vmatpush2.bf16.msra.mxu0 0
    %4345 = vmatprep.subr.bf16.mxu0 0
    %4346 = vmatpush2.bf16.msra.mxu0 0
    %4347 = vmatprep.subr.bf16.mxu0 0
    %4348 = vmatpush2.bf16.msra.mxu0 0
    %4349 = vmatprep.subr.bf16.mxu0 0
    %4350 = vmatpush2.bf16.msra.mxu0 0
    %4351 = vmatprep.subr.bf16.mxu0 0
    %4352 = vmatpush2.bf16.msra.mxu0 0
    %4353 = vmatprep.subr.bf16.mxu0 0
    %4354 = vmatpush2.bf16.msra.mxu0 0
    %4355 = vmatprep.mubr.bf16.mxu0 0
    %4356 = vmatmul.mubr.bf16.gmra.mxu0 %v4322
    %v4357 = vpop.f32.mrf.mxu0
    %v4358 = vadd.f32 0.0, %v4357
    %v4359 = vpop.f32.mrf.mxu0
    %v4360 = vadd.f32 0.0, %v4359
    %v4361 = vpop.f32.mrf.mxu0
    %v4362 = vpop.f32.mrf.mxu0
    %4363 = vdwg.mxu0
    %4364 = vmatprep.subr.bf16.mxu0 %v3600
    %4365 = vmatpush1.bf16.msra.mxu0 %v3599
    %4366 = vmatprep.subr.bf16.mxu0 %v3596
    %4367 = vmatpush1.bf16.msra.mxu0 %v3595
    %4368 = vmatprep.subr.bf16.mxu0 %v3592
    %4369 = vmatpush1.bf16.msra.mxu0 %v3591
    %4370 = vmatprep.subr.bf16.mxu0 %v3588
    %4371 = vmatpush1.bf16.msra.mxu0 %v3587
    %4372 = vmatprep.subr.bf16.mxu0 %v3584
    %4373 = vmatpush1.bf16.msra.mxu0 %v3583
    %4374 = vmatprep.subr.bf16.mxu0 %v3580
    %4375 = vmatpush1.bf16.msra.mxu0 %v3579
    %4376 = vmatprep.subr.bf16.mxu0 %v3576
    %4377 = vmatpush1.bf16.msra.mxu0 %v3575
    %4378 = vmatprep.subr.bf16.mxu0 %v3572
    %4379 = vmatpush1.bf16.msra.mxu0 %v3571
    %4380 = vmatprep.subr.bf16.mxu0 0
    %4381 = vmatpush2.bf16.msra.mxu0 0
    %4382 = vmatprep.subr.bf16.mxu0 0
    %4383 = vmatpush2.bf16.msra.mxu0 0
    %4384 = vmatprep.subr.bf16.mxu0 0
    %4385 = vmatpush2.bf16.msra.mxu0 0
    %4386 = vmatprep.subr.bf16.mxu0 0
    %4387 = vmatpush2.bf16.msra.mxu0 0
    %4388 = vmatprep.subr.bf16.mxu0 0
    %4389 = vmatpush2.bf16.msra.mxu0 0
    %4390 = vmatprep.subr.bf16.mxu0 0
    %4391 = vmatpush2.bf16.msra.mxu0 0
    %4392 = vmatprep.subr.bf16.mxu0 0
    %4393 = vmatpush2.bf16.msra.mxu0 0
    %4394 = vmatprep.subr.bf16.mxu0 0
    %4395 = vmatpush2.bf16.msra.mxu0 0
    %4396 = vmatprep.mubr.bf16.mxu0 0
    %4397 = vmatmul.mubr.bf16.gmra.mxu0 %v4322
    %v4398 = vpop.f32.mrf.mxu0
    %v4399 = vadd.f32 0.0, %v4398
    %v4400 = vpop.f32.mrf.mxu0
    %v4401 = vadd.f32 0.0, %v4400
    %v4402 = vpop.f32.mrf.mxu0
    %v4403 = vpop.f32.mrf.mxu0
    %4404 = vdwg.mxu0
    %v4405 = vld [vmem:[%s2671] sm:$0xff]
    %v4406 = vld [vmem:[%s2671 + $0x8] sm:$0xff]
    %v4407 = vld [vmem:[%s2671 + $0x10] sm:$0xff]
    %v4408 = vld [vmem:[%s2671 + $0x18] sm:$0xff]
    %v4409 = vadd.f32 %v4405, %v4358
    %v4410 = vadd.f32 %v4406, %v4360
    %v4411 = vadd.f32 %v4407, %v4399
    %v4412 = vadd.f32 %v4408, %v4401
    %v4413 = vxor.u32 %v4409, 2147483648
    %v4414 = vmul.f32 %v4413, 1.442695
    %v4415 = vpow.pop %v4414
    %v4416 = vadd.f32 %v4415, 1.0
    %v4417 = vrcp.pop %v4416
    %v4418 = vmul.f32 1.0, %v4417
    %v4419 = vxor.u32 %v4410, 2147483648
    %v4420 = vmul.f32 %v4419, 1.442695
    %v4421 = vpow.pop %v4420
    %v4422 = vadd.f32 %v4421, 1.0
    %v4423 = vrcp.pop %v4422
    %v4424 = vmul.f32 1.0, %v4423
    %v4425 = vtanh.pop %v4411
    %v4426 = vxor.u32 %v4412, 2147483648
    %v4427 = vmul.f32 %v4426, 1.442695
    %v4428 = vpow.pop %v4427
    %v4429 = vadd.f32 %v4428, 1.0
    %v4430 = vrcp.pop %v4429
    %v4431 = vmul.f32 1.0, %v4430
    %v4432 = vmul.f32 %v4424, %v4319
    %v4433 = vmul.f32 %v4418, %v4425
    %v4434 = vadd.f32 %v4432, %v4433
    %v4435 = vtanh.pop %v4434
    %v4436 = vmul.f32 %v4431, %v4435
    %v4437 = vpack.c.bf16 %v4436, %v4436
    %4438 = vmatprep.subr.bf16.mxu0 %v3598
    %4439 = vmatpush1.bf16.msra.mxu0 %v3597
    %4440 = vmatprep.subr.bf16.mxu0 %v3594
    %4441 = vmatpush1.bf16.msra.mxu0 %v3593
    %4442 = vmatprep.subr.bf16.mxu0 %v3590
    %4443 = vmatpush1.bf16.msra.mxu0 %v3589
    %4444 = vmatprep.subr.bf16.mxu0 %v3586
    %4445 = vmatpush1.bf16.msra.mxu0 %v3585
    %4446 = vmatprep.subr.bf16.mxu0 %v3582
    %4447 = vmatpush1.bf16.msra.mxu0 %v3581
    %4448 = vmatprep.subr.bf16.mxu0 %v3578
    %4449 = vmatpush1.bf16.msra.mxu0 %v3577
    %4450 = vmatprep.subr.bf16.mxu0 %v3574
    %4451 = vmatpush1.bf16.msra.mxu0 %v3573
    %4452 = vmatprep.subr.bf16.mxu0 %v3570
    %4453 = vmatpush1.bf16.msra.mxu0 %v3569
    %4454 = vmatprep.subr.bf16.mxu0 0
    %4455 = vmatpush2.bf16.msra.mxu0 0
    %4456 = vmatprep.subr.bf16.mxu0 0
    %4457 = vmatpush2.bf16.msra.mxu0 0
    %4458 = vmatprep.subr.bf16.mxu0 0
    %4459 = vmatpush2.bf16.msra.mxu0 0
    %4460 = vmatprep.subr.bf16.mxu0 0
    %4461 = vmatpush2.bf16.msra.mxu0 0
    %4462 = vmatprep.subr.bf16.mxu0 0
    %4463 = vmatpush2.bf16.msra.mxu0 0
    %4464 = vmatprep.subr.bf16.mxu0 0
    %4465 = vmatpush2.bf16.msra.mxu0 0
    %4466 = vmatprep.subr.bf16.mxu0 0
    %4467 = vmatpush2.bf16.msra.mxu0 0
    %4468 = vmatprep.subr.bf16.mxu0 0
    %4469 = vmatpush2.bf16.msra.mxu0 0
    %4470 = vmatprep.mubr.bf16.mxu0 0
    %4471 = vmatmul.mubr.bf16.gmra.mxu0 %v4437
    %v4472 = vpop.f32.mrf.mxu0
    %v4473 = vadd.f32 0.0, %v4472
    %v4474 = vpop.f32.mrf.mxu0
    %v4475 = vadd.f32 0.0, %v4474
    %v4476 = vpop.f32.mrf.mxu0
    %v4477 = vpop.f32.mrf.mxu0
    %4478 = vdwg.mxu0
    %4479 = vmatprep.subr.bf16.mxu0 %v3600
    %4480 = vmatpush1.bf16.msra.mxu0 %v3599
    %4481 = vmatprep.subr.bf16.mxu0 %v3596
    %4482 = vmatpush1.bf16.msra.mxu0 %v3595
    %4483 = vmatprep.subr.bf16.mxu0 %v3592
    %4484 = vmatpush1.bf16.msra.mxu0 %v3591
    %4485 = vmatprep.subr.bf16.mxu0 %v3588
    %4486 = vmatpush1.bf16.msra.mxu0 %v3587
    %4487 = vmatprep.subr.bf16.mxu0 %v3584
    %4488 = vmatpush1.bf16.msra.mxu0 %v3583
    %4489 = vmatprep.subr.bf16.mxu0 %v3580
    %4490 = vmatpush1.bf16.msra.mxu0 %v3579
    %4491 = vmatprep.subr.bf16.mxu0 %v3576
    %4492 = vmatpush1.bf16.msra.mxu0 %v3575
    %4493 = vmatprep.subr.bf16.mxu0 %v3572
    %4494 = vmatpush1.bf16.msra.mxu0 %v3571
    %4495 = vmatprep.subr.bf16.mxu0 0
    %4496 = vmatpush2.bf16.msra.mxu0 0
    %4497 = vmatprep.subr.bf16.mxu0 0
    %4498 = vmatpush2.bf16.msra.mxu0 0
    %4499 = vmatprep.subr.bf16.mxu0 0
    %4500 = vmatpush2.bf16.msra.mxu0 0
    %4501 = vmatprep.subr.bf16.mxu0 0
    %4502 = vmatpush2.bf16.msra.mxu0 0
    %4503 = vmatprep.subr.bf16.mxu0 0
    %4504 = vmatpush2.bf16.msra.mxu0 0
    %4505 = vmatprep.subr.bf16.mxu0 0
    %4506 = vmatpush2.bf16.msra.mxu0 0
    %4507 = vmatprep.subr.bf16.mxu0 0
    %4508 = vmatpush2.bf16.msra.mxu0 0
    %4509 = vmatprep.subr.bf16.mxu0 0
    %4510 = vmatpush2.bf16.msra.mxu0 0
    %4511 = vmatprep.mubr.bf16.mxu0 0
    %4512 = vmatmul.mubr.bf16.gmra.mxu0 %v4437
    %v4513 = vpop.f32.mrf.mxu0
    %v4514 = vadd.f32 0.0, %v4513
    %v4515 = vpop.f32.mrf.mxu0
    %v4516 = vadd.f32 0.0, %v4515
    %v4517 = vpop.f32.mrf.mxu0
    %v4518 = vpop.f32.mrf.mxu0
    %4519 = vdwg.mxu0
    %v4520 = vld [vmem:[%s2981] sm:$0xff]
    %v4521 = vld [vmem:[%s2981 + $0x8] sm:$0xff]
    %v4522 = vld [vmem:[%s2981 + $0x10] sm:$0xff]
    %v4523 = vld [vmem:[%s2981 + $0x18] sm:$0xff]
    %v4524 = vadd.f32 %v4520, %v4473
    %v4525 = vadd.f32 %v4521, %v4475
    %v4526 = vadd.f32 %v4522, %v4514
    %v4527 = vadd.f32 %v4523, %v4516
    %v4528 = vxor.u32 %v4524, 2147483648
    %v4529 = vmul.f32 %v4528, 1.442695
    %v4530 = vpow.pop %v4529
    %v4531 = vadd.f32 %v4530, 1.0
    %v4532 = vrcp.pop %v4531
    %v4533 = vmul.f32 1.0, %v4532
    %v4534 = vxor.u32 %v4525, 2147483648
    %v4535 = vmul.f32 %v4534, 1.442695
    %v4536 = vpow.pop %v4535
    %v4537 = vadd.f32 %v4536, 1.0
    %v4538 = vrcp.pop %v4537
    %v4539 = vmul.f32 1.0, %v4538
    %v4540 = vtanh.pop %v4526
    %v4541 = vxor.u32 %v4527, 2147483648
    %v4542 = vmul.f32 %v4541, 1.442695
    %v4543 = vpow.pop %v4542
    %v4544 = vadd.f32 %v4543, 1.0
    %v4545 = vrcp.pop %v4544
    %v4546 = vmul.f32 1.0, %v4545
    %v4547 = vmul.f32 %v4539, %v4434
    %v4548 = vmul.f32 %v4533, %v4540
    %v4549 = vadd.f32 %v4547, %v4548
    %v4550 = vtanh.pop %v4549
    %v4551 = vmul.f32 %v4546, %v4550
    %v4552 = vpack.c.bf16 %v4551, %v4551
    %v4553 = vld [vmem:[#allocation13] sm:$0xf]
    %v4554 = vld [vmem:[#allocation13 + $0x4] sm:$0xf]
    %v4555 = vld [vmem:[#allocation13 + $0x8] sm:$0xf]
    %v4556 = vld [vmem:[#allocation13 + $0xc] sm:$0xf]
    %v4557 = vld [vmem:[#allocation13 + $0x10] sm:$0xf]
    %v4558 = vld [vmem:[#allocation13 + $0x14] sm:$0xf]
    %v4559 = vld [vmem:[#allocation13 + $0x18] sm:$0xf]
    %v4560 = vld [vmem:[#allocation13 + $0x1c] sm:$0xf]
    %v4561 = vld [vmem:[#allocation13 + $0x20] sm:$0xf]
    %v4562 = vld [vmem:[#allocation13 + $0x24] sm:$0xf]
    %v4563 = vld [vmem:[#allocation13 + $0x28] sm:$0xf]
    %v4564 = vld [vmem:[#allocation13 + $0x2c] sm:$0xf]
    %v4565 = vld [vmem:[#allocation13 + $0x30] sm:$0xf]
    %v4566 = vld [vmem:[#allocation13 + $0x34] sm:$0xf]
    %v4567 = vld [vmem:[#allocation13 + $0x38] sm:$0xf]
    %v4568 = vld [vmem:[#allocation13 + $0x3c] sm:$0xf]
    %v4569 = vld [vmem:[%s8] sm:$0x1]
    %v4571 = vlaneseq
    %v4572 = vshrl.u32 %v4571, 7
    %v4573 = vsub.s32 0, %v4572
    %v4574 = vrot.slane %v4569, %v4573
    %v4592 = vunpack.c.l.b16 %v4553
    %v4593 = vunpack.c.l.b16 %v4554
    %v4594 = vunpack.c.l.b16 %v4555
    %v4595 = vunpack.c.l.b16 %v4556
    %v4596 = vunpack.c.l.b16 %v4557
    %v4597 = vunpack.c.l.b16 %v4558
    %v4598 = vunpack.c.l.b16 %v4559
    %v4599 = vunpack.c.l.b16 %v4560
    %v4600 = vunpack.c.l.b16 %v4561
    %v4601 = vunpack.c.l.b16 %v4562
    %v4602 = vunpack.c.l.b16 %v4563
    %v4603 = vunpack.c.l.b16 %v4564
    %v4604 = vunpack.c.l.b16 %v4565
    %v4605 = vunpack.c.l.b16 %v4566
    %v4606 = vunpack.c.l.b16 %v4567
    %v4607 = vunpack.c.l.b16 %v4568
    %v4608 = vpack.c.b16 %v4593, %v4592
    %v4609 = vpack.c.b16 %v4595, %v4594
    %v4610 = vpack.c.b16 %v4597, %v4596
    %v4611 = vpack.c.b16 %v4599, %v4598
    %v4612 = vpack.c.b16 %v4601, %v4600
    %v4613 = vpack.c.b16 %v4603, %v4602
    %v4614 = vpack.c.b16 %v4605, %v4604
    %v4615 = vpack.c.b16 %v4607, %v4606
    %4624 = vmatprep.subr.bf16.mxu0 0
    %4625 = vmatpush1.bf16.msra.mxu0 %v4615
    %4626 = vmatprep.subr.bf16.mxu0 0
    %4627 = vmatpush1.bf16.msra.mxu0 %v4614
    %4628 = vmatprep.subr.bf16.mxu0 0
    %4629 = vmatpush1.bf16.msra.mxu0 %v4613
    %4630 = vmatprep.subr.bf16.mxu0 0
    %4631 = vmatpush1.bf16.msra.mxu0 %v4612
    %4632 = vmatprep.subr.bf16.mxu0 0
    %4633 = vmatpush1.bf16.msra.mxu0 %v4611
    %4634 = vmatprep.subr.bf16.mxu0 0
    %4635 = vmatpush1.bf16.msra.mxu0 %v4610
    %4636 = vmatprep.subr.bf16.mxu0 0
    %4637 = vmatpush1.bf16.msra.mxu0 %v4609
    %4638 = vmatprep.subr.bf16.mxu0 0
    %4639 = vmatpush1.bf16.msra.mxu0 %v4608
    %4640 = vmatprep.subr.bf16.mxu0 0
    %4641 = vmatpush2.bf16.msra.mxu0 0
    %4642 = vmatprep.subr.bf16.mxu0 0
    %4643 = vmatpush2.bf16.msra.mxu0 0
    %4644 = vmatprep.subr.bf16.mxu0 0
    %4645 = vmatpush2.bf16.msra.mxu0 0
    %4646 = vmatprep.subr.bf16.mxu0 0
    %4647 = vmatpush2.bf16.msra.mxu0 0
    %4648 = vmatprep.subr.bf16.mxu0 0
    %4649 = vmatpush2.bf16.msra.mxu0 0
    %4650 = vmatprep.subr.bf16.mxu0 0
    %4651 = vmatpush2.bf16.msra.mxu0 0
    %4652 = vmatprep.subr.bf16.mxu0 0
    %4653 = vmatpush2.bf16.msra.mxu0 0
    %4654 = vmatprep.subr.bf16.mxu0 0
    %4655 = vmatpush2.bf16.msra.mxu0 0
    %4656 = vmatprep.mubr.bf16.mxu0 0
    %4657 = vmatmul.mubr.bf16.gmra.mxu0 %v4552
    %v4658 = vpop.f32.mrf.mxu0
    %v4659 = vadd.f32 %v4574, %v4658
    %v4660 = vpop.f32.mrf.mxu0
    %v4661 = vpop.f32.mrf.mxu0
    %v4662 = vpop.f32.mrf.mxu0
    %4663 = vdwg.mxu0
    %v4664 = vmax.f32 %v4659, 0.0
    %v4665 = vpack.c.bf16 %v4664, %v4664
    %v4666 = vld [vmem:[#allocation15] sm:$0xf]
    %v4667 = vld [vmem:[#allocation15 + $0x4] sm:$0xf]
    %v4668 = vld [vmem:[#allocation15 + $0x8] sm:$0xf]
    %v4669 = vld [vmem:[#allocation15 + $0xc] sm:$0xf]
    %v4670 = vld [vmem:[#allocation15 + $0x10] sm:$0xf]
    %v4671 = vld [vmem:[#allocation15 + $0x14] sm:$0xf]
    %v4672 = vld [vmem:[#allocation15 + $0x18] sm:$0xf]
    %v4673 = vld [vmem:[#allocation15 + $0x1c] sm:$0xf]
    %v4674 = vld [vmem:[#allocation15 + $0x20] sm:$0xf]
    %v4675 = vld [vmem:[#allocation15 + $0x24] sm:$0xf]
    %v4676 = vld [vmem:[#allocation15 + $0x28] sm:$0xf]
    %v4677 = vld [vmem:[#allocation15 + $0x2c] sm:$0xf]
    %v4678 = vld [vmem:[#allocation15 + $0x30] sm:$0xf]
    %v4679 = vld [vmem:[#allocation15 + $0x34] sm:$0xf]
    %v4680 = vld [vmem:[#allocation15 + $0x38] sm:$0xf]
    %v4681 = vld [vmem:[#allocation15 + $0x3c] sm:$0xf]
    %v4682 = vld [vmem:[%s10] sm:$0x1]
    %v4684 = vlaneseq
    %v4685 = vshrl.u32 %v4684, 7
    %v4686 = vsub.s32 0, %v4685
    %v4687 = vrot.slane %v4682, %v4686
    %v4705 = vunpack.c.l.b16 %v4666
    %v4706 = vunpack.c.l.b16 %v4667
    %v4707 = vunpack.c.l.b16 %v4668
    %v4708 = vunpack.c.l.b16 %v4669
    %v4709 = vunpack.c.l.b16 %v4670
    %v4710 = vunpack.c.l.b16 %v4671
    %v4711 = vunpack.c.l.b16 %v4672
    %v4712 = vunpack.c.l.b16 %v4673
    %v4713 = vunpack.c.l.b16 %v4674
    %v4714 = vunpack.c.l.b16 %v4675
    %v4715 = vunpack.c.l.b16 %v4676
    %v4716 = vunpack.c.l.b16 %v4677
    %v4717 = vunpack.c.l.b16 %v4678
    %v4718 = vunpack.c.l.b16 %v4679
    %v4719 = vunpack.c.l.b16 %v4680
    %v4720 = vunpack.c.l.b16 %v4681
    %v4721 = vpack.c.b16 %v4706, %v4705
    %v4722 = vpack.c.b16 %v4708, %v4707
    %v4723 = vpack.c.b16 %v4710, %v4709
    %v4724 = vpack.c.b16 %v4712, %v4711
    %v4725 = vpack.c.b16 %v4714, %v4713
    %v4726 = vpack.c.b16 %v4716, %v4715
    %v4727 = vpack.c.b16 %v4718, %v4717
    %v4728 = vpack.c.b16 %v4720, %v4719
    %4737 = vmatprep.subr.bf16.mxu0 0
    %4738 = vmatpush1.bf16.msra.mxu0 %v4728
    %4739 = vmatprep.subr.bf16.mxu0 0
    %4740 = vmatpush1.bf16.msra.mxu0 %v4727
    %4741 = vmatprep.subr.bf16.mxu0 0
    %4742 = vmatpush1.bf16.msra.mxu0 %v4726
    %4743 = vmatprep.subr.bf16.mxu0 0
    %4744 = vmatpush1.bf16.msra.mxu0 %v4725
    %4745 = vmatprep.subr.bf16.mxu0 0
    %4746 = vmatpush1.bf16.msra.mxu0 %v4724
    %4747 = vmatprep.subr.bf16.mxu0 0
    %4748 = vmatpush1.bf16.msra.mxu0 %v4723
    %4749 = vmatprep.subr.bf16.mxu0 0
    %4750 = vmatpush1.bf16.msra.mxu0 %v4722
    %4751 = vmatprep.subr.bf16.mxu0 0
    %4752 = vmatpush1.bf16.msra.mxu0 %v4721
    %4753 = vmatprep.subr.bf16.mxu0 0
    %4754 = vmatpush2.bf16.msra.mxu0 0
    %4755 = vmatprep.subr.bf16.mxu0 0
    %4756 = vmatpush2.bf16.msra.mxu0 0
    %4757 = vmatprep.subr.bf16.mxu0 0
    %4758 = vmatpush2.bf16.msra.mxu0 0
    %4759 = vmatprep.subr.bf16.mxu0 0
    %4760 = vmatpush2.bf16.msra.mxu0 0
    %4761 = vmatprep.subr.bf16.mxu0 0
    %4762 = vmatpush2.bf16.msra.mxu0 0
    %4763 = vmatprep.subr.bf16.mxu0 0
    %4764 = vmatpush2.bf16.msra.mxu0 0
    %4765 = vmatprep.subr.bf16.mxu0 0
    %4766 = vmatpush2.bf16.msra.mxu0 0
    %4767 = vmatprep.subr.bf16.mxu0 0
    %4768 = vmatpush2.bf16.msra.mxu0 0
    %4769 = vmatprep.mubr.bf16.mxu0 0
    %4770 = vmatmul.mubr.bf16.gmra.mxu0 %v4665
    %v4771 = vpop.f32.mrf.mxu0
    %v4772 = vadd.f32 %v4687, %v4771
    %v4773 = vpop.f32.mrf.mxu0
    %v4774 = vpop.f32.mrf.mxu0
    %v4775 = vpop.f32.mrf.mxu0
    %4776 = vdwg.mxu0
    %4777 = vst [vmem:[#allocation16] sm:$0xff] %v4772
    // Predicated region
    $region74: #{tpu_custom_call.1} parent=1 // pred_check
      _
    $region75: #{tpu_custom_call.1} parent=1 // pred_check_branch
      %4779 = sbr.rel (0) target = $region77
    $region76: #{tpu_custom_call.1} parent=1 // pred_region
      %s4781 = ssub.s32 128, 128
      %4782 = vsyncadd [#allocation6], %s4781
      %s4784 = sshll.u32 [#allocation16], 4
      %s4785 = int_to_ptr.vmem [resolvable:$true] %s4784
      %4787 = dma.vmem_to_hbm [thread:$0]  %s4785, 128, %s11, [#allocation6]
    $region77: #{tpu_custom_call.1} parent=1 // pred_fallthru
      _
    // Predicated region
    $region78: #{tpu_custom_call.1} parent=1 // pred_check
      _
    $region79: #{tpu_custom_call.1} parent=1 // pred_check_branch
      %4789 = sbr.rel (0) target = $region81
    $region80: #{tpu_custom_call.1} parent=1 // pred_region
      %4790 = dma.done [#allocation6], 128
    $region81: #{tpu_custom_call.1} parent=1 // pred_fallthru
      _
    %4791 = vsyncpa [#allocation5], 1
    %4792 = vsyncpa [#allocation8], 1
    %4793 = vsyncpa [#allocation11], 1
    %4794 = vsyncpa [#allocation14], 1
    %4795 = vsyncpa [#allocation6], 1

</llo_original>
